<compile_context>
chip_gen: v6e
topology: v6e:2x2x1
jax: 0.10.0
libtpu: 0.0.40
codegen_flags: <defaults>
</compile_context>

<pallas_src>
import jax
import jax.numpy as jnp
from jax.experimental import pallas as pl
from jax.experimental.pallas import tpu as pltpu

IN_FEATURES = 784      # 28 * 28 (torch.flatten of (B, 1, 28, 28))
HIDDEN = 512


def _round_up(x, m):
    return (x + m - 1) // m * m


def _cdiv(a, b):
    return -(-a // b)


def _ae_kernel(x_ref,
               w1_ref, b1_ref,   # encoder.linear1: 784 -> 512
               w2_ref, b2_ref,   # encoder.linear2: 512 -> latent_pad
               w3_ref, b3_ref,   # decoder.linear1: latent_pad -> 512
               w4_ref, b4_ref,   # decoder.linear2: 512 -> 784
               o_ref):
    # Cast to bf16 in-kernel (VPU) -- avoids a separate XLA cast pass over HBM.
    x = x_ref[...].astype(jnp.bfloat16)                                 # (TM, 784)

    # Encoder (bf16 MXU inputs, f32 accumulation, f32 bias/activation)
    h1 = jnp.dot(x, w1_ref[...], preferred_element_type=jnp.float32) + b1_ref[...]
    h1 = jnp.maximum(h1, 0.0).astype(jnp.bfloat16)                      # relu
    z = (jnp.dot(h1, w2_ref[...], preferred_element_type=jnp.float32)
         + b2_ref[...]).astype(jnp.bfloat16)

    # Decoder
    h2 = jnp.dot(z, w3_ref[...], preferred_element_type=jnp.float32) + b3_ref[...]
    h2 = jnp.maximum(h2, 0.0).astype(jnp.bfloat16)                      # relu
    y = jnp.dot(h2, w4_ref[...], preferred_element_type=jnp.float32) + b4_ref[...]
    # sigmoid(y) == 0.5 * tanh(0.5*y) + 0.5  (one EUP op, no full-precision divide)
    o_ref[...] = (0.5 * jnp.tanh(0.5 * y) + 0.5).astype(o_ref.dtype)


def init_params(latent_dims, key):
    """Deterministic f32 parameter init (shapes match the PyTorch module)."""
    ks = jax.random.split(key, 8)

    def lin(kw, kb, fan_in, fan_out):
        bound = 1.0 / jnp.sqrt(fan_in)
        w = jax.random.uniform(kw, (fan_in, fan_out), jnp.float32, -bound, bound)
        b = jax.random.uniform(kb, (1, fan_out), jnp.float32, -bound, bound)
        return w, b

    w1, b1 = lin(ks[0], ks[1], IN_FEATURES, HIDDEN)        # encoder.linear1
    w2, b2 = lin(ks[2], ks[3], HIDDEN, latent_dims)        # encoder.linear2
    w3, b3 = lin(ks[4], ks[5], latent_dims, HIDDEN)        # decoder.linear1
    w4, b4 = lin(ks[6], ks[7], HIDDEN, IN_FEATURES)        # decoder.linear2
    return (w1, b1, w2, b2, w3, b3, w4, b4)


def prepare_params(params):
    """Cast weights to bf16 and zero-pad the latent dim to a multiple of 128 (exact)."""
    w1, b1, w2, b2, w3, b3, w4, b4 = params
    latent = w2.shape[1]
    lpad = _round_up(latent, 128) - latent
    w2p = jnp.pad(w2.astype(jnp.bfloat16), ((0, 0), (0, lpad)))         # (512, Lp)
    b2p = jnp.pad(b2, ((0, 0), (0, lpad)))                              # (1, Lp), zeros
    w3p = jnp.pad(w3.astype(jnp.bfloat16), ((0, lpad), (0, 0)))         # (Lp, 512)
    return (w1.astype(jnp.bfloat16), b1,
            w2p, b2p,
            w3p, b3,
            w4.astype(jnp.bfloat16), b4)


def _choose_tiling(B, tm_max):
    """Adaptive batch tile: bound padding waste; even grid length for megacore balance."""
    n = max(_cdiv(B, tm_max), 2 if B >= 512 else 1)
    if n == 1:
        return B, 1                      # single full-extent block (no mult-of-8 needed)
    if n % 2:
        n += 1                           # even grid -> both v7x TensorCores stay busy
    tm = _round_up(_cdiv(B, n), 8)
    n = _cdiv(B, tm)
    return tm, n


def autoencoder_forward(x, prepared_params, *, tm_max=1024, out_dtype=jnp.float32):
    """x: (B, 1, 28, 28) float32 NCHW. Returns (B, 1, 28, 28) out_dtype (default f32)."""
    B = x.shape[0]
    latent_pad = prepared_params[2].shape[1]
    x_flat = x.reshape(B, IN_FEATURES)                     # free contiguous reshape

    tm, n_tiles = _choose_tiling(B, tm_max)
    grid = (n_tiles,)

    row_in_spec = pl.BlockSpec((tm, IN_FEATURES), lambda i: (i, 0))
    row_out_spec = pl.BlockSpec((tm, IN_FEATURES), lambda i: (i, 0))

    def const_spec(arr):
        # Full-array block, same block index every grid step -> stays VMEM-resident.
        return pl.BlockSpec(arr.shape, lambda i: (0, 0))

    in_specs = [row_in_spec] + [const_spec(p) for p in prepared_params]

    flops = 2 * B * (IN_FEATURES * HIDDEN + HIDDEN * latent_pad
                     + latent_pad * HIDDEN + HIDDEN * IN_FEATURES)
    bytes_accessed = (B * IN_FEATURES * 4                              # f32 input
                      + B * IN_FEATURES * jnp.dtype(out_dtype).itemsize
                      + sum(int(p.size) * p.dtype.itemsize for p in prepared_params))
    cost = pl.CostEstimate(flops=flops,
                           transcendentals=B * IN_FEATURES,            # tanh (sigmoid)
                           bytes_accessed=bytes_accessed)

    out_flat = pl.pallas_call(
        _ae_kernel,
        out_shape=jax.ShapeDtypeStruct((B, IN_FEATURES), out_dtype),
        grid=grid,
        in_specs=in_specs,
        out_specs=row_out_spec,
        compiler_params=pltpu.CompilerParams(
            dimension_semantics=("parallel",),          # megacore-shard batch on v7x
            vmem_limit_bytes=48 * 1024 * 1024),         # safe on v7x's 64 MiB VMEM
        cost_estimate=cost,
    )(x_flat, *prepared_params)

    # Contiguous reshape only (no slice, no pad) -> no extra HBM pass.
    return out_flat.reshape(B, 1, 28, 28)


# ------------------------- references for correctness -------------------------

def _reference_forward_f32(x, params):
    """Pure-f32 JAX reference (matches the PyTorch module exactly)."""
    w1, b1, w2, b2, w3, b3, w4, b4 = params
    B = x.shape[0]
    h = x.reshape(B, IN_FEATURES)
    h = jnp.maximum(h @ w1 + b1, 0.0)
    z = h @ w2 + b2
    h = jnp.maximum(z @ w3 + b3, 0.0)
    y = jax.nn.sigmoid(h @ w4 + b4)
    return y.reshape(B, 1, 28, 28)


def _reference_forward_bf16(x, prepared_params):
    """JAX reference using the same bf16 weights / bf16-activation casts as the kernel."""
    w1, b1, w2, b2, w3, b3, w4, b4 = prepared_params
    B = x.shape[0]
    h = x.reshape(B, IN_FEATURES).astype(jnp.bfloat16)
    h1 = jnp.maximum(jnp.dot(h, w1, preferred_element_type=jnp.float32) + b1, 0.0)
    z = jnp.dot(h1.astype(jnp.bfloat16), w2, preferred_element_type=jnp.float32) + b2
    h2 = jnp.maximum(jnp.dot(z.astype(jnp.bfloat16), w3,
                             preferred_element_type=jnp.float32) + b3, 0.0)
    y = jax.nn.sigmoid(jnp.dot(h2.astype(jnp.bfloat16), w4,
                               preferred_element_type=jnp.float32) + b4)
    return y.reshape(B, 1, 28, 28)


if __name__ == "__main__":
    latent_dims = 32

    key = jax.random.PRNGKey(0)
    k_params, k_x1, k_x2 = jax.random.split(key, 3)

    params = init_params(latent_dims, k_params)
    prepared = prepare_params(params)

    # Small batch: single full-extent block (tm = B = 2), no padding anywhere.
    x_small = jax.random.uniform(k_x1, (2, 1, 28, 28), jnp.float32)
    out_small = jax.block_until_ready(autoencoder_forward(x_small, prepared))
    assert out_small.shape == (2, 1, 28, 28)
    assert out_small.dtype == jnp.float32
    ref_bf16 = _reference_forward_bf16(x_small, prepared)
    ref_f32 = _reference_forward_f32(x_small, params)
    assert jnp.allclose(out_small, ref_bf16, atol=2e-3, rtol=2e-3)
    assert jnp.allclose(out_small, ref_f32, atol=3e-2, rtol=3e-2)

    # Batch exercising the multi-tile grid with a partial (masked) last block:
    # B=200, tm_max=128 -> tm=104, grid=2, last block has 96 valid rows.
    x_big = jax.random.uniform(k_x2, (200, 1, 28, 28), jnp.float32)
    out_big = jax.block_until_ready(autoencoder_forward(x_big, prepared, tm_max=128))
    assert out_big.shape == (200, 1, 28, 28)
    ref_big = _reference_forward_bf16(x_big, prepared)
    assert jnp.allclose(out_big, ref_big, atol=2e-3, rtol=2e-3)

    print("KERNEL_OK")
</pallas_src>

<mosaic_0001>
module attributes {stable_mosaic.version = 11 : i64} {
  func.func @_ae_kernel(%arg0: i32, %arg1: memref<2x784xf32, #tpu.memory_space<vmem>>, %arg2: memref<784x512xbf16, #tpu.memory_space<vmem>>, %arg3: memref<1x512xf32, #tpu.memory_space<vmem>>, %arg4: memref<512x128xbf16, #tpu.memory_space<vmem>>, %arg5: memref<1x128xf32, #tpu.memory_space<vmem>>, %arg6: memref<128x512xbf16, #tpu.memory_space<vmem>>, %arg7: memref<1x512xf32, #tpu.memory_space<vmem>>, %arg8: memref<512x784xbf16, #tpu.memory_space<vmem>>, %arg9: memref<1x784xf32, #tpu.memory_space<vmem>>, %arg10: memref<2x784xf32, #tpu.memory_space<vmem>>) attributes {dimension_semantics = [#tpu.dimension_semantics<parallel>], iteration_bounds = array<i64: 1>, scalar_prefetch = 0 : i64, scratch_operands = 0 : i64, tpu.core_type = #tpu.core_type<tc>, window_params = [{transform_indices = @transform_0, window_bounds = array<i64: 2, 784>}, {pipeline_mode = #tpu.pipeline_mode<synchronous>, transform_indices = @transform_1, window_bounds = array<i64: 784, 512>}, {pipeline_mode = #tpu.pipeline_mode<synchronous>, transform_indices = @transform_2, window_bounds = array<i64: 1, 512>}, {pipeline_mode = #tpu.pipeline_mode<synchronous>, transform_indices = @transform_3, window_bounds = array<i64: 512, 128>}, {pipeline_mode = #tpu.pipeline_mode<synchronous>, transform_indices = @transform_4, window_bounds = array<i64: 1, 128>}, {pipeline_mode = #tpu.pipeline_mode<synchronous>, transform_indices = @transform_5, window_bounds = array<i64: 128, 512>}, {pipeline_mode = #tpu.pipeline_mode<synchronous>, transform_indices = @transform_6, window_bounds = array<i64: 1, 512>}, {pipeline_mode = #tpu.pipeline_mode<synchronous>, transform_indices = @transform_7, window_bounds = array<i64: 512, 784>}, {pipeline_mode = #tpu.pipeline_mode<synchronous>, transform_indices = @transform_8, window_bounds = array<i64: 1, 784>}, {transform_indices = @transform_9, window_bounds = array<i64: 2, 784>}]} {
    %c0 = arith.constant 0 : index
    %c0_0 = arith.constant 0 : index
    %0 = vector.load %arg1[%c0, %c0_0] : memref<2x784xf32, #tpu.memory_space<vmem>>, vector<2x784xf32>
    %1 = arith.truncf %0 : vector<2x784xf32> to vector<2x784xbf16>
    %c0_1 = arith.constant 0 : index
    %c0_2 = arith.constant 0 : index
    %2 = vector.load %arg2[%c0_1, %c0_2] : memref<784x512xbf16, #tpu.memory_space<vmem>>, vector<784x512xbf16>
    %cst = arith.constant dense<0.000000e+00> : vector<2x512xf32>
    %3 = tpu.matmul %1, %2, %cst {dimension_numbers = #tpu.dot_dimension_numbers<[1], [0], [0], [1], [0, 0, 1, 1], [], []>} : vector<2x784xbf16>, vector<784x512xbf16>, vector<2x512xf32> -> vector<2x512xf32>
    %c0_3 = arith.constant 0 : index
    %c0_4 = arith.constant 0 : index
    %4 = vector.load %arg3[%c0_3, %c0_4] : memref<1x512xf32, #tpu.memory_space<vmem>>, vector<1x512xf32>
    %5 = vector.broadcast %4 : vector<1x512xf32> to vector<2x512xf32>
    %6 = arith.addf %3, %5 : vector<2x512xf32>
    %cst_5 = arith.constant 0.000000e+00 : f32
    %7 = vector.broadcast %cst_5 : f32 to vector<2x512xf32>
    %8 = arith.maximumf %6, %7 : vector<2x512xf32>
    %9 = arith.truncf %8 : vector<2x512xf32> to vector<2x512xbf16>
    %c0_6 = arith.constant 0 : index
    %c0_7 = arith.constant 0 : index
    %10 = vector.load %arg4[%c0_6, %c0_7] : memref<512x128xbf16, #tpu.memory_space<vmem>>, vector<512x128xbf16>
    %cst_8 = arith.constant dense<0.000000e+00> : vector<2x128xf32>
    %11 = tpu.matmul %9, %10, %cst_8 {dimension_numbers = #tpu.dot_dimension_numbers<[1], [0], [0], [1], [0, 0, 1, 1], [], []>} : vector<2x512xbf16>, vector<512x128xbf16>, vector<2x128xf32> -> vector<2x128xf32>
    %c0_9 = arith.constant 0 : index
    %c0_10 = arith.constant 0 : index
    %12 = vector.load %arg5[%c0_9, %c0_10] : memref<1x128xf32, #tpu.memory_space<vmem>>, vector<1x128xf32>
    %13 = vector.broadcast %12 : vector<1x128xf32> to vector<2x128xf32>
    %14 = arith.addf %11, %13 : vector<2x128xf32>
    %15 = arith.truncf %14 : vector<2x128xf32> to vector<2x128xbf16>
    %c0_11 = arith.constant 0 : index
    %c0_12 = arith.constant 0 : index
    %16 = vector.load %arg6[%c0_11, %c0_12] : memref<128x512xbf16, #tpu.memory_space<vmem>>, vector<128x512xbf16>
    %cst_13 = arith.constant dense<0.000000e+00> : vector<2x512xf32>
    %17 = tpu.matmul %15, %16, %cst_13 {dimension_numbers = #tpu.dot_dimension_numbers<[1], [0], [0], [1], [0, 0, 1, 1], [], []>} : vector<2x128xbf16>, vector<128x512xbf16>, vector<2x512xf32> -> vector<2x512xf32>
    %c0_14 = arith.constant 0 : index
    %c0_15 = arith.constant 0 : index
    %18 = vector.load %arg7[%c0_14, %c0_15] : memref<1x512xf32, #tpu.memory_space<vmem>>, vector<1x512xf32>
    %19 = vector.broadcast %18 : vector<1x512xf32> to vector<2x512xf32>
    %20 = arith.addf %17, %19 : vector<2x512xf32>
    %cst_16 = arith.constant 0.000000e+00 : f32
    %21 = vector.broadcast %cst_16 : f32 to vector<2x512xf32>
    %22 = arith.maximumf %20, %21 : vector<2x512xf32>
    %23 = arith.truncf %22 : vector<2x512xf32> to vector<2x512xbf16>
    %c0_17 = arith.constant 0 : index
    %c0_18 = arith.constant 0 : index
    %24 = vector.load %arg8[%c0_17, %c0_18] : memref<512x784xbf16, #tpu.memory_space<vmem>>, vector<512x784xbf16>
    %cst_19 = arith.constant dense<0.000000e+00> : vector<2x784xf32>
    %25 = tpu.matmul %23, %24, %cst_19 {dimension_numbers = #tpu.dot_dimension_numbers<[1], [0], [0], [1], [0, 0, 1, 1], [], []>} : vector<2x512xbf16>, vector<512x784xbf16>, vector<2x784xf32> -> vector<2x784xf32>
    %c0_20 = arith.constant 0 : index
    %c0_21 = arith.constant 0 : index
    %26 = vector.load %arg9[%c0_20, %c0_21] : memref<1x784xf32, #tpu.memory_space<vmem>>, vector<1x784xf32>
    %27 = vector.broadcast %26 : vector<1x784xf32> to vector<2x784xf32>
    %28 = arith.addf %25, %27 : vector<2x784xf32>
    %cst_22 = arith.constant 5.000000e-01 : f32
    %29 = vector.broadcast %cst_22 : f32 to vector<2x784xf32>
    %30 = arith.mulf %29, %28 : vector<2x784xf32>
    %31 = math.tanh %30 : vector<2x784xf32>
    %cst_23 = arith.constant 5.000000e-01 : f32
    %32 = vector.broadcast %cst_23 : f32 to vector<2x784xf32>
    %33 = arith.mulf %32, %31 : vector<2x784xf32>
    %cst_24 = arith.constant 5.000000e-01 : f32
    %34 = vector.broadcast %cst_24 : f32 to vector<2x784xf32>
    %35 = arith.addf %33, %34 : vector<2x784xf32>
    %c0_25 = arith.constant 0 : index
    %c0_26 = arith.constant 0 : index
    %36 = vector.load %arg10[%c0_25, %c0_26] : memref<2x784xf32, #tpu.memory_space<vmem>>, vector<2x784xf32>
    tpu.vector_store %arg10[%c0_25, %c0_26], %35 {strides = array<i32>} : memref<2x784xf32, #tpu.memory_space<vmem>>, vector<2x784xf32>,
    return
  }
  func.func @transform_0(%arg0: i32) -> (i32, i32) {
    %c0_i32 = arith.constant 0 : i32
    %c0_i32_0 = arith.constant 0 : i32
    return %arg0, %c0_i32 : i32, i32
  }
  func.func @transform_1(%arg0: i32) -> (i32, i32) {
    %c0_i32 = arith.constant 0 : i32
    %c0_i32_0 = arith.constant 0 : i32
    %c0_i32_1 = arith.constant 0 : i32
    return %c0_i32, %c0_i32_0 : i32, i32
  }
  func.func @transform_2(%arg0: i32) -> (i32, i32) {
    %c0_i32 = arith.constant 0 : i32
    %c0_i32_0 = arith.constant 0 : i32
    %c0_i32_1 = arith.constant 0 : i32
    return %c0_i32, %c0_i32_0 : i32, i32
  }
  func.func @transform_3(%arg0: i32) -> (i32, i32) {
    %c0_i32 = arith.constant 0 : i32
    %c0_i32_0 = arith.constant 0 : i32
    %c0_i32_1 = arith.constant 0 : i32
    return %c0_i32, %c0_i32_0 : i32, i32
  }
  func.func @transform_4(%arg0: i32) -> (i32, i32) {
    %c0_i32 = arith.constant 0 : i32
    %c0_i32_0 = arith.constant 0 : i32
    %c0_i32_1 = arith.constant 0 : i32
    return %c0_i32, %c0_i32_0 : i32, i32
  }
  func.func @transform_5(%arg0: i32) -> (i32, i32) {
    %c0_i32 = arith.constant 0 : i32
    %c0_i32_0 = arith.constant 0 : i32
    %c0_i32_1 = arith.constant 0 : i32
    return %c0_i32, %c0_i32_0 : i32, i32
  }
  func.func @transform_6(%arg0: i32) -> (i32, i32) {
    %c0_i32 = arith.constant 0 : i32
    %c0_i32_0 = arith.constant 0 : i32
    %c0_i32_1 = arith.constant 0 : i32
    return %c0_i32, %c0_i32_0 : i32, i32
  }
  func.func @transform_7(%arg0: i32) -> (i32, i32) {
    %c0_i32 = arith.constant 0 : i32
    %c0_i32_0 = arith.constant 0 : i32
    %c0_i32_1 = arith.constant 0 : i32
    return %c0_i32, %c0_i32_0 : i32, i32
  }
  func.func @transform_8(%arg0: i32) -> (i32, i32) {
    %c0_i32 = arith.constant 0 : i32
    %c0_i32_0 = arith.constant 0 : i32
    %c0_i32_1 = arith.constant 0 : i32
    return %c0_i32, %c0_i32_0 : i32, i32
  }
  func.func @transform_9(%arg0: i32) -> (i32, i32) {
    %c0_i32 = arith.constant 0 : i32
    %c0_i32_0 = arith.constant 0 : i32
    return %arg0, %c0_i32 : i32, i32
  }
}

</mosaic_0001>

<llo_original>
// kernel: tpu_custom_call.1
$region0: #{tpu_custom_call.1}
  #allocation0 [shape = 'u32[]', space=smem, size = 0x4, offset = 0x4, fixed_abs, tag = 'smem constant byte address 0x4 - core index']
  #allocation1 [shape = 'u32[144,128]{1,0:T(1,128)}', space=vmem, size = 0x12000, scoped, tag = 'internal scratch']
  %s0 = inlined_call_operand.vmem [shape: f32[2,784], index: 0, kind: input, shape index: {}]
  %s1 = inlined_call_operand.vmem [shape: bf16[784,512], index: 1, kind: input, shape index: {}]
  %s2 = inlined_call_operand.vmem [shape: f32[1,512], index: 2, kind: input, shape index: {}]
  %s3 = inlined_call_operand.vmem [shape: bf16[512,128], index: 3, kind: input, shape index: {}]
  %s4 = inlined_call_operand.vmem [shape: f32[1,128], index: 4, kind: input, shape index: {}]
  %s5 = inlined_call_operand.vmem [shape: bf16[128,512], index: 5, kind: input, shape index: {}]
  %s6 = inlined_call_operand.vmem [shape: f32[1,512], index: 6, kind: input, shape index: {}]
  %s7 = inlined_call_operand.vmem [shape: bf16[512,784], index: 7, kind: input, shape index: {}]
  %s8 = inlined_call_operand.vmem [shape: f32[1,784], index: 8, kind: input, shape index: {}]
  %s9 = inlined_call_operand.hbm [shape: f32[2,784], index: 9, kind: output, shape index: {}]
  %s10 = sld [smem:[#allocation0]]
  $region46: #{tpu_custom_call.1} parent=0
    _
  %s12 = ssub.s32 1, %s10
  %s13 = scalar_select 0, %s12, %s10
  $region1: #{tpu_custom_call.1} parent=0
    #allocation2 [shape = 'u8[7168]{0}', space=vmem, size = 0x1c00, scoped, tag = 'output window, operand 0, single buffered']
    #allocation3 [shape = 's32[1]{0}', space=sflag, size = 0x4, scoped, tag = 'scoped memory for tpu_custom_call.1']
    %14 = vsyncpa [#allocation3], 0
    // Predicated region
    $region2: #{tpu_custom_call.1} parent=1 // pred_check
      _
    $region3: #{tpu_custom_call.1} parent=1 // pred_check_branch
      %16 = sbr.rel (0) target = $region5
    $region4: #{tpu_custom_call.1} parent=1 // pred_region
      _
    $region5: #{tpu_custom_call.1} parent=1 // pred_fallthru
      _
    // Predicated region
    $region6: #{tpu_custom_call.1} parent=1 // pred_check
      _
    $region7: #{tpu_custom_call.1} parent=1 // pred_check_branch
      %18 = sbr.rel (0) target = $region9
    $region8: #{tpu_custom_call.1} parent=1 // pred_region
      _
    $region9: #{tpu_custom_call.1} parent=1 // pred_fallthru
      _
    // Predicated region
    $region10: #{tpu_custom_call.1} parent=1 // pred_check
      _
    $region11: #{tpu_custom_call.1} parent=1 // pred_check_branch
      %20 = sbr.rel (0) target = $region13
    $region12: #{tpu_custom_call.1} parent=1 // pred_region
      _
    $region13: #{tpu_custom_call.1} parent=1 // pred_fallthru
      _
    // Predicated region
    $region14: #{tpu_custom_call.1} parent=1 // pred_check
      _
    $region15: #{tpu_custom_call.1} parent=1 // pred_check_branch
      %22 = sbr.rel (0) target = $region17
    $region16: #{tpu_custom_call.1} parent=1 // pred_region
      _
    $region17: #{tpu_custom_call.1} parent=1 // pred_fallthru
      _
    // Predicated region
    $region18: #{tpu_custom_call.1} parent=1 // pred_check
      _
    $region19: #{tpu_custom_call.1} parent=1 // pred_check_branch
      %24 = sbr.rel (0) target = $region21
    $region20: #{tpu_custom_call.1} parent=1 // pred_region
      _
    $region21: #{tpu_custom_call.1} parent=1 // pred_fallthru
      _
    // Predicated region
    $region22: #{tpu_custom_call.1} parent=1 // pred_check
      _
    $region23: #{tpu_custom_call.1} parent=1 // pred_check_branch
      %26 = sbr.rel (0) target = $region25
    $region24: #{tpu_custom_call.1} parent=1 // pred_region
      _
    $region25: #{tpu_custom_call.1} parent=1 // pred_fallthru
      _
    // Predicated region
    $region26: #{tpu_custom_call.1} parent=1 // pred_check
      _
    $region27: #{tpu_custom_call.1} parent=1 // pred_check_branch
      %28 = sbr.rel (0) target = $region29
    $region28: #{tpu_custom_call.1} parent=1 // pred_region
      _
    $region29: #{tpu_custom_call.1} parent=1 // pred_fallthru
      _
    // Predicated region
    $region30: #{tpu_custom_call.1} parent=1 // pred_check
      _
    $region31: #{tpu_custom_call.1} parent=1 // pred_check_branch
      %30 = sbr.rel (0) target = $region33
    $region32: #{tpu_custom_call.1} parent=1 // pred_region
      _
    $region33: #{tpu_custom_call.1} parent=1 // pred_fallthru
      _
    // Predicated region
    $region34: #{tpu_custom_call.1} parent=1 // pred_check
      _
    $region35: #{tpu_custom_call.1} parent=1 // pred_check_branch
      %32 = sbr.rel (0) target = $region37
    $region36: #{tpu_custom_call.1} parent=1 // pred_region
      _
    $region37: #{tpu_custom_call.1} parent=1 // pred_fallthru
      _
    %v34 = vld [vmem:[%s0] sm:$0xff]
    %v35 = vld [vmem:[%s0 + $0x8] sm:$0x3f]
    %v38 = vcombine.high %v34, %v34
    %v40 = vunpack.c.l.s4 1983009808
    %v41 = vunpack.c.0.s8 %v40
    %v42 = vlaneseq
    %v43 = vshrl.u32 %v42, 7
    %v44 = vsub.s32 %v41, %v43
    %v45 = vrot.slane %v34, %v44
    %v47 = vunpack.c.l.s4 1983009808
    %v48 = vunpack.c.0.s8 %v47
    %v49 = vlaneseq
    %v50 = vshrl.u32 %v49, 7
    %v51 = vsub.s32 %v48, %v50
    %v52 = vrot.slane %v38, %v51
    %v53 = vcombine.high %v45, %v45
    %v54 = vcombine.high %v52, %v52
    %v55 = vcombine.high %v35, %v35
    %v57 = vunpack.c.l.s4 1983009808
    %v58 = vunpack.c.0.s8 %v57
    %v59 = vlaneseq
    %v60 = vshrl.u32 %v59, 7
    %v61 = vsub.s32 %v58, %v60
    %v62 = vrot.slane %v35, %v61
    %v64 = vunpack.c.l.s4 1983009808
    %v65 = vunpack.c.0.s8 %v64
    %v66 = vlaneseq
    %v67 = vshrl.u32 %v66, 7
    %v68 = vsub.s32 %v65, %v67
    %v69 = vrot.slane %v55, %v68
    %v70 = vcombine.high %v62, %v62
    %v78 = vpack.c.bf16 %v45, %v45
    %v79 = vpack.c.bf16 %v53, %v53
    %v80 = vpack.c.bf16 %v52, %v52
    %v81 = vpack.c.bf16 %v54, %v54
    %v82 = vpack.c.bf16 %v62, %v62
    %v83 = vpack.c.bf16 %v70, %v70
    %v84 = vpack.c.bf16 %v69, %v69
    %v85 = vld [vmem:[%s1] sm:$0xff]
    %v86 = vld [vmem:[%s1 + $0x8] sm:$0xff]
    %v87 = vld [vmem:[%s1 + $0x10] sm:$0xff]
    %v88 = vld [vmem:[%s1 + $0x18] sm:$0xff]
    %v89 = vld [vmem:[%s1 + $0x20] sm:$0xff]
    %v90 = vld [vmem:[%s1 + $0x28] sm:$0xff]
    %v91 = vld [vmem:[%s1 + $0x30] sm:$0xff]
    %v92 = vld [vmem:[%s1 + $0x38] sm:$0xff]
    %v93 = vld [vmem:[%s1 + $0x40] sm:$0xff]
    %v94 = vld [vmem:[%s1 + $0x48] sm:$0xff]
    %v95 = vld [vmem:[%s1 + $0x50] sm:$0xff]
    %v96 = vld [vmem:[%s1 + $0x58] sm:$0xff]
    %v97 = vld [vmem:[%s1 + $0x60] sm:$0xff]
    %v98 = vld [vmem:[%s1 + $0x68] sm:$0xff]
    %v99 = vld [vmem:[%s1 + $0x70] sm:$0xff]
    %v100 = vld [vmem:[%s1 + $0x78] sm:$0xff]
    %v101 = vld [vmem:[%s1 + $0x80] sm:$0xff]
    %v102 = vld [vmem:[%s1 + $0x88] sm:$0xff]
    %v103 = vld [vmem:[%s1 + $0x90] sm:$0xff]
    %v104 = vld [vmem:[%s1 + $0x98] sm:$0xff]
    %v105 = vld [vmem:[%s1 + $0xa0] sm:$0xff]
    %v106 = vld [vmem:[%s1 + $0xa8] sm:$0xff]
    %v107 = vld [vmem:[%s1 + $0xb0] sm:$0xff]
    %v108 = vld [vmem:[%s1 + $0xb8] sm:$0xff]
    %v109 = vld [vmem:[%s1 + $0xc0] sm:$0xff]
    %v110 = vld [vmem:[%s1 + $0xc8] sm:$0xff]
    %v111 = vld [vmem:[%s1 + $0xd0] sm:$0xff]
    %v112 = vld [vmem:[%s1 + $0xd8] sm:$0xff]
    %v113 = vld [vmem:[%s1 + $0xe0] sm:$0xff]
    %v114 = vld [vmem:[%s1 + $0xe8] sm:$0xff]
    %v115 = vld [vmem:[%s1 + $0xf0] sm:$0xff]
    %v116 = vld [vmem:[%s1 + $0xf8] sm:$0xff]
    %v117 = vld [vmem:[%s1 + $0x100] sm:$0xff]
    %v118 = vld [vmem:[%s1 + $0x108] sm:$0xff]
    %v119 = vld [vmem:[%s1 + $0x110] sm:$0xff]
    %v120 = vld [vmem:[%s1 + $0x118] sm:$0xff]
    %v121 = vld [vmem:[%s1 + $0x120] sm:$0xff]
    %v122 = vld [vmem:[%s1 + $0x128] sm:$0xff]
    %v123 = vld [vmem:[%s1 + $0x130] sm:$0xff]
    %v124 = vld [vmem:[%s1 + $0x138] sm:$0xff]
    %v125 = vld [vmem:[%s1 + $0x140] sm:$0xff]
    %v126 = vld [vmem:[%s1 + $0x148] sm:$0xff]
    %v127 = vld [vmem:[%s1 + $0x150] sm:$0xff]
    %v128 = vld [vmem:[%s1 + $0x158] sm:$0xff]
    %v129 = vld [vmem:[%s1 + $0x160] sm:$0xff]
    %v130 = vld [vmem:[%s1 + $0x168] sm:$0xff]
    %v131 = vld [vmem:[%s1 + $0x170] sm:$0xff]
    %v132 = vld [vmem:[%s1 + $0x178] sm:$0xff]
    %v133 = vld [vmem:[%s1 + $0x180] sm:$0xff]
    %v134 = vld [vmem:[%s1 + $0x188] sm:$0xff]
    %v135 = vld [vmem:[%s1 + $0x190] sm:$0xff]
    %v136 = vld [vmem:[%s1 + $0x198] sm:$0xff]
    %v137 = vld [vmem:[%s1 + $0x1a0] sm:$0xff]
    %v138 = vld [vmem:[%s1 + $0x1a8] sm:$0xff]
    %v139 = vld [vmem:[%s1 + $0x1b0] sm:$0xff]
    %v140 = vld [vmem:[%s1 + $0x1b8] sm:$0xff]
    %v141 = vld [vmem:[%s1 + $0x1c0] sm:$0xff]
    %v142 = vld [vmem:[%s1 + $0x1c8] sm:$0xff]
    %v143 = vld [vmem:[%s1 + $0x1d0] sm:$0xff]
    %v144 = vld [vmem:[%s1 + $0x1d8] sm:$0xff]
    %v145 = vld [vmem:[%s1 + $0x1e0] sm:$0xff]
    %v146 = vld [vmem:[%s1 + $0x1e8] sm:$0xff]
    %v147 = vld [vmem:[%s1 + $0x1f0] sm:$0xff]
    %v148 = vld [vmem:[%s1 + $0x1f8] sm:$0xff]
    %v149 = vld [vmem:[%s1 + $0x200] sm:$0xff]
    %v150 = vld [vmem:[%s1 + $0x208] sm:$0xff]
    %v151 = vld [vmem:[%s1 + $0x210] sm:$0xff]
    %v152 = vld [vmem:[%s1 + $0x218] sm:$0xff]
    %v153 = vld [vmem:[%s1 + $0x220] sm:$0xff]
    %v154 = vld [vmem:[%s1 + $0x228] sm:$0xff]
    %v155 = vld [vmem:[%s1 + $0x230] sm:$0xff]
    %v156 = vld [vmem:[%s1 + $0x238] sm:$0xff]
    %v157 = vld [vmem:[%s1 + $0x240] sm:$0xff]
    %v158 = vld [vmem:[%s1 + $0x248] sm:$0xff]
    %v159 = vld [vmem:[%s1 + $0x250] sm:$0xff]
    %v160 = vld [vmem:[%s1 + $0x258] sm:$0xff]
    %v161 = vld [vmem:[%s1 + $0x260] sm:$0xff]
    %v162 = vld [vmem:[%s1 + $0x268] sm:$0xff]
    %v163 = vld [vmem:[%s1 + $0x270] sm:$0xff]
    %v164 = vld [vmem:[%s1 + $0x278] sm:$0xff]
    %v165 = vld [vmem:[%s1 + $0x280] sm:$0xff]
    %v166 = vld [vmem:[%s1 + $0x288] sm:$0xff]
    %v167 = vld [vmem:[%s1 + $0x290] sm:$0xff]
    %v168 = vld [vmem:[%s1 + $0x298] sm:$0xff]
    %v169 = vld [vmem:[%s1 + $0x2a0] sm:$0xff]
    %v170 = vld [vmem:[%s1 + $0x2a8] sm:$0xff]
    %v171 = vld [vmem:[%s1 + $0x2b0] sm:$0xff]
    %v172 = vld [vmem:[%s1 + $0x2b8] sm:$0xff]
    %v173 = vld [vmem:[%s1 + $0x2c0] sm:$0xff]
    %v174 = vld [vmem:[%s1 + $0x2c8] sm:$0xff]
    %v175 = vld [vmem:[%s1 + $0x2d0] sm:$0xff]
    %v176 = vld [vmem:[%s1 + $0x2d8] sm:$0xff]
    %v177 = vld [vmem:[%s1 + $0x2e0] sm:$0xff]
    %v178 = vld [vmem:[%s1 + $0x2e8] sm:$0xff]
    %v179 = vld [vmem:[%s1 + $0x2f0] sm:$0xff]
    %v180 = vld [vmem:[%s1 + $0x2f8] sm:$0xff]
    %v181 = vld [vmem:[%s1 + $0x300] sm:$0xff]
    %v182 = vld [vmem:[%s1 + $0x308] sm:$0xff]
    %v183 = vld [vmem:[%s1 + $0x310] sm:$0xff]
    %v184 = vld [vmem:[%s1 + $0x318] sm:$0xff]
    %v185 = vld [vmem:[%s1 + $0x320] sm:$0xff]
    %v186 = vld [vmem:[%s1 + $0x328] sm:$0xff]
    %v187 = vld [vmem:[%s1 + $0x330] sm:$0xff]
    %v188 = vld [vmem:[%s1 + $0x338] sm:$0xff]
    %v189 = vld [vmem:[%s1 + $0x340] sm:$0xff]
    %v190 = vld [vmem:[%s1 + $0x348] sm:$0xff]
    %v191 = vld [vmem:[%s1 + $0x350] sm:$0xff]
    %v192 = vld [vmem:[%s1 + $0x358] sm:$0xff]
    %v193 = vld [vmem:[%s1 + $0x360] sm:$0xff]
    %v194 = vld [vmem:[%s1 + $0x368] sm:$0xff]
    %v195 = vld [vmem:[%s1 + $0x370] sm:$0xff]
    %v196 = vld [vmem:[%s1 + $0x378] sm:$0xff]
    %v197 = vld [vmem:[%s1 + $0x380] sm:$0xff]
    %v198 = vld [vmem:[%s1 + $0x388] sm:$0xff]
    %v199 = vld [vmem:[%s1 + $0x390] sm:$0xff]
    %v200 = vld [vmem:[%s1 + $0x398] sm:$0xff]
    %v201 = vld [vmem:[%s1 + $0x3a0] sm:$0xff]
    %v202 = vld [vmem:[%s1 + $0x3a8] sm:$0xff]
    %v203 = vld [vmem:[%s1 + $0x3b0] sm:$0xff]
    %v204 = vld [vmem:[%s1 + $0x3b8] sm:$0xff]
    %v205 = vld [vmem:[%s1 + $0x3c0] sm:$0xff]
    %v206 = vld [vmem:[%s1 + $0x3c8] sm:$0xff]
    %v207 = vld [vmem:[%s1 + $0x3d0] sm:$0xff]
    %v208 = vld [vmem:[%s1 + $0x3d8] sm:$0xff]
    %v209 = vld [vmem:[%s1 + $0x3e0] sm:$0xff]
    %v210 = vld [vmem:[%s1 + $0x3e8] sm:$0xff]
    %v211 = vld [vmem:[%s1 + $0x3f0] sm:$0xff]
    %v212 = vld [vmem:[%s1 + $0x3f8] sm:$0xff]
    %v213 = vld [vmem:[%s1 + $0x400] sm:$0xff]
    %v214 = vld [vmem:[%s1 + $0x408] sm:$0xff]
    %v215 = vld [vmem:[%s1 + $0x410] sm:$0xff]
    %v216 = vld [vmem:[%s1 + $0x418] sm:$0xff]
    %v217 = vld [vmem:[%s1 + $0x420] sm:$0xff]
    %v218 = vld [vmem:[%s1 + $0x428] sm:$0xff]
    %v219 = vld [vmem:[%s1 + $0x430] sm:$0xff]
    %v220 = vld [vmem:[%s1 + $0x438] sm:$0xff]
    %v221 = vld [vmem:[%s1 + $0x440] sm:$0xff]
    %v222 = vld [vmem:[%s1 + $0x448] sm:$0xff]
    %v223 = vld [vmem:[%s1 + $0x450] sm:$0xff]
    %v224 = vld [vmem:[%s1 + $0x458] sm:$0xff]
    %v225 = vld [vmem:[%s1 + $0x460] sm:$0xff]
    %v226 = vld [vmem:[%s1 + $0x468] sm:$0xff]
    %v227 = vld [vmem:[%s1 + $0x470] sm:$0xff]
    %v228 = vld [vmem:[%s1 + $0x478] sm:$0xff]
    %v229 = vld [vmem:[%s1 + $0x480] sm:$0xff]
    %v230 = vld [vmem:[%s1 + $0x488] sm:$0xff]
    %v231 = vld [vmem:[%s1 + $0x490] sm:$0xff]
    %v232 = vld [vmem:[%s1 + $0x498] sm:$0xff]
    %v233 = vld [vmem:[%s1 + $0x4a0] sm:$0xff]
    %v234 = vld [vmem:[%s1 + $0x4a8] sm:$0xff]
    %v235 = vld [vmem:[%s1 + $0x4b0] sm:$0xff]
    %v236 = vld [vmem:[%s1 + $0x4b8] sm:$0xff]
    %v237 = vld [vmem:[%s1 + $0x4c0] sm:$0xff]
    %v238 = vld [vmem:[%s1 + $0x4c8] sm:$0xff]
    %v239 = vld [vmem:[%s1 + $0x4d0] sm:$0xff]
    %v240 = vld [vmem:[%s1 + $0x4d8] sm:$0xff]
    %v241 = vld [vmem:[%s1 + $0x4e0] sm:$0xff]
    %v242 = vld [vmem:[%s1 + $0x4e8] sm:$0xff]
    %v243 = vld [vmem:[%s1 + $0x4f0] sm:$0xff]
    %v244 = vld [vmem:[%s1 + $0x4f8] sm:$0xff]
    %v245 = vld [vmem:[%s1 + $0x500] sm:$0xff]
    %v246 = vld [vmem:[%s1 + $0x508] sm:$0xff]
    %v247 = vld [vmem:[%s1 + $0x510] sm:$0xff]
    %v248 = vld [vmem:[%s1 + $0x518] sm:$0xff]
    %v249 = vld [vmem:[%s1 + $0x520] sm:$0xff]
    %v250 = vld [vmem:[%s1 + $0x528] sm:$0xff]
    %v251 = vld [vmem:[%s1 + $0x530] sm:$0xff]
    %v252 = vld [vmem:[%s1 + $0x538] sm:$0xff]
    %v253 = vld [vmem:[%s1 + $0x540] sm:$0xff]
    %v254 = vld [vmem:[%s1 + $0x548] sm:$0xff]
    %v255 = vld [vmem:[%s1 + $0x550] sm:$0xff]
    %v256 = vld [vmem:[%s1 + $0x558] sm:$0xff]
    %v257 = vld [vmem:[%s1 + $0x560] sm:$0xff]
    %v258 = vld [vmem:[%s1 + $0x568] sm:$0xff]
    %v259 = vld [vmem:[%s1 + $0x570] sm:$0xff]
    %v260 = vld [vmem:[%s1 + $0x578] sm:$0xff]
    %v261 = vld [vmem:[%s1 + $0x580] sm:$0xff]
    %v262 = vld [vmem:[%s1 + $0x588] sm:$0xff]
    %v263 = vld [vmem:[%s1 + $0x590] sm:$0xff]
    %v264 = vld [vmem:[%s1 + $0x598] sm:$0xff]
    %v265 = vld [vmem:[%s1 + $0x5a0] sm:$0xff]
    %v266 = vld [vmem:[%s1 + $0x5a8] sm:$0xff]
    %v267 = vld [vmem:[%s1 + $0x5b0] sm:$0xff]
    %v268 = vld [vmem:[%s1 + $0x5b8] sm:$0xff]
    %v269 = vld [vmem:[%s1 + $0x5c0] sm:$0xff]
    %v270 = vld [vmem:[%s1 + $0x5c8] sm:$0xff]
    %v271 = vld [vmem:[%s1 + $0x5d0] sm:$0xff]
    %v272 = vld [vmem:[%s1 + $0x5d8] sm:$0xff]
    %v273 = vld [vmem:[%s1 + $0x5e0] sm:$0xff]
    %v274 = vld [vmem:[%s1 + $0x5e8] sm:$0xff]
    %v275 = vld [vmem:[%s1 + $0x5f0] sm:$0xff]
    %v276 = vld [vmem:[%s1 + $0x5f8] sm:$0xff]
    %v277 = vld [vmem:[%s1 + $0x600] sm:$0xff]
    %v278 = vld [vmem:[%s1 + $0x608] sm:$0xff]
    %v279 = vld [vmem:[%s1 + $0x610] sm:$0xff]
    %v280 = vld [vmem:[%s1 + $0x618] sm:$0xff]
    %v281 = vld [vmem:[%s2] sm:$0xf]
    %v283 = vlaneseq
    %v284 = vshrl.u32 %v283, 7
    %v285 = vsub.s32 0, %v284
    %v286 = vrot.slane %v281, %v285
    %v287 = vlaneseq
    %v288 = vshrl.u32 %v287, 7
    %v289 = vsub.s32 1, %v288
    %v290 = vrot.slane %v281, %v289
    %v291 = vlaneseq
    %v292 = vshrl.u32 %v291, 7
    %v293 = vsub.s32 2, %v292
    %v294 = vrot.slane %v281, %v293
    %v295 = vlaneseq
    %v296 = vshrl.u32 %v295, 7
    %v297 = vsub.s32 3, %v296
    %v298 = vrot.slane %v281, %v297
    %v499 = vunpack.c.l.b16 %v85
    %v500 = vunpack.c.h.b16 %v85
    %v501 = vunpack.c.l.b16 %v86
    %v502 = vunpack.c.h.b16 %v86
    %v503 = vunpack.c.l.b16 %v87
    %v504 = vunpack.c.h.b16 %v87
    %v505 = vunpack.c.l.b16 %v88
    %v506 = vunpack.c.h.b16 %v88
    %v507 = vunpack.c.l.b16 %v89
    %v508 = vunpack.c.h.b16 %v89
    %v509 = vunpack.c.l.b16 %v90
    %v510 = vunpack.c.h.b16 %v90
    %v511 = vunpack.c.l.b16 %v91
    %v512 = vunpack.c.h.b16 %v91
    %v513 = vunpack.c.l.b16 %v92
    %v514 = vunpack.c.h.b16 %v92
    %v515 = vunpack.c.l.b16 %v93
    %v516 = vunpack.c.h.b16 %v93
    %v517 = vunpack.c.l.b16 %v94
    %v518 = vunpack.c.h.b16 %v94
    %v519 = vunpack.c.l.b16 %v95
    %v520 = vunpack.c.h.b16 %v95
    %v521 = vunpack.c.l.b16 %v96
    %v522 = vunpack.c.h.b16 %v96
    %v523 = vunpack.c.l.b16 %v97
    %v524 = vunpack.c.h.b16 %v97
    %v525 = vunpack.c.l.b16 %v98
    %v526 = vunpack.c.h.b16 %v98
    %v527 = vunpack.c.l.b16 %v99
    %v528 = vunpack.c.h.b16 %v99
    %v529 = vunpack.c.l.b16 %v100
    %v530 = vunpack.c.h.b16 %v100
    %v531 = vunpack.c.l.b16 %v101
    %v532 = vunpack.c.h.b16 %v101
    %v533 = vunpack.c.l.b16 %v102
    %v534 = vunpack.c.h.b16 %v102
    %v535 = vunpack.c.l.b16 %v103
    %v536 = vunpack.c.h.b16 %v103
    %v537 = vunpack.c.l.b16 %v104
    %v538 = vunpack.c.h.b16 %v104
    %v539 = vunpack.c.l.b16 %v105
    %v540 = vunpack.c.h.b16 %v105
    %v541 = vunpack.c.l.b16 %v106
    %v542 = vunpack.c.h.b16 %v106
    %v543 = vunpack.c.l.b16 %v107
    %v544 = vunpack.c.h.b16 %v107
    %v545 = vunpack.c.l.b16 %v108
    %v546 = vunpack.c.h.b16 %v108
    %v547 = vunpack.c.l.b16 %v109
    %v548 = vunpack.c.h.b16 %v109
    %v549 = vunpack.c.l.b16 %v110
    %v550 = vunpack.c.h.b16 %v110
    %v551 = vunpack.c.l.b16 %v111
    %v552 = vunpack.c.h.b16 %v111
    %v553 = vunpack.c.l.b16 %v112
    %v554 = vunpack.c.h.b16 %v112
    %v555 = vunpack.c.l.b16 %v113
    %v556 = vunpack.c.h.b16 %v113
    %v557 = vunpack.c.l.b16 %v114
    %v558 = vunpack.c.h.b16 %v114
    %v559 = vunpack.c.l.b16 %v115
    %v560 = vunpack.c.h.b16 %v115
    %v561 = vunpack.c.l.b16 %v116
    %v562 = vunpack.c.h.b16 %v116
    %v563 = vunpack.c.l.b16 %v117
    %v564 = vunpack.c.h.b16 %v117
    %v565 = vunpack.c.l.b16 %v118
    %v566 = vunpack.c.h.b16 %v118
    %v567 = vunpack.c.l.b16 %v119
    %v568 = vunpack.c.h.b16 %v119
    %v569 = vunpack.c.l.b16 %v120
    %v570 = vunpack.c.h.b16 %v120
    %v571 = vunpack.c.l.b16 %v121
    %v572 = vunpack.c.h.b16 %v121
    %v573 = vunpack.c.l.b16 %v122
    %v574 = vunpack.c.h.b16 %v122
    %v575 = vunpack.c.l.b16 %v123
    %v576 = vunpack.c.h.b16 %v123
    %v577 = vunpack.c.l.b16 %v124
    %v578 = vunpack.c.h.b16 %v124
    %v579 = vunpack.c.l.b16 %v125
    %v580 = vunpack.c.h.b16 %v125
    %v581 = vunpack.c.l.b16 %v126
    %v582 = vunpack.c.h.b16 %v126
    %v583 = vunpack.c.l.b16 %v127
    %v584 = vunpack.c.h.b16 %v127
    %v585 = vunpack.c.l.b16 %v128
    %v586 = vunpack.c.h.b16 %v128
    %v587 = vunpack.c.l.b16 %v129
    %v588 = vunpack.c.h.b16 %v129
    %v589 = vunpack.c.l.b16 %v130
    %v590 = vunpack.c.h.b16 %v130
    %v591 = vunpack.c.l.b16 %v131
    %v592 = vunpack.c.h.b16 %v131
    %v593 = vunpack.c.l.b16 %v132
    %v594 = vunpack.c.h.b16 %v132
    %v595 = vunpack.c.l.b16 %v133
    %v596 = vunpack.c.h.b16 %v133
    %v597 = vunpack.c.l.b16 %v134
    %v598 = vunpack.c.h.b16 %v134
    %v599 = vunpack.c.l.b16 %v135
    %v600 = vunpack.c.h.b16 %v135
    %v601 = vunpack.c.l.b16 %v136
    %v602 = vunpack.c.h.b16 %v136
    %v603 = vunpack.c.l.b16 %v137
    %v604 = vunpack.c.h.b16 %v137
    %v605 = vunpack.c.l.b16 %v138
    %v606 = vunpack.c.h.b16 %v138
    %v607 = vunpack.c.l.b16 %v139
    %v608 = vunpack.c.h.b16 %v139
    %v609 = vunpack.c.l.b16 %v140
    %v610 = vunpack.c.h.b16 %v140
    %v611 = vunpack.c.l.b16 %v141
    %v612 = vunpack.c.h.b16 %v141
    %v613 = vunpack.c.l.b16 %v142
    %v614 = vunpack.c.h.b16 %v142
    %v615 = vunpack.c.l.b16 %v143
    %v616 = vunpack.c.h.b16 %v143
    %v617 = vunpack.c.l.b16 %v144
    %v618 = vunpack.c.h.b16 %v144
    %v619 = vunpack.c.l.b16 %v145
    %v620 = vunpack.c.h.b16 %v145
    %v621 = vunpack.c.l.b16 %v146
    %v622 = vunpack.c.h.b16 %v146
    %v623 = vunpack.c.l.b16 %v147
    %v624 = vunpack.c.h.b16 %v147
    %v625 = vunpack.c.l.b16 %v148
    %v626 = vunpack.c.h.b16 %v148
    %v627 = vunpack.c.l.b16 %v149
    %v628 = vunpack.c.h.b16 %v149
    %v629 = vunpack.c.l.b16 %v150
    %v630 = vunpack.c.h.b16 %v150
    %v631 = vunpack.c.l.b16 %v151
    %v632 = vunpack.c.h.b16 %v151
    %v633 = vunpack.c.l.b16 %v152
    %v634 = vunpack.c.h.b16 %v152
    %v635 = vunpack.c.l.b16 %v153
    %v636 = vunpack.c.h.b16 %v153
    %v637 = vunpack.c.l.b16 %v154
    %v638 = vunpack.c.h.b16 %v154
    %v639 = vunpack.c.l.b16 %v155
    %v640 = vunpack.c.h.b16 %v155
    %v641 = vunpack.c.l.b16 %v156
    %v642 = vunpack.c.h.b16 %v156
    %v643 = vunpack.c.l.b16 %v157
    %v644 = vunpack.c.h.b16 %v157
    %v645 = vunpack.c.l.b16 %v158
    %v646 = vunpack.c.h.b16 %v158
    %v647 = vunpack.c.l.b16 %v159
    %v648 = vunpack.c.h.b16 %v159
    %v649 = vunpack.c.l.b16 %v160
    %v650 = vunpack.c.h.b16 %v160
    %v651 = vunpack.c.l.b16 %v161
    %v652 = vunpack.c.h.b16 %v161
    %v653 = vunpack.c.l.b16 %v162
    %v654 = vunpack.c.h.b16 %v162
    %v655 = vunpack.c.l.b16 %v163
    %v656 = vunpack.c.h.b16 %v163
    %v657 = vunpack.c.l.b16 %v164
    %v658 = vunpack.c.h.b16 %v164
    %v659 = vunpack.c.l.b16 %v165
    %v660 = vunpack.c.h.b16 %v165
    %v661 = vunpack.c.l.b16 %v166
    %v662 = vunpack.c.h.b16 %v166
    %v663 = vunpack.c.l.b16 %v167
    %v664 = vunpack.c.h.b16 %v167
    %v665 = vunpack.c.l.b16 %v168
    %v666 = vunpack.c.h.b16 %v168
    %v667 = vunpack.c.l.b16 %v169
    %v668 = vunpack.c.h.b16 %v169
    %v669 = vunpack.c.l.b16 %v170
    %v670 = vunpack.c.h.b16 %v170
    %v671 = vunpack.c.l.b16 %v171
    %v672 = vunpack.c.h.b16 %v171
    %v673 = vunpack.c.l.b16 %v172
    %v674 = vunpack.c.h.b16 %v172
    %v675 = vunpack.c.l.b16 %v173
    %v676 = vunpack.c.h.b16 %v173
    %v677 = vunpack.c.l.b16 %v174
    %v678 = vunpack.c.h.b16 %v174
    %v679 = vunpack.c.l.b16 %v175
    %v680 = vunpack.c.h.b16 %v175
    %v681 = vunpack.c.l.b16 %v176
    %v682 = vunpack.c.h.b16 %v176
    %v683 = vunpack.c.l.b16 %v177
    %v684 = vunpack.c.h.b16 %v177
    %v685 = vunpack.c.l.b16 %v178
    %v686 = vunpack.c.h.b16 %v178
    %v687 = vunpack.c.l.b16 %v179
    %v688 = vunpack.c.h.b16 %v179
    %v689 = vunpack.c.l.b16 %v180
    %v690 = vunpack.c.h.b16 %v180
    %v691 = vunpack.c.l.b16 %v181
    %v692 = vunpack.c.h.b16 %v181
    %v693 = vunpack.c.l.b16 %v182
    %v694 = vunpack.c.h.b16 %v182
    %v695 = vunpack.c.l.b16 %v183
    %v696 = vunpack.c.h.b16 %v183
    %v697 = vunpack.c.l.b16 %v184
    %v698 = vunpack.c.h.b16 %v184
    %v699 = vunpack.c.l.b16 %v185
    %v700 = vunpack.c.h.b16 %v185
    %v701 = vunpack.c.l.b16 %v186
    %v702 = vunpack.c.h.b16 %v186
    %v703 = vunpack.c.l.b16 %v187
    %v704 = vunpack.c.h.b16 %v187
    %v705 = vunpack.c.l.b16 %v188
    %v706 = vunpack.c.h.b16 %v188
    %v707 = vunpack.c.l.b16 %v189
    %v708 = vunpack.c.h.b16 %v189
    %v709 = vunpack.c.l.b16 %v190
    %v710 = vunpack.c.h.b16 %v190
    %v711 = vunpack.c.l.b16 %v191
    %v712 = vunpack.c.h.b16 %v191
    %v713 = vunpack.c.l.b16 %v192
    %v714 = vunpack.c.h.b16 %v192
    %v715 = vunpack.c.l.b16 %v193
    %v716 = vunpack.c.h.b16 %v193
    %v717 = vunpack.c.l.b16 %v194
    %v718 = vunpack.c.h.b16 %v194
    %v719 = vunpack.c.l.b16 %v195
    %v720 = vunpack.c.h.b16 %v195
    %v721 = vunpack.c.l.b16 %v196
    %v722 = vunpack.c.h.b16 %v196
    %v723 = vunpack.c.l.b16 %v197
    %v724 = vunpack.c.h.b16 %v197
    %v725 = vunpack.c.l.b16 %v198
    %v726 = vunpack.c.h.b16 %v198
    %v727 = vunpack.c.l.b16 %v199
    %v728 = vunpack.c.h.b16 %v199
    %v729 = vunpack.c.l.b16 %v200
    %v730 = vunpack.c.h.b16 %v200
    %v731 = vunpack.c.l.b16 %v201
    %v732 = vunpack.c.h.b16 %v201
    %v733 = vunpack.c.l.b16 %v202
    %v734 = vunpack.c.h.b16 %v202
    %v735 = vunpack.c.l.b16 %v203
    %v736 = vunpack.c.h.b16 %v203
    %v737 = vunpack.c.l.b16 %v204
    %v738 = vunpack.c.h.b16 %v204
    %v739 = vunpack.c.l.b16 %v205
    %v740 = vunpack.c.h.b16 %v205
    %v741 = vunpack.c.l.b16 %v206
    %v742 = vunpack.c.h.b16 %v206
    %v743 = vunpack.c.l.b16 %v207
    %v744 = vunpack.c.h.b16 %v207
    %v745 = vunpack.c.l.b16 %v208
    %v746 = vunpack.c.h.b16 %v208
    %v747 = vunpack.c.l.b16 %v209
    %v748 = vunpack.c.h.b16 %v209
    %v749 = vunpack.c.l.b16 %v210
    %v750 = vunpack.c.h.b16 %v210
    %v751 = vunpack.c.l.b16 %v211
    %v752 = vunpack.c.h.b16 %v211
    %v753 = vunpack.c.l.b16 %v212
    %v754 = vunpack.c.h.b16 %v212
    %v755 = vunpack.c.l.b16 %v213
    %v756 = vunpack.c.h.b16 %v213
    %v757 = vunpack.c.l.b16 %v214
    %v758 = vunpack.c.h.b16 %v214
    %v759 = vunpack.c.l.b16 %v215
    %v760 = vunpack.c.h.b16 %v215
    %v761 = vunpack.c.l.b16 %v216
    %v762 = vunpack.c.h.b16 %v216
    %v763 = vunpack.c.l.b16 %v217
    %v764 = vunpack.c.h.b16 %v217
    %v765 = vunpack.c.l.b16 %v218
    %v766 = vunpack.c.h.b16 %v218
    %v767 = vunpack.c.l.b16 %v219
    %v768 = vunpack.c.h.b16 %v219
    %v769 = vunpack.c.l.b16 %v220
    %v770 = vunpack.c.h.b16 %v220
    %v771 = vunpack.c.l.b16 %v221
    %v772 = vunpack.c.h.b16 %v221
    %v773 = vunpack.c.l.b16 %v222
    %v774 = vunpack.c.h.b16 %v222
    %v775 = vunpack.c.l.b16 %v223
    %v776 = vunpack.c.h.b16 %v223
    %v777 = vunpack.c.l.b16 %v224
    %v778 = vunpack.c.h.b16 %v224
    %v779 = vunpack.c.l.b16 %v225
    %v780 = vunpack.c.h.b16 %v225
    %v781 = vunpack.c.l.b16 %v226
    %v782 = vunpack.c.h.b16 %v226
    %v783 = vunpack.c.l.b16 %v227
    %v784 = vunpack.c.h.b16 %v227
    %v785 = vunpack.c.l.b16 %v228
    %v786 = vunpack.c.h.b16 %v228
    %v787 = vunpack.c.l.b16 %v229
    %v788 = vunpack.c.h.b16 %v229
    %v789 = vunpack.c.l.b16 %v230
    %v790 = vunpack.c.h.b16 %v230
    %v791 = vunpack.c.l.b16 %v231
    %v792 = vunpack.c.h.b16 %v231
    %v793 = vunpack.c.l.b16 %v232
    %v794 = vunpack.c.h.b16 %v232
    %v795 = vunpack.c.l.b16 %v233
    %v796 = vunpack.c.h.b16 %v233
    %v797 = vunpack.c.l.b16 %v234
    %v798 = vunpack.c.h.b16 %v234
    %v799 = vunpack.c.l.b16 %v235
    %v800 = vunpack.c.h.b16 %v235
    %v801 = vunpack.c.l.b16 %v236
    %v802 = vunpack.c.h.b16 %v236
    %v803 = vunpack.c.l.b16 %v237
    %v804 = vunpack.c.h.b16 %v237
    %v805 = vunpack.c.l.b16 %v238
    %v806 = vunpack.c.h.b16 %v238
    %v807 = vunpack.c.l.b16 %v239
    %v808 = vunpack.c.h.b16 %v239
    %v809 = vunpack.c.l.b16 %v240
    %v810 = vunpack.c.h.b16 %v240
    %v811 = vunpack.c.l.b16 %v241
    %v812 = vunpack.c.h.b16 %v241
    %v813 = vunpack.c.l.b16 %v242
    %v814 = vunpack.c.h.b16 %v242
    %v815 = vunpack.c.l.b16 %v243
    %v816 = vunpack.c.h.b16 %v243
    %v817 = vunpack.c.l.b16 %v244
    %v818 = vunpack.c.h.b16 %v244
    %v819 = vunpack.c.l.b16 %v245
    %v820 = vunpack.c.h.b16 %v245
    %v821 = vunpack.c.l.b16 %v246
    %v822 = vunpack.c.h.b16 %v246
    %v823 = vunpack.c.l.b16 %v247
    %v824 = vunpack.c.h.b16 %v247
    %v825 = vunpack.c.l.b16 %v248
    %v826 = vunpack.c.h.b16 %v248
    %v827 = vunpack.c.l.b16 %v249
    %v828 = vunpack.c.h.b16 %v249
    %v829 = vunpack.c.l.b16 %v250
    %v830 = vunpack.c.h.b16 %v250
    %v831 = vunpack.c.l.b16 %v251
    %v832 = vunpack.c.h.b16 %v251
    %v833 = vunpack.c.l.b16 %v252
    %v834 = vunpack.c.h.b16 %v252
    %v835 = vunpack.c.l.b16 %v253
    %v836 = vunpack.c.h.b16 %v253
    %v837 = vunpack.c.l.b16 %v254
    %v838 = vunpack.c.h.b16 %v254
    %v839 = vunpack.c.l.b16 %v255
    %v840 = vunpack.c.h.b16 %v255
    %v841 = vunpack.c.l.b16 %v256
    %v842 = vunpack.c.h.b16 %v256
    %v843 = vunpack.c.l.b16 %v257
    %v844 = vunpack.c.h.b16 %v257
    %v845 = vunpack.c.l.b16 %v258
    %v846 = vunpack.c.h.b16 %v258
    %v847 = vunpack.c.l.b16 %v259
    %v848 = vunpack.c.h.b16 %v259
    %v849 = vunpack.c.l.b16 %v260
    %v850 = vunpack.c.h.b16 %v260
    %v851 = vunpack.c.l.b16 %v261
    %v852 = vunpack.c.h.b16 %v261
    %v853 = vunpack.c.l.b16 %v262
    %v854 = vunpack.c.h.b16 %v262
    %v855 = vunpack.c.l.b16 %v263
    %v856 = vunpack.c.h.b16 %v263
    %v857 = vunpack.c.l.b16 %v264
    %v858 = vunpack.c.h.b16 %v264
    %v859 = vunpack.c.l.b16 %v265
    %v860 = vunpack.c.h.b16 %v265
    %v861 = vunpack.c.l.b16 %v266
    %v862 = vunpack.c.h.b16 %v266
    %v863 = vunpack.c.l.b16 %v267
    %v864 = vunpack.c.h.b16 %v267
    %v865 = vunpack.c.l.b16 %v268
    %v866 = vunpack.c.h.b16 %v268
    %v867 = vunpack.c.l.b16 %v269
    %v868 = vunpack.c.h.b16 %v269
    %v869 = vunpack.c.l.b16 %v270
    %v870 = vunpack.c.h.b16 %v270
    %v871 = vunpack.c.l.b16 %v271
    %v872 = vunpack.c.h.b16 %v271
    %v873 = vunpack.c.l.b16 %v272
    %v874 = vunpack.c.h.b16 %v272
    %v875 = vunpack.c.l.b16 %v273
    %v876 = vunpack.c.h.b16 %v273
    %v877 = vunpack.c.l.b16 %v274
    %v878 = vunpack.c.h.b16 %v274
    %v879 = vunpack.c.l.b16 %v275
    %v880 = vunpack.c.h.b16 %v275
    %v881 = vunpack.c.l.b16 %v276
    %v882 = vunpack.c.h.b16 %v276
    %v883 = vunpack.c.l.b16 %v277
    %v884 = vunpack.c.h.b16 %v277
    %v885 = vunpack.c.l.b16 %v278
    %v886 = vunpack.c.h.b16 %v278
    %v887 = vunpack.c.l.b16 %v279
    %v888 = vunpack.c.h.b16 %v279
    %v889 = vunpack.c.l.b16 %v280
    %v890 = vunpack.c.h.b16 %v280
    %v891 = vpack.c.b16 %v503, %v499
    %v892 = vpack.c.b16 %v504, %v500
    %v893 = vpack.c.b16 %v505, %v501
    %v894 = vpack.c.b16 %v506, %v502
    %v895 = vpack.c.b16 %v511, %v507
    %v896 = vpack.c.b16 %v512, %v508
    %v897 = vpack.c.b16 %v513, %v509
    %v898 = vpack.c.b16 %v514, %v510
    %v899 = vpack.c.b16 %v519, %v515
    %v900 = vpack.c.b16 %v520, %v516
    %v901 = vpack.c.b16 %v521, %v517
    %v902 = vpack.c.b16 %v522, %v518
    %v903 = vpack.c.b16 %v527, %v523
    %v904 = vpack.c.b16 %v528, %v524
    %v905 = vpack.c.b16 %v529, %v525
    %v906 = vpack.c.b16 %v530, %v526
    %v907 = vpack.c.b16 %v535, %v531
    %v908 = vpack.c.b16 %v536, %v532
    %v909 = vpack.c.b16 %v537, %v533
    %v910 = vpack.c.b16 %v538, %v534
    %v911 = vpack.c.b16 %v543, %v539
    %v912 = vpack.c.b16 %v544, %v540
    %v913 = vpack.c.b16 %v545, %v541
    %v914 = vpack.c.b16 %v546, %v542
    %v915 = vpack.c.b16 %v551, %v547
    %v916 = vpack.c.b16 %v552, %v548
    %v917 = vpack.c.b16 %v553, %v549
    %v918 = vpack.c.b16 %v554, %v550
    %v919 = vpack.c.b16 %v559, %v555
    %v920 = vpack.c.b16 %v560, %v556
    %v921 = vpack.c.b16 %v561, %v557
    %v922 = vpack.c.b16 %v562, %v558
    %v923 = vpack.c.b16 %v567, %v563
    %v924 = vpack.c.b16 %v568, %v564
    %v925 = vpack.c.b16 %v569, %v565
    %v926 = vpack.c.b16 %v570, %v566
    %v927 = vpack.c.b16 %v575, %v571
    %v928 = vpack.c.b16 %v576, %v572
    %v929 = vpack.c.b16 %v577, %v573
    %v930 = vpack.c.b16 %v578, %v574
    %v931 = vpack.c.b16 %v583, %v579
    %v932 = vpack.c.b16 %v584, %v580
    %v933 = vpack.c.b16 %v585, %v581
    %v934 = vpack.c.b16 %v586, %v582
    %v935 = vpack.c.b16 %v591, %v587
    %v936 = vpack.c.b16 %v592, %v588
    %v937 = vpack.c.b16 %v593, %v589
    %v938 = vpack.c.b16 %v594, %v590
    %v939 = vpack.c.b16 %v599, %v595
    %v940 = vpack.c.b16 %v600, %v596
    %v941 = vpack.c.b16 %v601, %v597
    %v942 = vpack.c.b16 %v602, %v598
    %v943 = vpack.c.b16 %v607, %v603
    %v944 = vpack.c.b16 %v608, %v604
    %v945 = vpack.c.b16 %v609, %v605
    %v946 = vpack.c.b16 %v610, %v606
    %v947 = vpack.c.b16 %v615, %v611
    %v948 = vpack.c.b16 %v616, %v612
    %v949 = vpack.c.b16 %v617, %v613
    %v950 = vpack.c.b16 %v618, %v614
    %v951 = vpack.c.b16 %v623, %v619
    %v952 = vpack.c.b16 %v624, %v620
    %v953 = vpack.c.b16 %v625, %v621
    %v954 = vpack.c.b16 %v626, %v622
    %v955 = vpack.c.b16 %v631, %v627
    %v956 = vpack.c.b16 %v632, %v628
    %v957 = vpack.c.b16 %v633, %v629
    %v958 = vpack.c.b16 %v634, %v630
    %v959 = vpack.c.b16 %v639, %v635
    %v960 = vpack.c.b16 %v640, %v636
    %v961 = vpack.c.b16 %v641, %v637
    %v962 = vpack.c.b16 %v642, %v638
    %v963 = vpack.c.b16 %v647, %v643
    %v964 = vpack.c.b16 %v648, %v644
    %v965 = vpack.c.b16 %v649, %v645
    %v966 = vpack.c.b16 %v650, %v646
    %v967 = vpack.c.b16 %v655, %v651
    %v968 = vpack.c.b16 %v656, %v652
    %v969 = vpack.c.b16 %v657, %v653
    %v970 = vpack.c.b16 %v658, %v654
    %v971 = vpack.c.b16 %v663, %v659
    %v972 = vpack.c.b16 %v664, %v660
    %v973 = vpack.c.b16 %v665, %v661
    %v974 = vpack.c.b16 %v666, %v662
    %v975 = vpack.c.b16 %v671, %v667
    %v976 = vpack.c.b16 %v672, %v668
    %v977 = vpack.c.b16 %v673, %v669
    %v978 = vpack.c.b16 %v674, %v670
    %v979 = vpack.c.b16 %v679, %v675
    %v980 = vpack.c.b16 %v680, %v676
    %v981 = vpack.c.b16 %v681, %v677
    %v982 = vpack.c.b16 %v682, %v678
    %v983 = vpack.c.b16 %v687, %v683
    %v984 = vpack.c.b16 %v688, %v684
    %v985 = vpack.c.b16 %v689, %v685
    %v986 = vpack.c.b16 %v690, %v686
    %v987 = vpack.c.b16 %v695, %v691
    %v988 = vpack.c.b16 %v696, %v692
    %v989 = vpack.c.b16 %v697, %v693
    %v990 = vpack.c.b16 %v698, %v694
    %v991 = vpack.c.b16 %v703, %v699
    %v992 = vpack.c.b16 %v704, %v700
    %v993 = vpack.c.b16 %v705, %v701
    %v994 = vpack.c.b16 %v706, %v702
    %v995 = vpack.c.b16 %v711, %v707
    %v996 = vpack.c.b16 %v712, %v708
    %v997 = vpack.c.b16 %v713, %v709
    %v998 = vpack.c.b16 %v714, %v710
    %v999 = vpack.c.b16 %v719, %v715
    %v1000 = vpack.c.b16 %v720, %v716
    %v1001 = vpack.c.b16 %v721, %v717
    %v1002 = vpack.c.b16 %v722, %v718
    %v1003 = vpack.c.b16 %v727, %v723
    %v1004 = vpack.c.b16 %v728, %v724
    %v1005 = vpack.c.b16 %v729, %v725
    %v1006 = vpack.c.b16 %v730, %v726
    %v1007 = vpack.c.b16 %v735, %v731
    %v1008 = vpack.c.b16 %v736, %v732
    %v1009 = vpack.c.b16 %v737, %v733
    %v1010 = vpack.c.b16 %v738, %v734
    %v1011 = vpack.c.b16 %v743, %v739
    %v1012 = vpack.c.b16 %v744, %v740
    %v1013 = vpack.c.b16 %v745, %v741
    %v1014 = vpack.c.b16 %v746, %v742
    %v1015 = vpack.c.b16 %v751, %v747
    %v1016 = vpack.c.b16 %v752, %v748
    %v1017 = vpack.c.b16 %v753, %v749
    %v1018 = vpack.c.b16 %v754, %v750
    %v1019 = vpack.c.b16 %v759, %v755
    %v1020 = vpack.c.b16 %v760, %v756
    %v1021 = vpack.c.b16 %v761, %v757
    %v1022 = vpack.c.b16 %v762, %v758
    %v1023 = vpack.c.b16 %v767, %v763
    %v1024 = vpack.c.b16 %v768, %v764
    %v1025 = vpack.c.b16 %v769, %v765
    %v1026 = vpack.c.b16 %v770, %v766
    %v1027 = vpack.c.b16 %v775, %v771
    %v1028 = vpack.c.b16 %v776, %v772
    %v1029 = vpack.c.b16 %v777, %v773
    %v1030 = vpack.c.b16 %v778, %v774
    %v1031 = vpack.c.b16 %v783, %v779
    %v1032 = vpack.c.b16 %v784, %v780
    %v1033 = vpack.c.b16 %v785, %v781
    %v1034 = vpack.c.b16 %v786, %v782
    %v1035 = vpack.c.b16 %v791, %v787
    %v1036 = vpack.c.b16 %v792, %v788
    %v1037 = vpack.c.b16 %v793, %v789
    %v1038 = vpack.c.b16 %v794, %v790
    %v1039 = vpack.c.b16 %v799, %v795
    %v1040 = vpack.c.b16 %v800, %v796
    %v1041 = vpack.c.b16 %v801, %v797
    %v1042 = vpack.c.b16 %v802, %v798
    %v1043 = vpack.c.b16 %v807, %v803
    %v1044 = vpack.c.b16 %v808, %v804
    %v1045 = vpack.c.b16 %v809, %v805
    %v1046 = vpack.c.b16 %v810, %v806
    %v1047 = vpack.c.b16 %v815, %v811
    %v1048 = vpack.c.b16 %v816, %v812
    %v1049 = vpack.c.b16 %v817, %v813
    %v1050 = vpack.c.b16 %v818, %v814
    %v1051 = vpack.c.b16 %v823, %v819
    %v1052 = vpack.c.b16 %v824, %v820
    %v1053 = vpack.c.b16 %v825, %v821
    %v1054 = vpack.c.b16 %v826, %v822
    %v1055 = vpack.c.b16 %v831, %v827
    %v1056 = vpack.c.b16 %v832, %v828
    %v1057 = vpack.c.b16 %v833, %v829
    %v1058 = vpack.c.b16 %v834, %v830
    %v1059 = vpack.c.b16 %v839, %v835
    %v1060 = vpack.c.b16 %v840, %v836
    %v1061 = vpack.c.b16 %v841, %v837
    %v1062 = vpack.c.b16 %v842, %v838
    %v1063 = vpack.c.b16 %v847, %v843
    %v1064 = vpack.c.b16 %v848, %v844
    %v1065 = vpack.c.b16 %v849, %v845
    %v1066 = vpack.c.b16 %v850, %v846
    %v1067 = vpack.c.b16 %v855, %v851
    %v1068 = vpack.c.b16 %v856, %v852
    %v1069 = vpack.c.b16 %v857, %v853
    %v1070 = vpack.c.b16 %v858, %v854
    %v1071 = vpack.c.b16 %v863, %v859
    %v1072 = vpack.c.b16 %v864, %v860
    %v1073 = vpack.c.b16 %v865, %v861
    %v1074 = vpack.c.b16 %v866, %v862
    %v1075 = vpack.c.b16 %v871, %v867
    %v1076 = vpack.c.b16 %v872, %v868
    %v1077 = vpack.c.b16 %v873, %v869
    %v1078 = vpack.c.b16 %v874, %v870
    %v1079 = vpack.c.b16 %v879, %v875
    %v1080 = vpack.c.b16 %v880, %v876
    %v1081 = vpack.c.b16 %v881, %v877
    %v1082 = vpack.c.b16 %v882, %v878
    %v1083 = vpack.c.b16 %v887, %v883
    %v1084 = vpack.c.b16 %v888, %v884
    %v1085 = vpack.c.b16 %v889, %v885
    %v1086 = vpack.c.b16 %v890, %v886
    %vm1283 = vcmask 130048
    %v1285 = vsel %vm1283, %v84, 0
    %1287 = vmatprep.subr.bf16.mxu0 %v920
    %1288 = vmatpush1.bf16.msra.mxu0 %v919
    %1289 = vmatprep.subr.bf16.mxu0 %v916
    %1290 = vmatpush1.bf16.msra.mxu0 %v915
    %1291 = vmatprep.subr.bf16.mxu0 %v912
    %1292 = vmatpush1.bf16.msra.mxu0 %v911
    %1293 = vmatprep.subr.bf16.mxu0 %v908
    %1294 = vmatpush1.bf16.msra.mxu0 %v907
    %1295 = vmatprep.subr.bf16.mxu0 %v904
    %1296 = vmatpush1.bf16.msra.mxu0 %v903
    %1297 = vmatprep.subr.bf16.mxu0 %v900
    %1298 = vmatpush1.bf16.msra.mxu0 %v899
    %1299 = vmatprep.subr.bf16.mxu0 %v896
    %1300 = vmatpush1.bf16.msra.mxu0 %v895
    %1301 = vmatprep.subr.bf16.mxu0 %v892
    %1302 = vmatpush1.bf16.msra.mxu0 %v891
    %1303 = vmatprep.subr.bf16.mxu0 %v952
    %1304 = vmatpush2.bf16.msra.mxu0 %v951
    %1305 = vmatprep.subr.bf16.mxu0 %v948
    %1306 = vmatpush2.bf16.msra.mxu0 %v947
    %1307 = vmatprep.subr.bf16.mxu0 %v944
    %1308 = vmatpush2.bf16.msra.mxu0 %v943
    %1309 = vmatprep.subr.bf16.mxu0 %v940
    %1310 = vmatpush2.bf16.msra.mxu0 %v939
    %1311 = vmatprep.subr.bf16.mxu0 %v936
    %1312 = vmatpush2.bf16.msra.mxu0 %v935
    %1313 = vmatprep.subr.bf16.mxu0 %v932
    %1314 = vmatpush2.bf16.msra.mxu0 %v931
    %1315 = vmatprep.subr.bf16.mxu0 %v928
    %1316 = vmatpush2.bf16.msra.mxu0 %v927
    %1317 = vmatprep.subr.bf16.mxu0 %v924
    %1318 = vmatpush2.bf16.msra.mxu0 %v923
    %1319 = vmatprep.mubr.bf16.mxu0 %v79
    %1320 = vmatmul.mubr.bf16.gmra.mxu0 %v78
    %v1321 = vpop.f32.mrf.mxu0
    %v1322 = vadd.f32 %v286, %v1321
    %v1323 = vpop.f32.mrf.mxu0
    %v1324 = vadd.f32 %v290, %v1323
    %v1325 = vpop.f32.mrf.mxu0
    %v1326 = vpop.f32.mrf.mxu0
    %1327 = vdwg.mxu0
    %1328 = vmatprep.subr.bf16.mxu0 %v984
    %1329 = vmatpush1.bf16.msra.mxu0 %v983
    %1330 = vmatprep.subr.bf16.mxu0 %v980
    %1331 = vmatpush1.bf16.msra.mxu0 %v979
    %1332 = vmatprep.subr.bf16.mxu0 %v976
    %1333 = vmatpush1.bf16.msra.mxu0 %v975
    %1334 = vmatprep.subr.bf16.mxu0 %v972
    %1335 = vmatpush1.bf16.msra.mxu0 %v971
    %1336 = vmatprep.subr.bf16.mxu0 %v968
    %1337 = vmatpush1.bf16.msra.mxu0 %v967
    %1338 = vmatprep.subr.bf16.mxu0 %v964
    %1339 = vmatpush1.bf16.msra.mxu0 %v963
    %1340 = vmatprep.subr.bf16.mxu0 %v960
    %1341 = vmatpush1.bf16.msra.mxu0 %v959
    %1342 = vmatprep.subr.bf16.mxu0 %v956
    %1343 = vmatpush1.bf16.msra.mxu0 %v955
    %1344 = vmatprep.subr.bf16.mxu0 %v1016
    %1345 = vmatpush2.bf16.msra.mxu0 %v1015
    %1346 = vmatprep.subr.bf16.mxu0 %v1012
    %1347 = vmatpush2.bf16.msra.mxu0 %v1011
    %1348 = vmatprep.subr.bf16.mxu0 %v1008
    %1349 = vmatpush2.bf16.msra.mxu0 %v1007
    %1350 = vmatprep.subr.bf16.mxu0 %v1004
    %1351 = vmatpush2.bf16.msra.mxu0 %v1003
    %1352 = vmatprep.subr.bf16.mxu0 %v1000
    %1353 = vmatpush2.bf16.msra.mxu0 %v999
    %1354 = vmatprep.subr.bf16.mxu0 %v996
    %1355 = vmatpush2.bf16.msra.mxu0 %v995
    %1356 = vmatprep.subr.bf16.mxu0 %v992
    %1357 = vmatpush2.bf16.msra.mxu0 %v991
    %1358 = vmatprep.subr.bf16.mxu0 %v988
    %1359 = vmatpush2.bf16.msra.mxu0 %v987
    %1360 = vmatprep.mubr.bf16.mxu0 %v81
    %1361 = vmatmul.mubr.bf16.gmra.mxu0 %v80
    %v1362 = vpop.f32.mrf.mxu0
    %v1363 = vadd.f32 %v1322, %v1362
    %v1364 = vpop.f32.mrf.mxu0
    %v1365 = vadd.f32 %v1324, %v1364
    %v1366 = vpop.f32.mrf.mxu0
    %v1367 = vpop.f32.mrf.mxu0
    %1368 = vdwg.mxu0
    %1369 = vmatprep.subr.bf16.mxu0 %v1048
    %1370 = vmatpush1.bf16.msra.mxu0 %v1047
    %1371 = vmatprep.subr.bf16.mxu0 %v1044
    %1372 = vmatpush1.bf16.msra.mxu0 %v1043
    %1373 = vmatprep.subr.bf16.mxu0 %v1040
    %1374 = vmatpush1.bf16.msra.mxu0 %v1039
    %1375 = vmatprep.subr.bf16.mxu0 %v1036
    %1376 = vmatpush1.bf16.msra.mxu0 %v1035
    %1377 = vmatprep.subr.bf16.mxu0 %v1032
    %1378 = vmatpush1.bf16.msra.mxu0 %v1031
    %1379 = vmatprep.subr.bf16.mxu0 %v1028
    %1380 = vmatpush1.bf16.msra.mxu0 %v1027
    %1381 = vmatprep.subr.bf16.mxu0 %v1024
    %1382 = vmatpush1.bf16.msra.mxu0 %v1023
    %1383 = vmatprep.subr.bf16.mxu0 %v1020
    %1384 = vmatpush1.bf16.msra.mxu0 %v1019
    %1385 = vmatprep.subr.bf16.mxu0 %v1080
    %1386 = vmatpush2.bf16.msra.mxu0 %v1079
    %1387 = vmatprep.subr.bf16.mxu0 %v1076
    %1388 = vmatpush2.bf16.msra.mxu0 %v1075
    %1389 = vmatprep.subr.bf16.mxu0 %v1072
    %1390 = vmatpush2.bf16.msra.mxu0 %v1071
    %1391 = vmatprep.subr.bf16.mxu0 %v1068
    %1392 = vmatpush2.bf16.msra.mxu0 %v1067
    %1393 = vmatprep.subr.bf16.mxu0 %v1064
    %1394 = vmatpush2.bf16.msra.mxu0 %v1063
    %1395 = vmatprep.subr.bf16.mxu0 %v1060
    %1396 = vmatpush2.bf16.msra.mxu0 %v1059
    %1397 = vmatprep.subr.bf16.mxu0 %v1056
    %1398 = vmatpush2.bf16.msra.mxu0 %v1055
    %1399 = vmatprep.subr.bf16.mxu0 %v1052
    %1400 = vmatpush2.bf16.msra.mxu0 %v1051
    %1401 = vmatprep.mubr.bf16.mxu0 %v83
    %1402 = vmatmul.mubr.bf16.gmra.mxu0 %v82
    %v1403 = vpop.f32.mrf.mxu0
    %v1404 = vadd.f32 %v1363, %v1403
    %v1405 = vpop.f32.mrf.mxu0
    %v1406 = vadd.f32 %v1365, %v1405
    %v1407 = vpop.f32.mrf.mxu0
    %v1408 = vpop.f32.mrf.mxu0
    %1409 = vdwg.mxu0
    %1410 = vmatprep.subr.bf16.mxu0 0
    %1411 = vmatpush1.bf16.msra.mxu0 0
    %1412 = vmatprep.subr.bf16.mxu0 0
    %1413 = vmatpush1.bf16.msra.mxu0 0
    %1414 = vmatprep.subr.bf16.mxu0 0
    %1415 = vmatpush1.bf16.msra.mxu0 0
    %1416 = vmatprep.subr.bf16.mxu0 0
    %1417 = vmatpush1.bf16.msra.mxu0 0
    %1418 = vmatprep.subr.bf16.mxu0 0
    %1419 = vmatpush1.bf16.msra.mxu0 0
    %1420 = vmatprep.subr.bf16.mxu0 0
    %1421 = vmatpush1.bf16.msra.mxu0 0
    %1422 = vmatprep.subr.bf16.mxu0 0
    %1423 = vmatpush1.bf16.msra.mxu0 0
    %1424 = vmatprep.subr.bf16.mxu0 %v1084
    %1425 = vmatpush1.bf16.msra.mxu0 %v1083
    %1426 = vmatprep.subr.bf16.mxu0 0
    %1427 = vmatpush2.bf16.msra.mxu0 0
    %1428 = vmatprep.subr.bf16.mxu0 0
    %1429 = vmatpush2.bf16.msra.mxu0 0
    %1430 = vmatprep.subr.bf16.mxu0 0
    %1431 = vmatpush2.bf16.msra.mxu0 0
    %1432 = vmatprep.subr.bf16.mxu0 0
    %1433 = vmatpush2.bf16.msra.mxu0 0
    %1434 = vmatprep.subr.bf16.mxu0 0
    %1435 = vmatpush2.bf16.msra.mxu0 0
    %1436 = vmatprep.subr.bf16.mxu0 0
    %1437 = vmatpush2.bf16.msra.mxu0 0
    %1438 = vmatprep.subr.bf16.mxu0 0
    %1439 = vmatpush2.bf16.msra.mxu0 0
    %1440 = vmatprep.subr.bf16.mxu0 0
    %1441 = vmatpush2.bf16.msra.mxu0 0
    %1442 = vmatprep.mubr.bf16.mxu0 0
    %1443 = vmatmul.mubr.bf16.gmra.mxu0 %v1285
    %v1444 = vpop.f32.mrf.mxu0
    %v1445 = vadd.f32 %v1404, %v1444
    %v1446 = vpop.f32.mrf.mxu0
    %v1447 = vadd.f32 %v1406, %v1446
    %v1448 = vpop.f32.mrf.mxu0
    %v1449 = vpop.f32.mrf.mxu0
    %1450 = vdwg.mxu0
    %1451 = vmatprep.subr.bf16.mxu0 %v922
    %1452 = vmatpush1.bf16.msra.mxu0 %v921
    %1453 = vmatprep.subr.bf16.mxu0 %v918
    %1454 = vmatpush1.bf16.msra.mxu0 %v917
    %1455 = vmatprep.subr.bf16.mxu0 %v914
    %1456 = vmatpush1.bf16.msra.mxu0 %v913
    %1457 = vmatprep.subr.bf16.mxu0 %v910
    %1458 = vmatpush1.bf16.msra.mxu0 %v909
    %1459 = vmatprep.subr.bf16.mxu0 %v906
    %1460 = vmatpush1.bf16.msra.mxu0 %v905
    %1461 = vmatprep.subr.bf16.mxu0 %v902
    %1462 = vmatpush1.bf16.msra.mxu0 %v901
    %1463 = vmatprep.subr.bf16.mxu0 %v898
    %1464 = vmatpush1.bf16.msra.mxu0 %v897
    %1465 = vmatprep.subr.bf16.mxu0 %v894
    %1466 = vmatpush1.bf16.msra.mxu0 %v893
    %1467 = vmatprep.subr.bf16.mxu0 %v954
    %1468 = vmatpush2.bf16.msra.mxu0 %v953
    %1469 = vmatprep.subr.bf16.mxu0 %v950
    %1470 = vmatpush2.bf16.msra.mxu0 %v949
    %1471 = vmatprep.subr.bf16.mxu0 %v946
    %1472 = vmatpush2.bf16.msra.mxu0 %v945
    %1473 = vmatprep.subr.bf16.mxu0 %v942
    %1474 = vmatpush2.bf16.msra.mxu0 %v941
    %1475 = vmatprep.subr.bf16.mxu0 %v938
    %1476 = vmatpush2.bf16.msra.mxu0 %v937
    %1477 = vmatprep.subr.bf16.mxu0 %v934
    %1478 = vmatpush2.bf16.msra.mxu0 %v933
    %1479 = vmatprep.subr.bf16.mxu0 %v930
    %1480 = vmatpush2.bf16.msra.mxu0 %v929
    %1481 = vmatprep.subr.bf16.mxu0 %v926
    %1482 = vmatpush2.bf16.msra.mxu0 %v925
    %1483 = vmatprep.mubr.bf16.mxu0 %v79
    %1484 = vmatmul.mubr.bf16.gmra.mxu0 %v78
    %v1485 = vpop.f32.mrf.mxu0
    %v1486 = vadd.f32 %v294, %v1485
    %v1487 = vpop.f32.mrf.mxu0
    %v1488 = vadd.f32 %v298, %v1487
    %v1489 = vpop.f32.mrf.mxu0
    %v1490 = vpop.f32.mrf.mxu0
    %1491 = vdwg.mxu0
    %1492 = vmatprep.subr.bf16.mxu0 %v986
    %1493 = vmatpush1.bf16.msra.mxu0 %v985
    %1494 = vmatprep.subr.bf16.mxu0 %v982
    %1495 = vmatpush1.bf16.msra.mxu0 %v981
    %1496 = vmatprep.subr.bf16.mxu0 %v978
    %1497 = vmatpush1.bf16.msra.mxu0 %v977
    %1498 = vmatprep.subr.bf16.mxu0 %v974
    %1499 = vmatpush1.bf16.msra.mxu0 %v973
    %1500 = vmatprep.subr.bf16.mxu0 %v970
    %1501 = vmatpush1.bf16.msra.mxu0 %v969
    %1502 = vmatprep.subr.bf16.mxu0 %v966
    %1503 = vmatpush1.bf16.msra.mxu0 %v965
    %1504 = vmatprep.subr.bf16.mxu0 %v962
    %1505 = vmatpush1.bf16.msra.mxu0 %v961
    %1506 = vmatprep.subr.bf16.mxu0 %v958
    %1507 = vmatpush1.bf16.msra.mxu0 %v957
    %1508 = vmatprep.subr.bf16.mxu0 %v1018
    %1509 = vmatpush2.bf16.msra.mxu0 %v1017
    %1510 = vmatprep.subr.bf16.mxu0 %v1014
    %1511 = vmatpush2.bf16.msra.mxu0 %v1013
    %1512 = vmatprep.subr.bf16.mxu0 %v1010
    %1513 = vmatpush2.bf16.msra.mxu0 %v1009
    %1514 = vmatprep.subr.bf16.mxu0 %v1006
    %1515 = vmatpush2.bf16.msra.mxu0 %v1005
    %1516 = vmatprep.subr.bf16.mxu0 %v1002
    %1517 = vmatpush2.bf16.msra.mxu0 %v1001
    %1518 = vmatprep.subr.bf16.mxu0 %v998
    %1519 = vmatpush2.bf16.msra.mxu0 %v997
    %1520 = vmatprep.subr.bf16.mxu0 %v994
    %1521 = vmatpush2.bf16.msra.mxu0 %v993
    %1522 = vmatprep.subr.bf16.mxu0 %v990
    %1523 = vmatpush2.bf16.msra.mxu0 %v989
    %1524 = vmatprep.mubr.bf16.mxu0 %v81
    %1525 = vmatmul.mubr.bf16.gmra.mxu0 %v80
    %v1526 = vpop.f32.mrf.mxu0
    %v1527 = vadd.f32 %v1486, %v1526
    %v1528 = vpop.f32.mrf.mxu0
    %v1529 = vadd.f32 %v1488, %v1528
    %v1530 = vpop.f32.mrf.mxu0
    %v1531 = vpop.f32.mrf.mxu0
    %1532 = vdwg.mxu0
    %1533 = vmatprep.subr.bf16.mxu0 %v1050
    %1534 = vmatpush1.bf16.msra.mxu0 %v1049
    %1535 = vmatprep.subr.bf16.mxu0 %v1046
    %1536 = vmatpush1.bf16.msra.mxu0 %v1045
    %1537 = vmatprep.subr.bf16.mxu0 %v1042
    %1538 = vmatpush1.bf16.msra.mxu0 %v1041
    %1539 = vmatprep.subr.bf16.mxu0 %v1038
    %1540 = vmatpush1.bf16.msra.mxu0 %v1037
    %1541 = vmatprep.subr.bf16.mxu0 %v1034
    %1542 = vmatpush1.bf16.msra.mxu0 %v1033
    %1543 = vmatprep.subr.bf16.mxu0 %v1030
    %1544 = vmatpush1.bf16.msra.mxu0 %v1029
    %1545 = vmatprep.subr.bf16.mxu0 %v1026
    %1546 = vmatpush1.bf16.msra.mxu0 %v1025
    %1547 = vmatprep.subr.bf16.mxu0 %v1022
    %1548 = vmatpush1.bf16.msra.mxu0 %v1021
    %1549 = vmatprep.subr.bf16.mxu0 %v1082
    %1550 = vmatpush2.bf16.msra.mxu0 %v1081
    %1551 = vmatprep.subr.bf16.mxu0 %v1078
    %1552 = vmatpush2.bf16.msra.mxu0 %v1077
    %1553 = vmatprep.subr.bf16.mxu0 %v1074
    %1554 = vmatpush2.bf16.msra.mxu0 %v1073
    %1555 = vmatprep.subr.bf16.mxu0 %v1070
    %1556 = vmatpush2.bf16.msra.mxu0 %v1069
    %1557 = vmatprep.subr.bf16.mxu0 %v1066
    %1558 = vmatpush2.bf16.msra.mxu0 %v1065
    %1559 = vmatprep.subr.bf16.mxu0 %v1062
    %1560 = vmatpush2.bf16.msra.mxu0 %v1061
    %1561 = vmatprep.subr.bf16.mxu0 %v1058
    %1562 = vmatpush2.bf16.msra.mxu0 %v1057
    %1563 = vmatprep.subr.bf16.mxu0 %v1054
    %1564 = vmatpush2.bf16.msra.mxu0 %v1053
    %1565 = vmatprep.mubr.bf16.mxu0 %v83
    %1566 = vmatmul.mubr.bf16.gmra.mxu0 %v82
    %v1567 = vpop.f32.mrf.mxu0
    %v1568 = vadd.f32 %v1527, %v1567
    %v1569 = vpop.f32.mrf.mxu0
    %v1570 = vadd.f32 %v1529, %v1569
    %v1571 = vpop.f32.mrf.mxu0
    %v1572 = vpop.f32.mrf.mxu0
    %1573 = vdwg.mxu0
    %1574 = vmatprep.subr.bf16.mxu0 0
    %1575 = vmatpush1.bf16.msra.mxu0 0
    %1576 = vmatprep.subr.bf16.mxu0 0
    %1577 = vmatpush1.bf16.msra.mxu0 0
    %1578 = vmatprep.subr.bf16.mxu0 0
    %1579 = vmatpush1.bf16.msra.mxu0 0
    %1580 = vmatprep.subr.bf16.mxu0 0
    %1581 = vmatpush1.bf16.msra.mxu0 0
    %1582 = vmatprep.subr.bf16.mxu0 0
    %1583 = vmatpush1.bf16.msra.mxu0 0
    %1584 = vmatprep.subr.bf16.mxu0 0
    %1585 = vmatpush1.bf16.msra.mxu0 0
    %1586 = vmatprep.subr.bf16.mxu0 0
    %1587 = vmatpush1.bf16.msra.mxu0 0
    %1588 = vmatprep.subr.bf16.mxu0 %v1086
    %1589 = vmatpush1.bf16.msra.mxu0 %v1085
    %1590 = vmatprep.subr.bf16.mxu0 0
    %1591 = vmatpush2.bf16.msra.mxu0 0
    %1592 = vmatprep.subr.bf16.mxu0 0
    %1593 = vmatpush2.bf16.msra.mxu0 0
    %1594 = vmatprep.subr.bf16.mxu0 0
    %1595 = vmatpush2.bf16.msra.mxu0 0
    %1596 = vmatprep.subr.bf16.mxu0 0
    %1597 = vmatpush2.bf16.msra.mxu0 0
    %1598 = vmatprep.subr.bf16.mxu0 0
    %1599 = vmatpush2.bf16.msra.mxu0 0
    %1600 = vmatprep.subr.bf16.mxu0 0
    %1601 = vmatpush2.bf16.msra.mxu0 0
    %1602 = vmatprep.subr.bf16.mxu0 0
    %1603 = vmatpush2.bf16.msra.mxu0 0
    %1604 = vmatprep.subr.bf16.mxu0 0
    %1605 = vmatpush2.bf16.msra.mxu0 0
    %1606 = vmatprep.mubr.bf16.mxu0 0
    %1607 = vmatmul.mubr.bf16.gmra.mxu0 %v1285
    %v1608 = vpop.f32.mrf.mxu0
    %v1609 = vadd.f32 %v1568, %v1608
    %v1610 = vpop.f32.mrf.mxu0
    %v1611 = vadd.f32 %v1570, %v1610
    %v1612 = vpop.f32.mrf.mxu0
    %v1613 = vpop.f32.mrf.mxu0
    %1614 = vdwg.mxu0
    %v1615 = vmax.f32 %v1445, 0.0
    %v1616 = vmax.f32 %v1447, 0.0
    %v1617 = vmax.f32 %v1609, 0.0
    %v1618 = vmax.f32 %v1611, 0.0
    %v1619 = vpack.c.bf16 %v1615, %v1615
    %v1620 = vpack.c.bf16 %v1616, %v1616
    %v1621 = vpack.c.bf16 %v1617, %v1617
    %v1622 = vpack.c.bf16 %v1618, %v1618
    %v1623 = vld [vmem:[%s3] sm:$0xf]
    %v1624 = vld [vmem:[%s3 + $0x4] sm:$0xf]
    %v1625 = vld [vmem:[%s3 + $0x8] sm:$0xf]
    %v1626 = vld [vmem:[%s3 + $0xc] sm:$0xf]
    %v1627 = vld [vmem:[%s3 + $0x10] sm:$0xf]
    %v1628 = vld [vmem:[%s3 + $0x14] sm:$0xf]
    %v1629 = vld [vmem:[%s3 + $0x18] sm:$0xf]
    %v1630 = vld [vmem:[%s3 + $0x1c] sm:$0xf]
    %v1631 = vld [vmem:[%s3 + $0x20] sm:$0xf]
    %v1632 = vld [vmem:[%s3 + $0x24] sm:$0xf]
    %v1633 = vld [vmem:[%s3 + $0x28] sm:$0xf]
    %v1634 = vld [vmem:[%s3 + $0x2c] sm:$0xf]
    %v1635 = vld [vmem:[%s3 + $0x30] sm:$0xf]
    %v1636 = vld [vmem:[%s3 + $0x34] sm:$0xf]
    %v1637 = vld [vmem:[%s3 + $0x38] sm:$0xf]
    %v1638 = vld [vmem:[%s3 + $0x3c] sm:$0xf]
    %v1639 = vld [vmem:[%s3 + $0x40] sm:$0xf]
    %v1640 = vld [vmem:[%s3 + $0x44] sm:$0xf]
    %v1641 = vld [vmem:[%s3 + $0x48] sm:$0xf]
    %v1642 = vld [vmem:[%s3 + $0x4c] sm:$0xf]
    %v1643 = vld [vmem:[%s3 + $0x50] sm:$0xf]
    %v1644 = vld [vmem:[%s3 + $0x54] sm:$0xf]
    %v1645 = vld [vmem:[%s3 + $0x58] sm:$0xf]
    %v1646 = vld [vmem:[%s3 + $0x5c] sm:$0xf]
    %v1647 = vld [vmem:[%s3 + $0x60] sm:$0xf]
    %v1648 = vld [vmem:[%s3 + $0x64] sm:$0xf]
    %v1649 = vld [vmem:[%s3 + $0x68] sm:$0xf]
    %v1650 = vld [vmem:[%s3 + $0x6c] sm:$0xf]
    %v1651 = vld [vmem:[%s3 + $0x70] sm:$0xf]
    %v1652 = vld [vmem:[%s3 + $0x74] sm:$0xf]
    %v1653 = vld [vmem:[%s3 + $0x78] sm:$0xf]
    %v1654 = vld [vmem:[%s3 + $0x7c] sm:$0xf]
    %v1655 = vld [vmem:[%s3 + $0x80] sm:$0xf]
    %v1656 = vld [vmem:[%s3 + $0x84] sm:$0xf]
    %v1657 = vld [vmem:[%s3 + $0x88] sm:$0xf]
    %v1658 = vld [vmem:[%s3 + $0x8c] sm:$0xf]
    %v1659 = vld [vmem:[%s3 + $0x90] sm:$0xf]
    %v1660 = vld [vmem:[%s3 + $0x94] sm:$0xf]
    %v1661 = vld [vmem:[%s3 + $0x98] sm:$0xf]
    %v1662 = vld [vmem:[%s3 + $0x9c] sm:$0xf]
    %v1663 = vld [vmem:[%s3 + $0xa0] sm:$0xf]
    %v1664 = vld [vmem:[%s3 + $0xa4] sm:$0xf]
    %v1665 = vld [vmem:[%s3 + $0xa8] sm:$0xf]
    %v1666 = vld [vmem:[%s3 + $0xac] sm:$0xf]
    %v1667 = vld [vmem:[%s3 + $0xb0] sm:$0xf]
    %v1668 = vld [vmem:[%s3 + $0xb4] sm:$0xf]
    %v1669 = vld [vmem:[%s3 + $0xb8] sm:$0xf]
    %v1670 = vld [vmem:[%s3 + $0xbc] sm:$0xf]
    %v1671 = vld [vmem:[%s3 + $0xc0] sm:$0xf]
    %v1672 = vld [vmem:[%s3 + $0xc4] sm:$0xf]
    %v1673 = vld [vmem:[%s3 + $0xc8] sm:$0xf]
    %v1674 = vld [vmem:[%s3 + $0xcc] sm:$0xf]
    %v1675 = vld [vmem:[%s3 + $0xd0] sm:$0xf]
    %v1676 = vld [vmem:[%s3 + $0xd4] sm:$0xf]
    %v1677 = vld [vmem:[%s3 + $0xd8] sm:$0xf]
    %v1678 = vld [vmem:[%s3 + $0xdc] sm:$0xf]
    %v1679 = vld [vmem:[%s3 + $0xe0] sm:$0xf]
    %v1680 = vld [vmem:[%s3 + $0xe4] sm:$0xf]
    %v1681 = vld [vmem:[%s3 + $0xe8] sm:$0xf]
    %v1682 = vld [vmem:[%s3 + $0xec] sm:$0xf]
    %v1683 = vld [vmem:[%s3 + $0xf0] sm:$0xf]
    %v1684 = vld [vmem:[%s3 + $0xf4] sm:$0xf]
    %v1685 = vld [vmem:[%s3 + $0xf8] sm:$0xf]
    %v1686 = vld [vmem:[%s3 + $0xfc] sm:$0xf]
    %v1687 = vld [vmem:[%s4] sm:$0x1]
    %v1689 = vlaneseq
    %v1690 = vshrl.u32 %v1689, 7
    %v1691 = vsub.s32 0, %v1690
    %v1692 = vrot.slane %v1687, %v1691
    %v1758 = vunpack.c.l.b16 %v1623
    %v1759 = vunpack.c.l.b16 %v1624
    %v1760 = vunpack.c.l.b16 %v1625
    %v1761 = vunpack.c.l.b16 %v1626
    %v1762 = vunpack.c.l.b16 %v1627
    %v1763 = vunpack.c.l.b16 %v1628
    %v1764 = vunpack.c.l.b16 %v1629
    %v1765 = vunpack.c.l.b16 %v1630
    %v1766 = vunpack.c.l.b16 %v1631
    %v1767 = vunpack.c.l.b16 %v1632
    %v1768 = vunpack.c.l.b16 %v1633
    %v1769 = vunpack.c.l.b16 %v1634
    %v1770 = vunpack.c.l.b16 %v1635
    %v1771 = vunpack.c.l.b16 %v1636
    %v1772 = vunpack.c.l.b16 %v1637
    %v1773 = vunpack.c.l.b16 %v1638
    %v1774 = vunpack.c.l.b16 %v1639
    %v1775 = vunpack.c.l.b16 %v1640
    %v1776 = vunpack.c.l.b16 %v1641
    %v1777 = vunpack.c.l.b16 %v1642
    %v1778 = vunpack.c.l.b16 %v1643
    %v1779 = vunpack.c.l.b16 %v1644
    %v1780 = vunpack.c.l.b16 %v1645
    %v1781 = vunpack.c.l.b16 %v1646
    %v1782 = vunpack.c.l.b16 %v1647
    %v1783 = vunpack.c.l.b16 %v1648
    %v1784 = vunpack.c.l.b16 %v1649
    %v1785 = vunpack.c.l.b16 %v1650
    %v1786 = vunpack.c.l.b16 %v1651
    %v1787 = vunpack.c.l.b16 %v1652
    %v1788 = vunpack.c.l.b16 %v1653
    %v1789 = vunpack.c.l.b16 %v1654
    %v1790 = vunpack.c.l.b16 %v1655
    %v1791 = vunpack.c.l.b16 %v1656
    %v1792 = vunpack.c.l.b16 %v1657
    %v1793 = vunpack.c.l.b16 %v1658
    %v1794 = vunpack.c.l.b16 %v1659
    %v1795 = vunpack.c.l.b16 %v1660
    %v1796 = vunpack.c.l.b16 %v1661
    %v1797 = vunpack.c.l.b16 %v1662
    %v1798 = vunpack.c.l.b16 %v1663
    %v1799 = vunpack.c.l.b16 %v1664
    %v1800 = vunpack.c.l.b16 %v1665
    %v1801 = vunpack.c.l.b16 %v1666
    %v1802 = vunpack.c.l.b16 %v1667
    %v1803 = vunpack.c.l.b16 %v1668
    %v1804 = vunpack.c.l.b16 %v1669
    %v1805 = vunpack.c.l.b16 %v1670
    %v1806 = vunpack.c.l.b16 %v1671
    %v1807 = vunpack.c.l.b16 %v1672
    %v1808 = vunpack.c.l.b16 %v1673
    %v1809 = vunpack.c.l.b16 %v1674
    %v1810 = vunpack.c.l.b16 %v1675
    %v1811 = vunpack.c.l.b16 %v1676
    %v1812 = vunpack.c.l.b16 %v1677
    %v1813 = vunpack.c.l.b16 %v1678
    %v1814 = vunpack.c.l.b16 %v1679
    %v1815 = vunpack.c.l.b16 %v1680
    %v1816 = vunpack.c.l.b16 %v1681
    %v1817 = vunpack.c.l.b16 %v1682
    %v1818 = vunpack.c.l.b16 %v1683
    %v1819 = vunpack.c.l.b16 %v1684
    %v1820 = vunpack.c.l.b16 %v1685
    %v1821 = vunpack.c.l.b16 %v1686
    %v1822 = vpack.c.b16 %v1759, %v1758
    %v1823 = vpack.c.b16 %v1761, %v1760
    %v1824 = vpack.c.b16 %v1763, %v1762
    %v1825 = vpack.c.b16 %v1765, %v1764
    %v1826 = vpack.c.b16 %v1767, %v1766
    %v1827 = vpack.c.b16 %v1769, %v1768
    %v1828 = vpack.c.b16 %v1771, %v1770
    %v1829 = vpack.c.b16 %v1773, %v1772
    %v1830 = vpack.c.b16 %v1775, %v1774
    %v1831 = vpack.c.b16 %v1777, %v1776
    %v1832 = vpack.c.b16 %v1779, %v1778
    %v1833 = vpack.c.b16 %v1781, %v1780
    %v1834 = vpack.c.b16 %v1783, %v1782
    %v1835 = vpack.c.b16 %v1785, %v1784
    %v1836 = vpack.c.b16 %v1787, %v1786
    %v1837 = vpack.c.b16 %v1789, %v1788
    %v1838 = vpack.c.b16 %v1791, %v1790
    %v1839 = vpack.c.b16 %v1793, %v1792
    %v1840 = vpack.c.b16 %v1795, %v1794
    %v1841 = vpack.c.b16 %v1797, %v1796
    %v1842 = vpack.c.b16 %v1799, %v1798
    %v1843 = vpack.c.b16 %v1801, %v1800
    %v1844 = vpack.c.b16 %v1803, %v1802
    %v1845 = vpack.c.b16 %v1805, %v1804
    %v1846 = vpack.c.b16 %v1807, %v1806
    %v1847 = vpack.c.b16 %v1809, %v1808
    %v1848 = vpack.c.b16 %v1811, %v1810
    %v1849 = vpack.c.b16 %v1813, %v1812
    %v1850 = vpack.c.b16 %v1815, %v1814
    %v1851 = vpack.c.b16 %v1817, %v1816
    %v1852 = vpack.c.b16 %v1819, %v1818
    %v1853 = vpack.c.b16 %v1821, %v1820
    %1886 = vmatprep.subr.bf16.mxu0 0
    %1887 = vmatpush1.bf16.msra.mxu0 %v1829
    %1888 = vmatprep.subr.bf16.mxu0 0
    %1889 = vmatpush1.bf16.msra.mxu0 %v1828
    %1890 = vmatprep.subr.bf16.mxu0 0
    %1891 = vmatpush1.bf16.msra.mxu0 %v1827
    %1892 = vmatprep.subr.bf16.mxu0 0
    %1893 = vmatpush1.bf16.msra.mxu0 %v1826
    %1894 = vmatprep.subr.bf16.mxu0 0
    %1895 = vmatpush1.bf16.msra.mxu0 %v1825
    %1896 = vmatprep.subr.bf16.mxu0 0
    %1897 = vmatpush1.bf16.msra.mxu0 %v1824
    %1898 = vmatprep.subr.bf16.mxu0 0
    %1899 = vmatpush1.bf16.msra.mxu0 %v1823
    %1900 = vmatprep.subr.bf16.mxu0 0
    %1901 = vmatpush1.bf16.msra.mxu0 %v1822
    %1902 = vmatprep.subr.bf16.mxu0 0
    %1903 = vmatpush2.bf16.msra.mxu0 %v1837
    %1904 = vmatprep.subr.bf16.mxu0 0
    %1905 = vmatpush2.bf16.msra.mxu0 %v1836
    %1906 = vmatprep.subr.bf16.mxu0 0
    %1907 = vmatpush2.bf16.msra.mxu0 %v1835
    %1908 = vmatprep.subr.bf16.mxu0 0
    %1909 = vmatpush2.bf16.msra.mxu0 %v1834
    %1910 = vmatprep.subr.bf16.mxu0 0
    %1911 = vmatpush2.bf16.msra.mxu0 %v1833
    %1912 = vmatprep.subr.bf16.mxu0 0
    %1913 = vmatpush2.bf16.msra.mxu0 %v1832
    %1914 = vmatprep.subr.bf16.mxu0 0
    %1915 = vmatpush2.bf16.msra.mxu0 %v1831
    %1916 = vmatprep.subr.bf16.mxu0 0
    %1917 = vmatpush2.bf16.msra.mxu0 %v1830
    %1918 = vmatprep.mubr.bf16.mxu0 %v1620
    %1919 = vmatmul.mubr.bf16.gmra.mxu0 %v1619
    %v1920 = vpop.f32.mrf.mxu0
    %v1921 = vadd.f32 %v1692, %v1920
    %v1922 = vpop.f32.mrf.mxu0
    %v1923 = vpop.f32.mrf.mxu0
    %v1924 = vpop.f32.mrf.mxu0
    %1925 = vdwg.mxu0
    %1926 = vmatprep.subr.bf16.mxu0 0
    %1927 = vmatpush1.bf16.msra.mxu0 %v1845
    %1928 = vmatprep.subr.bf16.mxu0 0
    %1929 = vmatpush1.bf16.msra.mxu0 %v1844
    %1930 = vmatprep.subr.bf16.mxu0 0
    %1931 = vmatpush1.bf16.msra.mxu0 %v1843
    %1932 = vmatprep.subr.bf16.mxu0 0
    %1933 = vmatpush1.bf16.msra.mxu0 %v1842
    %1934 = vmatprep.subr.bf16.mxu0 0
    %1935 = vmatpush1.bf16.msra.mxu0 %v1841
    %1936 = vmatprep.subr.bf16.mxu0 0
    %1937 = vmatpush1.bf16.msra.mxu0 %v1840
    %1938 = vmatprep.subr.bf16.mxu0 0
    %1939 = vmatpush1.bf16.msra.mxu0 %v1839
    %1940 = vmatprep.subr.bf16.mxu0 0
    %1941 = vmatpush1.bf16.msra.mxu0 %v1838
    %1942 = vmatprep.subr.bf16.mxu0 0
    %1943 = vmatpush2.bf16.msra.mxu0 %v1853
    %1944 = vmatprep.subr.bf16.mxu0 0
    %1945 = vmatpush2.bf16.msra.mxu0 %v1852
    %1946 = vmatprep.subr.bf16.mxu0 0
    %1947 = vmatpush2.bf16.msra.mxu0 %v1851
    %1948 = vmatprep.subr.bf16.mxu0 0
    %1949 = vmatpush2.bf16.msra.mxu0 %v1850
    %1950 = vmatprep.subr.bf16.mxu0 0
    %1951 = vmatpush2.bf16.msra.mxu0 %v1849
    %1952 = vmatprep.subr.bf16.mxu0 0
    %1953 = vmatpush2.bf16.msra.mxu0 %v1848
    %1954 = vmatprep.subr.bf16.mxu0 0
    %1955 = vmatpush2.bf16.msra.mxu0 %v1847
    %1956 = vmatprep.subr.bf16.mxu0 0
    %1957 = vmatpush2.bf16.msra.mxu0 %v1846
    %1958 = vmatprep.mubr.bf16.mxu0 %v1622
    %1959 = vmatmul.mubr.bf16.gmra.mxu0 %v1621
    %v1960 = vpop.f32.mrf.mxu0
    %v1961 = vadd.f32 %v1921, %v1960
    %v1962 = vpop.f32.mrf.mxu0
    %v1963 = vpop.f32.mrf.mxu0
    %v1964 = vpop.f32.mrf.mxu0
    %1965 = vdwg.mxu0
    %v1966 = vpack.c.bf16 %v1961, %v1961
    %v1967 = vld [vmem:[%s5] sm:$0xff]
    %v1968 = vld [vmem:[%s5 + $0x8] sm:$0xff]
    %v1969 = vld [vmem:[%s5 + $0x10] sm:$0xff]
    %v1970 = vld [vmem:[%s5 + $0x18] sm:$0xff]
    %v1971 = vld [vmem:[%s5 + $0x20] sm:$0xff]
    %v1972 = vld [vmem:[%s5 + $0x28] sm:$0xff]
    %v1973 = vld [vmem:[%s5 + $0x30] sm:$0xff]
    %v1974 = vld [vmem:[%s5 + $0x38] sm:$0xff]
    %v1975 = vld [vmem:[%s5 + $0x40] sm:$0xff]
    %v1976 = vld [vmem:[%s5 + $0x48] sm:$0xff]
    %v1977 = vld [vmem:[%s5 + $0x50] sm:$0xff]
    %v1978 = vld [vmem:[%s5 + $0x58] sm:$0xff]
    %v1979 = vld [vmem:[%s5 + $0x60] sm:$0xff]
    %v1980 = vld [vmem:[%s5 + $0x68] sm:$0xff]
    %v1981 = vld [vmem:[%s5 + $0x70] sm:$0xff]
    %v1982 = vld [vmem:[%s5 + $0x78] sm:$0xff]
    %v1983 = vld [vmem:[%s5 + $0x80] sm:$0xff]
    %v1984 = vld [vmem:[%s5 + $0x88] sm:$0xff]
    %v1985 = vld [vmem:[%s5 + $0x90] sm:$0xff]
    %v1986 = vld [vmem:[%s5 + $0x98] sm:$0xff]
    %v1987 = vld [vmem:[%s5 + $0xa0] sm:$0xff]
    %v1988 = vld [vmem:[%s5 + $0xa8] sm:$0xff]
    %v1989 = vld [vmem:[%s5 + $0xb0] sm:$0xff]
    %v1990 = vld [vmem:[%s5 + $0xb8] sm:$0xff]
    %v1991 = vld [vmem:[%s5 + $0xc0] sm:$0xff]
    %v1992 = vld [vmem:[%s5 + $0xc8] sm:$0xff]
    %v1993 = vld [vmem:[%s5 + $0xd0] sm:$0xff]
    %v1994 = vld [vmem:[%s5 + $0xd8] sm:$0xff]
    %v1995 = vld [vmem:[%s5 + $0xe0] sm:$0xff]
    %v1996 = vld [vmem:[%s5 + $0xe8] sm:$0xff]
    %v1997 = vld [vmem:[%s5 + $0xf0] sm:$0xff]
    %v1998 = vld [vmem:[%s5 + $0xf8] sm:$0xff]
    %v1999 = vld [vmem:[%s6] sm:$0xf]
    %v2001 = vlaneseq
    %v2002 = vshrl.u32 %v2001, 7
    %v2003 = vsub.s32 0, %v2002
    %v2004 = vrot.slane %v1999, %v2003
    %v2005 = vlaneseq
    %v2006 = vshrl.u32 %v2005, 7
    %v2007 = vsub.s32 1, %v2006
    %v2008 = vrot.slane %v1999, %v2007
    %v2009 = vlaneseq
    %v2010 = vshrl.u32 %v2009, 7
    %v2011 = vsub.s32 2, %v2010
    %v2012 = vrot.slane %v1999, %v2011
    %v2013 = vlaneseq
    %v2014 = vshrl.u32 %v2013, 7
    %v2015 = vsub.s32 3, %v2014
    %v2016 = vrot.slane %v1999, %v2015
    %v2053 = vunpack.c.l.b16 %v1967
    %v2054 = vunpack.c.h.b16 %v1967
    %v2055 = vunpack.c.l.b16 %v1968
    %v2056 = vunpack.c.h.b16 %v1968
    %v2057 = vunpack.c.l.b16 %v1969
    %v2058 = vunpack.c.h.b16 %v1969
    %v2059 = vunpack.c.l.b16 %v1970
    %v2060 = vunpack.c.h.b16 %v1970
    %v2061 = vunpack.c.l.b16 %v1971
    %v2062 = vunpack.c.h.b16 %v1971
    %v2063 = vunpack.c.l.b16 %v1972
    %v2064 = vunpack.c.h.b16 %v1972
    %v2065 = vunpack.c.l.b16 %v1973
    %v2066 = vunpack.c.h.b16 %v1973
    %v2067 = vunpack.c.l.b16 %v1974
    %v2068 = vunpack.c.h.b16 %v1974
    %v2069 = vunpack.c.l.b16 %v1975
    %v2070 = vunpack.c.h.b16 %v1975
    %v2071 = vunpack.c.l.b16 %v1976
    %v2072 = vunpack.c.h.b16 %v1976
    %v2073 = vunpack.c.l.b16 %v1977
    %v2074 = vunpack.c.h.b16 %v1977
    %v2075 = vunpack.c.l.b16 %v1978
    %v2076 = vunpack.c.h.b16 %v1978
    %v2077 = vunpack.c.l.b16 %v1979
    %v2078 = vunpack.c.h.b16 %v1979
    %v2079 = vunpack.c.l.b16 %v1980
    %v2080 = vunpack.c.h.b16 %v1980
    %v2081 = vunpack.c.l.b16 %v1981
    %v2082 = vunpack.c.h.b16 %v1981
    %v2083 = vunpack.c.l.b16 %v1982
    %v2084 = vunpack.c.h.b16 %v1982
    %v2085 = vunpack.c.l.b16 %v1983
    %v2086 = vunpack.c.h.b16 %v1983
    %v2087 = vunpack.c.l.b16 %v1984
    %v2088 = vunpack.c.h.b16 %v1984
    %v2089 = vunpack.c.l.b16 %v1985
    %v2090 = vunpack.c.h.b16 %v1985
    %v2091 = vunpack.c.l.b16 %v1986
    %v2092 = vunpack.c.h.b16 %v1986
    %v2093 = vunpack.c.l.b16 %v1987
    %v2094 = vunpack.c.h.b16 %v1987
    %v2095 = vunpack.c.l.b16 %v1988
    %v2096 = vunpack.c.h.b16 %v1988
    %v2097 = vunpack.c.l.b16 %v1989
    %v2098 = vunpack.c.h.b16 %v1989
    %v2099 = vunpack.c.l.b16 %v1990
    %v2100 = vunpack.c.h.b16 %v1990
    %v2101 = vunpack.c.l.b16 %v1991
    %v2102 = vunpack.c.h.b16 %v1991
    %v2103 = vunpack.c.l.b16 %v1992
    %v2104 = vunpack.c.h.b16 %v1992
    %v2105 = vunpack.c.l.b16 %v1993
    %v2106 = vunpack.c.h.b16 %v1993
    %v2107 = vunpack.c.l.b16 %v1994
    %v2108 = vunpack.c.h.b16 %v1994
    %v2109 = vunpack.c.l.b16 %v1995
    %v2110 = vunpack.c.h.b16 %v1995
    %v2111 = vunpack.c.l.b16 %v1996
    %v2112 = vunpack.c.h.b16 %v1996
    %v2113 = vunpack.c.l.b16 %v1997
    %v2114 = vunpack.c.h.b16 %v1997
    %v2115 = vunpack.c.l.b16 %v1998
    %v2116 = vunpack.c.h.b16 %v1998
    %v2117 = vpack.c.b16 %v2057, %v2053
    %v2118 = vpack.c.b16 %v2058, %v2054
    %v2119 = vpack.c.b16 %v2059, %v2055
    %v2120 = vpack.c.b16 %v2060, %v2056
    %v2121 = vpack.c.b16 %v2065, %v2061
    %v2122 = vpack.c.b16 %v2066, %v2062
    %v2123 = vpack.c.b16 %v2067, %v2063
    %v2124 = vpack.c.b16 %v2068, %v2064
    %v2125 = vpack.c.b16 %v2073, %v2069
    %v2126 = vpack.c.b16 %v2074, %v2070
    %v2127 = vpack.c.b16 %v2075, %v2071
    %v2128 = vpack.c.b16 %v2076, %v2072
    %v2129 = vpack.c.b16 %v2081, %v2077
    %v2130 = vpack.c.b16 %v2082, %v2078
    %v2131 = vpack.c.b16 %v2083, %v2079
    %v2132 = vpack.c.b16 %v2084, %v2080
    %v2133 = vpack.c.b16 %v2089, %v2085
    %v2134 = vpack.c.b16 %v2090, %v2086
    %v2135 = vpack.c.b16 %v2091, %v2087
    %v2136 = vpack.c.b16 %v2092, %v2088
    %v2137 = vpack.c.b16 %v2097, %v2093
    %v2138 = vpack.c.b16 %v2098, %v2094
    %v2139 = vpack.c.b16 %v2099, %v2095
    %v2140 = vpack.c.b16 %v2100, %v2096
    %v2141 = vpack.c.b16 %v2105, %v2101
    %v2142 = vpack.c.b16 %v2106, %v2102
    %v2143 = vpack.c.b16 %v2107, %v2103
    %v2144 = vpack.c.b16 %v2108, %v2104
    %v2145 = vpack.c.b16 %v2113, %v2109
    %v2146 = vpack.c.b16 %v2114, %v2110
    %v2147 = vpack.c.b16 %v2115, %v2111
    %v2148 = vpack.c.b16 %v2116, %v2112
    %2181 = vmatprep.subr.bf16.mxu0 %v2146
    %2182 = vmatpush1.bf16.msra.mxu0 %v2145
    %2183 = vmatprep.subr.bf16.mxu0 %v2142
    %2184 = vmatpush1.bf16.msra.mxu0 %v2141
    %2185 = vmatprep.subr.bf16.mxu0 %v2138
    %2186 = vmatpush1.bf16.msra.mxu0 %v2137
    %2187 = vmatprep.subr.bf16.mxu0 %v2134
    %2188 = vmatpush1.bf16.msra.mxu0 %v2133
    %2189 = vmatprep.subr.bf16.mxu0 %v2130
    %2190 = vmatpush1.bf16.msra.mxu0 %v2129
    %2191 = vmatprep.subr.bf16.mxu0 %v2126
    %2192 = vmatpush1.bf16.msra.mxu0 %v2125
    %2193 = vmatprep.subr.bf16.mxu0 %v2122
    %2194 = vmatpush1.bf16.msra.mxu0 %v2121
    %2195 = vmatprep.subr.bf16.mxu0 %v2118
    %2196 = vmatpush1.bf16.msra.mxu0 %v2117
    %2197 = vmatprep.subr.bf16.mxu0 0
    %2198 = vmatpush2.bf16.msra.mxu0 0
    %2199 = vmatprep.subr.bf16.mxu0 0
    %2200 = vmatpush2.bf16.msra.mxu0 0
    %2201 = vmatprep.subr.bf16.mxu0 0
    %2202 = vmatpush2.bf16.msra.mxu0 0
    %2203 = vmatprep.subr.bf16.mxu0 0
    %2204 = vmatpush2.bf16.msra.mxu0 0
    %2205 = vmatprep.subr.bf16.mxu0 0
    %2206 = vmatpush2.bf16.msra.mxu0 0
    %2207 = vmatprep.subr.bf16.mxu0 0
    %2208 = vmatpush2.bf16.msra.mxu0 0
    %2209 = vmatprep.subr.bf16.mxu0 0
    %2210 = vmatpush2.bf16.msra.mxu0 0
    %2211 = vmatprep.subr.bf16.mxu0 0
    %2212 = vmatpush2.bf16.msra.mxu0 0
    %2213 = vmatprep.mubr.bf16.mxu0 0
    %2214 = vmatmul.mubr.bf16.gmra.mxu0 %v1966
    %v2215 = vpop.f32.mrf.mxu0
    %v2216 = vadd.f32 %v2004, %v2215
    %v2217 = vpop.f32.mrf.mxu0
    %v2218 = vadd.f32 %v2008, %v2217
    %v2219 = vpop.f32.mrf.mxu0
    %v2220 = vpop.f32.mrf.mxu0
    %2221 = vdwg.mxu0
    %2222 = vmatprep.subr.bf16.mxu0 %v2148
    %2223 = vmatpush1.bf16.msra.mxu0 %v2147
    %2224 = vmatprep.subr.bf16.mxu0 %v2144
    %2225 = vmatpush1.bf16.msra.mxu0 %v2143
    %2226 = vmatprep.subr.bf16.mxu0 %v2140
    %2227 = vmatpush1.bf16.msra.mxu0 %v2139
    %2228 = vmatprep.subr.bf16.mxu0 %v2136
    %2229 = vmatpush1.bf16.msra.mxu0 %v2135
    %2230 = vmatprep.subr.bf16.mxu0 %v2132
    %2231 = vmatpush1.bf16.msra.mxu0 %v2131
    %2232 = vmatprep.subr.bf16.mxu0 %v2128
    %2233 = vmatpush1.bf16.msra.mxu0 %v2127
    %2234 = vmatprep.subr.bf16.mxu0 %v2124
    %2235 = vmatpush1.bf16.msra.mxu0 %v2123
    %2236 = vmatprep.subr.bf16.mxu0 %v2120
    %2237 = vmatpush1.bf16.msra.mxu0 %v2119
    %2238 = vmatprep.subr.bf16.mxu0 0
    %2239 = vmatpush2.bf16.msra.mxu0 0
    %2240 = vmatprep.subr.bf16.mxu0 0
    %2241 = vmatpush2.bf16.msra.mxu0 0
    %2242 = vmatprep.subr.bf16.mxu0 0
    %2243 = vmatpush2.bf16.msra.mxu0 0
    %2244 = vmatprep.subr.bf16.mxu0 0
    %2245 = vmatpush2.bf16.msra.mxu0 0
    %2246 = vmatprep.subr.bf16.mxu0 0
    %2247 = vmatpush2.bf16.msra.mxu0 0
    %2248 = vmatprep.subr.bf16.mxu0 0
    %2249 = vmatpush2.bf16.msra.mxu0 0
    %2250 = vmatprep.subr.bf16.mxu0 0
    %2251 = vmatpush2.bf16.msra.mxu0 0
    %2252 = vmatprep.subr.bf16.mxu0 0
    %2253 = vmatpush2.bf16.msra.mxu0 0
    %2254 = vmatprep.mubr.bf16.mxu0 0
    %2255 = vmatmul.mubr.bf16.gmra.mxu0 %v1966
    %v2256 = vpop.f32.mrf.mxu0
    %v2257 = vadd.f32 %v2012, %v2256
    %v2258 = vpop.f32.mrf.mxu0
    %v2259 = vadd.f32 %v2016, %v2258
    %v2260 = vpop.f32.mrf.mxu0
    %v2261 = vpop.f32.mrf.mxu0
    %2262 = vdwg.mxu0
    %v2263 = vmax.f32 %v2216, 0.0
    %v2264 = vmax.f32 %v2218, 0.0
    %v2265 = vmax.f32 %v2257, 0.0
    %v2266 = vmax.f32 %v2259, 0.0
    %v2267 = vpack.c.bf16 %v2263, %v2263
    %v2268 = vpack.c.bf16 %v2264, %v2264
    %v2269 = vpack.c.bf16 %v2265, %v2265
    %v2270 = vpack.c.bf16 %v2266, %v2266
    %v2271 = vld [vmem:[%s7] sm:$0xff]
    %v2272 = vld [vmem:[%s7 + $0x8] sm:$0xff]
    %v2273 = vld [vmem:[%s7 + $0x10] sm:$0xff]
    %v2274 = vld [vmem:[%s7 + $0x18] sm:$0xf]
    %v2275 = vld [vmem:[%s7 + $0x1c] sm:$0xff]
    %v2276 = vld [vmem:[%s7 + $0x24] sm:$0xff]
    %v2277 = vld [vmem:[%s7 + $0x2c] sm:$0xff]
    %v2278 = vld [vmem:[%s7 + $0x34] sm:$0xf]
    %v2279 = vld [vmem:[%s7 + $0x38] sm:$0xff]
    %v2280 = vld [vmem:[%s7 + $0x40] sm:$0xff]
    %v2281 = vld [vmem:[%s7 + $0x48] sm:$0xff]
    %v2282 = vld [vmem:[%s7 + $0x50] sm:$0xf]
    %v2283 = vld [vmem:[%s7 + $0x54] sm:$0xff]
    %v2284 = vld [vmem:[%s7 + $0x5c] sm:$0xff]
    %v2285 = vld [vmem:[%s7 + $0x64] sm:$0xff]
    %v2286 = vld [vmem:[%s7 + $0x6c] sm:$0xf]
    %v2287 = vld [vmem:[%s7 + $0x70] sm:$0xff]
    %v2288 = vld [vmem:[%s7 + $0x78] sm:$0xff]
    %v2289 = vld [vmem:[%s7 + $0x80] sm:$0xff]
    %v2290 = vld [vmem:[%s7 + $0x88] sm:$0xf]
    %v2291 = vld [vmem:[%s7 + $0x8c] sm:$0xff]
    %v2292 = vld [vmem:[%s7 + $0x94] sm:$0xff]
    %v2293 = vld [vmem:[%s7 + $0x9c] sm:$0xff]
    %v2294 = vld [vmem:[%s7 + $0xa4] sm:$0xf]
    %v2295 = vld [vmem:[%s7 + $0xa8] sm:$0xff]
    %v2296 = vld [vmem:[%s7 + $0xb0] sm:$0xff]
    %v2297 = vld [vmem:[%s7 + $0xb8] sm:$0xff]
    %v2298 = vld [vmem:[%s7 + $0xc0] sm:$0xf]
    %v2299 = vld [vmem:[%s7 + $0xc4] sm:$0xff]
    %v2300 = vld [vmem:[%s7 + $0xcc] sm:$0xff]
    %v2301 = vld [vmem:[%s7 + $0xd4] sm:$0xff]
    %v2302 = vld [vmem:[%s7 + $0xdc] sm:$0xf]
    %v2303 = vld [vmem:[%s7 + $0xe0] sm:$0xff]
    %v2304 = vld [vmem:[%s7 + $0xe8] sm:$0xff]
    %v2305 = vld [vmem:[%s7 + $0xf0] sm:$0xff]
    %v2306 = vld [vmem:[%s7 + $0xf8] sm:$0xf]
    %v2307 = vld [vmem:[%s7 + $0xfc] sm:$0xff]
    %v2308 = vld [vmem:[%s7 + $0x104] sm:$0xff]
    %v2309 = vld [vmem:[%s7 + $0x10c] sm:$0xff]
    %v2310 = vld [vmem:[%s7 + $0x114] sm:$0xf]
    %v2311 = vld [vmem:[%s7 + $0x118] sm:$0xff]
    %v2312 = vld [vmem:[%s7 + $0x120] sm:$0xff]
    %v2313 = vld [vmem:[%s7 + $0x128] sm:$0xff]
    %v2314 = vld [vmem:[%s7 + $0x130] sm:$0xf]
    %v2315 = vld [vmem:[%s7 + $0x134] sm:$0xff]
    %v2316 = vld [vmem:[%s7 + $0x13c] sm:$0xff]
    %v2317 = vld [vmem:[%s7 + $0x144] sm:$0xff]
    %v2318 = vld [vmem:[%s7 + $0x14c] sm:$0xf]
    %v2319 = vld [vmem:[%s7 + $0x150] sm:$0xff]
    %v2320 = vld [vmem:[%s7 + $0x158] sm:$0xff]
    %v2321 = vld [vmem:[%s7 + $0x160] sm:$0xff]
    %v2322 = vld [vmem:[%s7 + $0x168] sm:$0xf]
    %v2323 = vld [vmem:[%s7 + $0x16c] sm:$0xff]
    %v2324 = vld [vmem:[%s7 + $0x174] sm:$0xff]
    %v2325 = vld [vmem:[%s7 + $0x17c] sm:$0xff]
    %v2326 = vld [vmem:[%s7 + $0x184] sm:$0xf]
    %v2327 = vld [vmem:[%s7 + $0x188] sm:$0xff]
    %v2328 = vld [vmem:[%s7 + $0x190] sm:$0xff]
    %v2329 = vld [vmem:[%s7 + $0x198] sm:$0xff]
    %v2330 = vld [vmem:[%s7 + $0x1a0] sm:$0xf]
    %v2331 = vld [vmem:[%s7 + $0x1a4] sm:$0xff]
    %v2332 = vld [vmem:[%s7 + $0x1ac] sm:$0xff]
    %v2333 = vld [vmem:[%s7 + $0x1b4] sm:$0xff]
    %v2334 = vld [vmem:[%s7 + $0x1bc] sm:$0xf]
    %v2335 = vld [vmem:[%s7 + $0x1c0] sm:$0xff]
    %v2336 = vld [vmem:[%s7 + $0x1c8] sm:$0xff]
    %v2337 = vld [vmem:[%s7 + $0x1d0] sm:$0xff]
    %v2338 = vld [vmem:[%s7 + $0x1d8] sm:$0xf]
    %v2339 = vld [vmem:[%s7 + $0x1dc] sm:$0xff]
    %v2340 = vld [vmem:[%s7 + $0x1e4] sm:$0xff]
    %v2341 = vld [vmem:[%s7 + $0x1ec] sm:$0xff]
    %v2342 = vld [vmem:[%s7 + $0x1f4] sm:$0xf]
    %v2343 = vld [vmem:[%s7 + $0x1f8] sm:$0xff]
    %v2344 = vld [vmem:[%s7 + $0x200] sm:$0xff]
    %v2345 = vld [vmem:[%s7 + $0x208] sm:$0xff]
    %v2346 = vld [vmem:[%s7 + $0x210] sm:$0xf]
    %v2347 = vld [vmem:[%s7 + $0x214] sm:$0xff]
    %v2348 = vld [vmem:[%s7 + $0x21c] sm:$0xff]
    %v2349 = vld [vmem:[%s7 + $0x224] sm:$0xff]
    %v2350 = vld [vmem:[%s7 + $0x22c] sm:$0xf]
    %v2351 = vld [vmem:[%s7 + $0x230] sm:$0xff]
    %v2352 = vld [vmem:[%s7 + $0x238] sm:$0xff]
    %v2353 = vld [vmem:[%s7 + $0x240] sm:$0xff]
    %v2354 = vld [vmem:[%s7 + $0x248] sm:$0xf]
    %v2355 = vld [vmem:[%s7 + $0x24c] sm:$0xff]
    %v2356 = vld [vmem:[%s7 + $0x254] sm:$0xff]
    %v2357 = vld [vmem:[%s7 + $0x25c] sm:$0xff]
    %v2358 = vld [vmem:[%s7 + $0x264] sm:$0xf]
    %v2359 = vld [vmem:[%s7 + $0x268] sm:$0xff]
    %v2360 = vld [vmem:[%s7 + $0x270] sm:$0xff]
    %v2361 = vld [vmem:[%s7 + $0x278] sm:$0xff]
    %v2362 = vld [vmem:[%s7 + $0x280] sm:$0xf]
    %v2363 = vld [vmem:[%s7 + $0x284] sm:$0xff]
    %v2364 = vld [vmem:[%s7 + $0x28c] sm:$0xff]
    %v2365 = vld [vmem:[%s7 + $0x294] sm:$0xff]
    %v2366 = vld [vmem:[%s7 + $0x29c] sm:$0xf]
    %v2367 = vld [vmem:[%s7 + $0x2a0] sm:$0xff]
    %v2368 = vld [vmem:[%s7 + $0x2a8] sm:$0xff]
    %v2369 = vld [vmem:[%s7 + $0x2b0] sm:$0xff]
    %v2370 = vld [vmem:[%s7 + $0x2b8] sm:$0xf]
    %v2371 = vld [vmem:[%s7 + $0x2bc] sm:$0xff]
    %v2372 = vld [vmem:[%s7 + $0x2c4] sm:$0xff]
    %v2373 = vld [vmem:[%s7 + $0x2cc] sm:$0xff]
    %v2374 = vld [vmem:[%s7 + $0x2d4] sm:$0xf]
    %v2375 = vld [vmem:[%s7 + $0x2d8] sm:$0xff]
    %v2376 = vld [vmem:[%s7 + $0x2e0] sm:$0xff]
    %v2377 = vld [vmem:[%s7 + $0x2e8] sm:$0xff]
    %v2378 = vld [vmem:[%s7 + $0x2f0] sm:$0xf]
    %v2379 = vld [vmem:[%s7 + $0x2f4] sm:$0xff]
    %v2380 = vld [vmem:[%s7 + $0x2fc] sm:$0xff]
    %v2381 = vld [vmem:[%s7 + $0x304] sm:$0xff]
    %v2382 = vld [vmem:[%s7 + $0x30c] sm:$0xf]
    %v2383 = vld [vmem:[%s7 + $0x310] sm:$0xff]
    %v2384 = vld [vmem:[%s7 + $0x318] sm:$0xff]
    %v2385 = vld [vmem:[%s7 + $0x320] sm:$0xff]
    %v2386 = vld [vmem:[%s7 + $0x328] sm:$0xf]
    %v2387 = vld [vmem:[%s7 + $0x32c] sm:$0xff]
    %v2388 = vld [vmem:[%s7 + $0x334] sm:$0xff]
    %v2389 = vld [vmem:[%s7 + $0x33c] sm:$0xff]
    %v2390 = vld [vmem:[%s7 + $0x344] sm:$0xf]
    %v2391 = vld [vmem:[%s7 + $0x348] sm:$0xff]
    %v2392 = vld [vmem:[%s7 + $0x350] sm:$0xff]
    %v2393 = vld [vmem:[%s7 + $0x358] sm:$0xff]
    %v2394 = vld [vmem:[%s7 + $0x360] sm:$0xf]
    %v2395 = vld [vmem:[%s7 + $0x364] sm:$0xff]
    %v2396 = vld [vmem:[%s7 + $0x36c] sm:$0xff]
    %v2397 = vld [vmem:[%s7 + $0x374] sm:$0xff]
    %v2398 = vld [vmem:[%s7 + $0x37c] sm:$0xf]
    %v2399 = vld [vmem:[%s7 + $0x380] sm:$0xff]
    %v2400 = vld [vmem:[%s7 + $0x388] sm:$0xff]
    %v2401 = vld [vmem:[%s7 + $0x390] sm:$0xff]
    %v2402 = vld [vmem:[%s7 + $0x398] sm:$0xf]
    %v2403 = vld [vmem:[%s7 + $0x39c] sm:$0xff]
    %v2404 = vld [vmem:[%s7 + $0x3a4] sm:$0xff]
    %v2405 = vld [vmem:[%s7 + $0x3ac] sm:$0xff]
    %v2406 = vld [vmem:[%s7 + $0x3b4] sm:$0xf]
    %v2407 = vld [vmem:[%s7 + $0x3b8] sm:$0xff]
    %v2408 = vld [vmem:[%s7 + $0x3c0] sm:$0xff]
    %v2409 = vld [vmem:[%s7 + $0x3c8] sm:$0xff]
    %v2410 = vld [vmem:[%s7 + $0x3d0] sm:$0xf]
    %v2411 = vld [vmem:[%s7 + $0x3d4] sm:$0xff]
    %v2412 = vld [vmem:[%s7 + $0x3dc] sm:$0xff]
    %v2413 = vld [vmem:[%s7 + $0x3e4] sm:$0xff]
    %v2414 = vld [vmem:[%s7 + $0x3ec] sm:$0xf]
    %v2415 = vld [vmem:[%s7 + $0x3f0] sm:$0xff]
    %v2416 = vld [vmem:[%s7 + $0x3f8] sm:$0xff]
    %v2417 = vld [vmem:[%s7 + $0x400] sm:$0xff]
    %v2418 = vld [vmem:[%s7 + $0x408] sm:$0xf]
    %v2419 = vld [vmem:[%s7 + $0x40c] sm:$0xff]
    %v2420 = vld [vmem:[%s7 + $0x414] sm:$0xff]
    %v2421 = vld [vmem:[%s7 + $0x41c] sm:$0xff]
    %v2422 = vld [vmem:[%s7 + $0x424] sm:$0xf]
    %v2423 = vld [vmem:[%s7 + $0x428] sm:$0xff]
    %v2424 = vld [vmem:[%s7 + $0x430] sm:$0xff]
    %v2425 = vld [vmem:[%s7 + $0x438] sm:$0xff]
    %v2426 = vld [vmem:[%s7 + $0x440] sm:$0xf]
    %v2427 = vld [vmem:[%s7 + $0x444] sm:$0xff]
    %v2428 = vld [vmem:[%s7 + $0x44c] sm:$0xff]
    %v2429 = vld [vmem:[%s7 + $0x454] sm:$0xff]
    %v2430 = vld [vmem:[%s7 + $0x45c] sm:$0xf]
    %v2431 = vld [vmem:[%s7 + $0x460] sm:$0xff]
    %v2432 = vld [vmem:[%s7 + $0x468] sm:$0xff]
    %v2433 = vld [vmem:[%s7 + $0x470] sm:$0xff]
    %v2434 = vld [vmem:[%s7 + $0x478] sm:$0xf]
    %v2435 = vld [vmem:[%s7 + $0x47c] sm:$0xff]
    %v2436 = vld [vmem:[%s7 + $0x484] sm:$0xff]
    %v2437 = vld [vmem:[%s7 + $0x48c] sm:$0xff]
    %v2438 = vld [vmem:[%s7 + $0x494] sm:$0xf]
    %v2439 = vld [vmem:[%s7 + $0x498] sm:$0xff]
    %v2440 = vld [vmem:[%s7 + $0x4a0] sm:$0xff]
    %v2441 = vld [vmem:[%s7 + $0x4a8] sm:$0xff]
    %v2442 = vld [vmem:[%s7 + $0x4b0] sm:$0xf]
    %v2443 = vld [vmem:[%s7 + $0x4b4] sm:$0xff]
    %v2444 = vld [vmem:[%s7 + $0x4bc] sm:$0xff]
    %v2445 = vld [vmem:[%s7 + $0x4c4] sm:$0xff]
    %v2446 = vld [vmem:[%s7 + $0x4cc] sm:$0xf]
    %v2447 = vld [vmem:[%s7 + $0x4d0] sm:$0xff]
    %v2448 = vld [vmem:[%s7 + $0x4d8] sm:$0xff]
    %v2449 = vld [vmem:[%s7 + $0x4e0] sm:$0xff]
    %v2450 = vld [vmem:[%s7 + $0x4e8] sm:$0xf]
    %v2451 = vld [vmem:[%s7 + $0x4ec] sm:$0xff]
    %v2452 = vld [vmem:[%s7 + $0x4f4] sm:$0xff]
    %v2453 = vld [vmem:[%s7 + $0x4fc] sm:$0xff]
    %v2454 = vld [vmem:[%s7 + $0x504] sm:$0xf]
    %v2455 = vld [vmem:[%s7 + $0x508] sm:$0xff]
    %v2456 = vld [vmem:[%s7 + $0x510] sm:$0xff]
    %v2457 = vld [vmem:[%s7 + $0x518] sm:$0xff]
    %v2458 = vld [vmem:[%s7 + $0x520] sm:$0xf]
    %v2459 = vld [vmem:[%s7 + $0x524] sm:$0xff]
    %v2460 = vld [vmem:[%s7 + $0x52c] sm:$0xff]
    %v2461 = vld [vmem:[%s7 + $0x534] sm:$0xff]
    %v2462 = vld [vmem:[%s7 + $0x53c] sm:$0xf]
    %v2463 = vld [vmem:[%s7 + $0x540] sm:$0xff]
    %v2464 = vld [vmem:[%s7 + $0x548] sm:$0xff]
    %v2465 = vld [vmem:[%s7 + $0x550] sm:$0xff]
    %v2466 = vld [vmem:[%s7 + $0x558] sm:$0xf]
    %v2467 = vld [vmem:[%s7 + $0x55c] sm:$0xff]
    %v2468 = vld [vmem:[%s7 + $0x564] sm:$0xff]
    %v2469 = vld [vmem:[%s7 + $0x56c] sm:$0xff]
    %v2470 = vld [vmem:[%s7 + $0x574] sm:$0xf]
    %v2471 = vld [vmem:[%s7 + $0x578] sm:$0xff]
    %v2472 = vld [vmem:[%s7 + $0x580] sm:$0xff]
    %v2473 = vld [vmem:[%s7 + $0x588] sm:$0xff]
    %v2474 = vld [vmem:[%s7 + $0x590] sm:$0xf]
    %v2475 = vld [vmem:[%s7 + $0x594] sm:$0xff]
    %v2476 = vld [vmem:[%s7 + $0x59c] sm:$0xff]
    %v2477 = vld [vmem:[%s7 + $0x5a4] sm:$0xff]
    %v2478 = vld [vmem:[%s7 + $0x5ac] sm:$0xf]
    %v2479 = vld [vmem:[%s7 + $0x5b0] sm:$0xff]
    %v2480 = vld [vmem:[%s7 + $0x5b8] sm:$0xff]
    %v2481 = vld [vmem:[%s7 + $0x5c0] sm:$0xff]
    %v2482 = vld [vmem:[%s7 + $0x5c8] sm:$0xf]
    %v2483 = vld [vmem:[%s7 + $0x5cc] sm:$0xff]
    %v2484 = vld [vmem:[%s7 + $0x5d4] sm:$0xff]
    %v2485 = vld [vmem:[%s7 + $0x5dc] sm:$0xff]
    %v2486 = vld [vmem:[%s7 + $0x5e4] sm:$0xf]
    %v2487 = vld [vmem:[%s7 + $0x5e8] sm:$0xff]
    %v2488 = vld [vmem:[%s7 + $0x5f0] sm:$0xff]
    %v2489 = vld [vmem:[%s7 + $0x5f8] sm:$0xff]
    %v2490 = vld [vmem:[%s7 + $0x600] sm:$0xf]
    %v2491 = vld [vmem:[%s7 + $0x604] sm:$0xff]
    %v2492 = vld [vmem:[%s7 + $0x60c] sm:$0xff]
    %v2493 = vld [vmem:[%s7 + $0x614] sm:$0xff]
    %v2494 = vld [vmem:[%s7 + $0x61c] sm:$0xf]
    %v2495 = vld [vmem:[%s7 + $0x620] sm:$0xff]
    %v2496 = vld [vmem:[%s7 + $0x628] sm:$0xff]
    %v2497 = vld [vmem:[%s7 + $0x630] sm:$0xff]
    %v2498 = vld [vmem:[%s7 + $0x638] sm:$0xf]
    %v2499 = vld [vmem:[%s7 + $0x63c] sm:$0xff]
    %v2500 = vld [vmem:[%s7 + $0x644] sm:$0xff]
    %v2501 = vld [vmem:[%s7 + $0x64c] sm:$0xff]
    %v2502 = vld [vmem:[%s7 + $0x654] sm:$0xf]
    %v2503 = vld [vmem:[%s7 + $0x658] sm:$0xff]
    %v2504 = vld [vmem:[%s7 + $0x660] sm:$0xff]
    %v2505 = vld [vmem:[%s7 + $0x668] sm:$0xff]
    %v2506 = vld [vmem:[%s7 + $0x670] sm:$0xf]
    %v2507 = vld [vmem:[%s7 + $0x674] sm:$0xff]
    %v2508 = vld [vmem:[%s7 + $0x67c] sm:$0xff]
    %v2509 = vld [vmem:[%s7 + $0x684] sm:$0xff]
    %v2510 = vld [vmem:[%s7 + $0x68c] sm:$0xf]
    %v2511 = vld [vmem:[%s7 + $0x690] sm:$0xff]
    %v2512 = vld [vmem:[%s7 + $0x698] sm:$0xff]
    %v2513 = vld [vmem:[%s7 + $0x6a0] sm:$0xff]
    %v2514 = vld [vmem:[%s7 + $0x6a8] sm:$0xf]
    %v2515 = vld [vmem:[%s7 + $0x6ac] sm:$0xff]
    %v2516 = vld [vmem:[%s7 + $0x6b4] sm:$0xff]
    %v2517 = vld [vmem:[%s7 + $0x6bc] sm:$0xff]
    %v2518 = vld [vmem:[%s7 + $0x6c4] sm:$0xf]
    %v2519 = vld [vmem:[%s7 + $0x6c8] sm:$0xff]
    %v2520 = vld [vmem:[%s7 + $0x6d0] sm:$0xff]
    %v2521 = vld [vmem:[%s7 + $0x6d8] sm:$0xff]
    %v2522 = vld [vmem:[%s7 + $0x6e0] sm:$0xf]
    %v2523 = vld [vmem:[%s7 + $0x6e4] sm:$0xff]
    %v2524 = vld [vmem:[%s7 + $0x6ec] sm:$0xff]
    %v2525 = vld [vmem:[%s7 + $0x6f4] sm:$0xff]
    %v2526 = vld [vmem:[%s7 + $0x6fc] sm:$0xf]
    %v2527 = vld [vmem:[%s8] sm:$0x7f]
    %v2529 = vlaneseq
    %v2530 = vshrl.u32 %v2529, 7
    %v2531 = vsub.s32 0, %v2530
    %v2532 = vrot.slane %v2527, %v2531
    %v2533 = vlaneseq
    %v2534 = vshrl.u32 %v2533, 7
    %v2535 = vsub.s32 1, %v2534
    %v2536 = vrot.slane %v2527, %v2535
    %v2537 = vlaneseq
    %v2538 = vshrl.u32 %v2537, 7
    %v2539 = vsub.s32 2, %v2538
    %v2540 = vrot.slane %v2527, %v2539
    %v2541 = vlaneseq
    %v2542 = vshrl.u32 %v2541, 7
    %v2543 = vsub.s32 3, %v2542
    %v2544 = vrot.slane %v2527, %v2543
    %v2545 = vlaneseq
    %v2546 = vshrl.u32 %v2545, 7
    %v2547 = vsub.s32 4, %v2546
    %v2548 = vrot.slane %v2527, %v2547
    %v2549 = vlaneseq
    %v2550 = vshrl.u32 %v2549, 7
    %v2551 = vsub.s32 5, %v2550
    %v2552 = vrot.slane %v2527, %v2551
    %v2553 = vlaneseq
    %v2554 = vshrl.u32 %v2553, 7
    %v2555 = vsub.s32 6, %v2554
    %v2556 = vrot.slane %v2527, %v2555
    %v2820 = vunpack.c.l.b16 %v2271
    %v2821 = vunpack.c.h.b16 %v2271
    %v2822 = vunpack.c.l.b16 %v2272
    %v2823 = vunpack.c.h.b16 %v2272
    %v2824 = vunpack.c.l.b16 %v2273
    %v2825 = vunpack.c.h.b16 %v2273
    %v2826 = vunpack.c.l.b16 %v2274
    %v2827 = vunpack.c.l.b16 %v2275
    %v2828 = vunpack.c.h.b16 %v2275
    %v2829 = vunpack.c.l.b16 %v2276
    %v2830 = vunpack.c.h.b16 %v2276
    %v2831 = vunpack.c.l.b16 %v2277
    %v2832 = vunpack.c.h.b16 %v2277
    %v2833 = vunpack.c.l.b16 %v2278
    %v2834 = vunpack.c.l.b16 %v2279
    %v2835 = vunpack.c.h.b16 %v2279
    %v2836 = vunpack.c.l.b16 %v2280
    %v2837 = vunpack.c.h.b16 %v2280
    %v2838 = vunpack.c.l.b16 %v2281
    %v2839 = vunpack.c.h.b16 %v2281
    %v2840 = vunpack.c.l.b16 %v2282
    %v2841 = vunpack.c.l.b16 %v2283
    %v2842 = vunpack.c.h.b16 %v2283
    %v2843 = vunpack.c.l.b16 %v2284
    %v2844 = vunpack.c.h.b16 %v2284
    %v2845 = vunpack.c.l.b16 %v2285
    %v2846 = vunpack.c.h.b16 %v2285
    %v2847 = vunpack.c.l.b16 %v2286
    %v2848 = vunpack.c.l.b16 %v2287
    %v2849 = vunpack.c.h.b16 %v2287
    %v2850 = vunpack.c.l.b16 %v2288
    %v2851 = vunpack.c.h.b16 %v2288
    %v2852 = vunpack.c.l.b16 %v2289
    %v2853 = vunpack.c.h.b16 %v2289
    %v2854 = vunpack.c.l.b16 %v2290
    %v2855 = vunpack.c.l.b16 %v2291
    %v2856 = vunpack.c.h.b16 %v2291
    %v2857 = vunpack.c.l.b16 %v2292
    %v2858 = vunpack.c.h.b16 %v2292
    %v2859 = vunpack.c.l.b16 %v2293
    %v2860 = vunpack.c.h.b16 %v2293
    %v2861 = vunpack.c.l.b16 %v2294
    %v2862 = vunpack.c.l.b16 %v2295
    %v2863 = vunpack.c.h.b16 %v2295
    %v2864 = vunpack.c.l.b16 %v2296
    %v2865 = vunpack.c.h.b16 %v2296
    %v2866 = vunpack.c.l.b16 %v2297
    %v2867 = vunpack.c.h.b16 %v2297
    %v2868 = vunpack.c.l.b16 %v2298
    %v2869 = vunpack.c.l.b16 %v2299
    %v2870 = vunpack.c.h.b16 %v2299
    %v2871 = vunpack.c.l.b16 %v2300
    %v2872 = vunpack.c.h.b16 %v2300
    %v2873 = vunpack.c.l.b16 %v2301
    %v2874 = vunpack.c.h.b16 %v2301
    %v2875 = vunpack.c.l.b16 %v2302
    %v2876 = vunpack.c.l.b16 %v2303
    %v2877 = vunpack.c.h.b16 %v2303
    %v2878 = vunpack.c.l.b16 %v2304
    %v2879 = vunpack.c.h.b16 %v2304
    %v2880 = vunpack.c.l.b16 %v2305
    %v2881 = vunpack.c.h.b16 %v2305
    %v2882 = vunpack.c.l.b16 %v2306
    %v2883 = vunpack.c.l.b16 %v2307
    %v2884 = vunpack.c.h.b16 %v2307
    %v2885 = vunpack.c.l.b16 %v2308
    %v2886 = vunpack.c.h.b16 %v2308
    %v2887 = vunpack.c.l.b16 %v2309
    %v2888 = vunpack.c.h.b16 %v2309
    %v2889 = vunpack.c.l.b16 %v2310
    %v2890 = vunpack.c.l.b16 %v2311
    %v2891 = vunpack.c.h.b16 %v2311
    %v2892 = vunpack.c.l.b16 %v2312
    %v2893 = vunpack.c.h.b16 %v2312
    %v2894 = vunpack.c.l.b16 %v2313
    %v2895 = vunpack.c.h.b16 %v2313
    %v2896 = vunpack.c.l.b16 %v2314
    %v2897 = vunpack.c.l.b16 %v2315
    %v2898 = vunpack.c.h.b16 %v2315
    %v2899 = vunpack.c.l.b16 %v2316
    %v2900 = vunpack.c.h.b16 %v2316
    %v2901 = vunpack.c.l.b16 %v2317
    %v2902 = vunpack.c.h.b16 %v2317
    %v2903 = vunpack.c.l.b16 %v2318
    %v2904 = vunpack.c.l.b16 %v2319
    %v2905 = vunpack.c.h.b16 %v2319
    %v2906 = vunpack.c.l.b16 %v2320
    %v2907 = vunpack.c.h.b16 %v2320
    %v2908 = vunpack.c.l.b16 %v2321
    %v2909 = vunpack.c.h.b16 %v2321
    %v2910 = vunpack.c.l.b16 %v2322
    %v2911 = vunpack.c.l.b16 %v2323
    %v2912 = vunpack.c.h.b16 %v2323
    %v2913 = vunpack.c.l.b16 %v2324
    %v2914 = vunpack.c.h.b16 %v2324
    %v2915 = vunpack.c.l.b16 %v2325
    %v2916 = vunpack.c.h.b16 %v2325
    %v2917 = vunpack.c.l.b16 %v2326
    %v2918 = vunpack.c.l.b16 %v2327
    %v2919 = vunpack.c.h.b16 %v2327
    %v2920 = vunpack.c.l.b16 %v2328
    %v2921 = vunpack.c.h.b16 %v2328
    %v2922 = vunpack.c.l.b16 %v2329
    %v2923 = vunpack.c.h.b16 %v2329
    %v2924 = vunpack.c.l.b16 %v2330
    %v2925 = vunpack.c.l.b16 %v2331
    %v2926 = vunpack.c.h.b16 %v2331
    %v2927 = vunpack.c.l.b16 %v2332
    %v2928 = vunpack.c.h.b16 %v2332
    %v2929 = vunpack.c.l.b16 %v2333
    %v2930 = vunpack.c.h.b16 %v2333
    %v2931 = vunpack.c.l.b16 %v2334
    %v2932 = vunpack.c.l.b16 %v2335
    %v2933 = vunpack.c.h.b16 %v2335
    %v2934 = vunpack.c.l.b16 %v2336
    %v2935 = vunpack.c.h.b16 %v2336
    %v2936 = vunpack.c.l.b16 %v2337
    %v2937 = vunpack.c.h.b16 %v2337
    %v2938 = vunpack.c.l.b16 %v2338
    %v2939 = vunpack.c.l.b16 %v2339
    %v2940 = vunpack.c.h.b16 %v2339
    %v2941 = vunpack.c.l.b16 %v2340
    %v2942 = vunpack.c.h.b16 %v2340
    %v2943 = vunpack.c.l.b16 %v2341
    %v2944 = vunpack.c.h.b16 %v2341
    %v2945 = vunpack.c.l.b16 %v2342
    %v2946 = vunpack.c.l.b16 %v2343
    %v2947 = vunpack.c.h.b16 %v2343
    %v2948 = vunpack.c.l.b16 %v2344
    %v2949 = vunpack.c.h.b16 %v2344
    %v2950 = vunpack.c.l.b16 %v2345
    %v2951 = vunpack.c.h.b16 %v2345
    %v2952 = vunpack.c.l.b16 %v2346
    %v2953 = vunpack.c.l.b16 %v2347
    %v2954 = vunpack.c.h.b16 %v2347
    %v2955 = vunpack.c.l.b16 %v2348
    %v2956 = vunpack.c.h.b16 %v2348
    %v2957 = vunpack.c.l.b16 %v2349
    %v2958 = vunpack.c.h.b16 %v2349
    %v2959 = vunpack.c.l.b16 %v2350
    %v2960 = vunpack.c.l.b16 %v2351
    %v2961 = vunpack.c.h.b16 %v2351
    %v2962 = vunpack.c.l.b16 %v2352
    %v2963 = vunpack.c.h.b16 %v2352
    %v2964 = vunpack.c.l.b16 %v2353
    %v2965 = vunpack.c.h.b16 %v2353
    %v2966 = vunpack.c.l.b16 %v2354
    %v2967 = vunpack.c.l.b16 %v2355
    %v2968 = vunpack.c.h.b16 %v2355
    %v2969 = vunpack.c.l.b16 %v2356
    %v2970 = vunpack.c.h.b16 %v2356
    %v2971 = vunpack.c.l.b16 %v2357
    %v2972 = vunpack.c.h.b16 %v2357
    %v2973 = vunpack.c.l.b16 %v2358
    %v2974 = vunpack.c.l.b16 %v2359
    %v2975 = vunpack.c.h.b16 %v2359
    %v2976 = vunpack.c.l.b16 %v2360
    %v2977 = vunpack.c.h.b16 %v2360
    %v2978 = vunpack.c.l.b16 %v2361
    %v2979 = vunpack.c.h.b16 %v2361
    %v2980 = vunpack.c.l.b16 %v2362
    %v2981 = vunpack.c.l.b16 %v2363
    %v2982 = vunpack.c.h.b16 %v2363
    %v2983 = vunpack.c.l.b16 %v2364
    %v2984 = vunpack.c.h.b16 %v2364
    %v2985 = vunpack.c.l.b16 %v2365
    %v2986 = vunpack.c.h.b16 %v2365
    %v2987 = vunpack.c.l.b16 %v2366
    %v2988 = vunpack.c.l.b16 %v2367
    %v2989 = vunpack.c.h.b16 %v2367
    %v2990 = vunpack.c.l.b16 %v2368
    %v2991 = vunpack.c.h.b16 %v2368
    %v2992 = vunpack.c.l.b16 %v2369
    %v2993 = vunpack.c.h.b16 %v2369
    %v2994 = vunpack.c.l.b16 %v2370
    %v2995 = vunpack.c.l.b16 %v2371
    %v2996 = vunpack.c.h.b16 %v2371
    %v2997 = vunpack.c.l.b16 %v2372
    %v2998 = vunpack.c.h.b16 %v2372
    %v2999 = vunpack.c.l.b16 %v2373
    %v3000 = vunpack.c.h.b16 %v2373
    %v3001 = vunpack.c.l.b16 %v2374
    %v3002 = vunpack.c.l.b16 %v2375
    %v3003 = vunpack.c.h.b16 %v2375
    %v3004 = vunpack.c.l.b16 %v2376
    %v3005 = vunpack.c.h.b16 %v2376
    %v3006 = vunpack.c.l.b16 %v2377
    %v3007 = vunpack.c.h.b16 %v2377
    %v3008 = vunpack.c.l.b16 %v2378
    %v3009 = vunpack.c.l.b16 %v2379
    %v3010 = vunpack.c.h.b16 %v2379
    %v3011 = vunpack.c.l.b16 %v2380
    %v3012 = vunpack.c.h.b16 %v2380
    %v3013 = vunpack.c.l.b16 %v2381
    %v3014 = vunpack.c.h.b16 %v2381
    %v3015 = vunpack.c.l.b16 %v2382
    %v3016 = vunpack.c.l.b16 %v2383
    %v3017 = vunpack.c.h.b16 %v2383
    %v3018 = vunpack.c.l.b16 %v2384
    %v3019 = vunpack.c.h.b16 %v2384
    %v3020 = vunpack.c.l.b16 %v2385
    %v3021 = vunpack.c.h.b16 %v2385
    %v3022 = vunpack.c.l.b16 %v2386
    %v3023 = vunpack.c.l.b16 %v2387
    %v3024 = vunpack.c.h.b16 %v2387
    %v3025 = vunpack.c.l.b16 %v2388
    %v3026 = vunpack.c.h.b16 %v2388
    %v3027 = vunpack.c.l.b16 %v2389
    %v3028 = vunpack.c.h.b16 %v2389
    %v3029 = vunpack.c.l.b16 %v2390
    %v3030 = vunpack.c.l.b16 %v2391
    %v3031 = vunpack.c.h.b16 %v2391
    %v3032 = vunpack.c.l.b16 %v2392
    %v3033 = vunpack.c.h.b16 %v2392
    %v3034 = vunpack.c.l.b16 %v2393
    %v3035 = vunpack.c.h.b16 %v2393
    %v3036 = vunpack.c.l.b16 %v2394
    %v3037 = vunpack.c.l.b16 %v2395
    %v3038 = vunpack.c.h.b16 %v2395
    %v3039 = vunpack.c.l.b16 %v2396
    %v3040 = vunpack.c.h.b16 %v2396
    %v3041 = vunpack.c.l.b16 %v2397
    %v3042 = vunpack.c.h.b16 %v2397
    %v3043 = vunpack.c.l.b16 %v2398
    %v3044 = vunpack.c.l.b16 %v2399
    %v3045 = vunpack.c.h.b16 %v2399
    %v3046 = vunpack.c.l.b16 %v2400
    %v3047 = vunpack.c.h.b16 %v2400
    %v3048 = vunpack.c.l.b16 %v2401
    %v3049 = vunpack.c.h.b16 %v2401
    %v3050 = vunpack.c.l.b16 %v2402
    %v3051 = vunpack.c.l.b16 %v2403
    %v3052 = vunpack.c.h.b16 %v2403
    %v3053 = vunpack.c.l.b16 %v2404
    %v3054 = vunpack.c.h.b16 %v2404
    %v3055 = vunpack.c.l.b16 %v2405
    %v3056 = vunpack.c.h.b16 %v2405
    %v3057 = vunpack.c.l.b16 %v2406
    %v3058 = vunpack.c.l.b16 %v2407
    %v3059 = vunpack.c.h.b16 %v2407
    %v3060 = vunpack.c.l.b16 %v2408
    %v3061 = vunpack.c.h.b16 %v2408
    %v3062 = vunpack.c.l.b16 %v2409
    %v3063 = vunpack.c.h.b16 %v2409
    %v3064 = vunpack.c.l.b16 %v2410
    %v3065 = vunpack.c.l.b16 %v2411
    %v3066 = vunpack.c.h.b16 %v2411
    %v3067 = vunpack.c.l.b16 %v2412
    %v3068 = vunpack.c.h.b16 %v2412
    %v3069 = vunpack.c.l.b16 %v2413
    %v3070 = vunpack.c.h.b16 %v2413
    %v3071 = vunpack.c.l.b16 %v2414
    %v3072 = vunpack.c.l.b16 %v2415
    %v3073 = vunpack.c.h.b16 %v2415
    %v3074 = vunpack.c.l.b16 %v2416
    %v3075 = vunpack.c.h.b16 %v2416
    %v3076 = vunpack.c.l.b16 %v2417
    %v3077 = vunpack.c.h.b16 %v2417
    %v3078 = vunpack.c.l.b16 %v2418
    %v3079 = vunpack.c.l.b16 %v2419
    %v3080 = vunpack.c.h.b16 %v2419
    %v3081 = vunpack.c.l.b16 %v2420
    %v3082 = vunpack.c.h.b16 %v2420
    %v3083 = vunpack.c.l.b16 %v2421
    %v3084 = vunpack.c.h.b16 %v2421
    %v3085 = vunpack.c.l.b16 %v2422
    %v3086 = vunpack.c.l.b16 %v2423
    %v3087 = vunpack.c.h.b16 %v2423
    %v3088 = vunpack.c.l.b16 %v2424
    %v3089 = vunpack.c.h.b16 %v2424
    %v3090 = vunpack.c.l.b16 %v2425
    %v3091 = vunpack.c.h.b16 %v2425
    %v3092 = vunpack.c.l.b16 %v2426
    %v3093 = vunpack.c.l.b16 %v2427
    %v3094 = vunpack.c.h.b16 %v2427
    %v3095 = vunpack.c.l.b16 %v2428
    %v3096 = vunpack.c.h.b16 %v2428
    %v3097 = vunpack.c.l.b16 %v2429
    %v3098 = vunpack.c.h.b16 %v2429
    %v3099 = vunpack.c.l.b16 %v2430
    %v3100 = vunpack.c.l.b16 %v2431
    %v3101 = vunpack.c.h.b16 %v2431
    %v3102 = vunpack.c.l.b16 %v2432
    %v3103 = vunpack.c.h.b16 %v2432
    %v3104 = vunpack.c.l.b16 %v2433
    %v3105 = vunpack.c.h.b16 %v2433
    %v3106 = vunpack.c.l.b16 %v2434
    %v3107 = vunpack.c.l.b16 %v2435
    %v3108 = vunpack.c.h.b16 %v2435
    %v3109 = vunpack.c.l.b16 %v2436
    %v3110 = vunpack.c.h.b16 %v2436
    %v3111 = vunpack.c.l.b16 %v2437
    %v3112 = vunpack.c.h.b16 %v2437
    %v3113 = vunpack.c.l.b16 %v2438
    %v3114 = vunpack.c.l.b16 %v2439
    %v3115 = vunpack.c.h.b16 %v2439
    %v3116 = vunpack.c.l.b16 %v2440
    %v3117 = vunpack.c.h.b16 %v2440
    %v3118 = vunpack.c.l.b16 %v2441
    %v3119 = vunpack.c.h.b16 %v2441
    %v3120 = vunpack.c.l.b16 %v2442
    %v3121 = vunpack.c.l.b16 %v2443
    %v3122 = vunpack.c.h.b16 %v2443
    %v3123 = vunpack.c.l.b16 %v2444
    %v3124 = vunpack.c.h.b16 %v2444
    %v3125 = vunpack.c.l.b16 %v2445
    %v3126 = vunpack.c.h.b16 %v2445
    %v3127 = vunpack.c.l.b16 %v2446
    %v3128 = vunpack.c.l.b16 %v2447
    %v3129 = vunpack.c.h.b16 %v2447
    %v3130 = vunpack.c.l.b16 %v2448
    %v3131 = vunpack.c.h.b16 %v2448
    %v3132 = vunpack.c.l.b16 %v2449
    %v3133 = vunpack.c.h.b16 %v2449
    %v3134 = vunpack.c.l.b16 %v2450
    %v3135 = vunpack.c.l.b16 %v2451
    %v3136 = vunpack.c.h.b16 %v2451
    %v3137 = vunpack.c.l.b16 %v2452
    %v3138 = vunpack.c.h.b16 %v2452
    %v3139 = vunpack.c.l.b16 %v2453
    %v3140 = vunpack.c.h.b16 %v2453
    %v3141 = vunpack.c.l.b16 %v2454
    %v3142 = vunpack.c.l.b16 %v2455
    %v3143 = vunpack.c.h.b16 %v2455
    %v3144 = vunpack.c.l.b16 %v2456
    %v3145 = vunpack.c.h.b16 %v2456
    %v3146 = vunpack.c.l.b16 %v2457
    %v3147 = vunpack.c.h.b16 %v2457
    %v3148 = vunpack.c.l.b16 %v2458
    %v3149 = vunpack.c.l.b16 %v2459
    %v3150 = vunpack.c.h.b16 %v2459
    %v3151 = vunpack.c.l.b16 %v2460
    %v3152 = vunpack.c.h.b16 %v2460
    %v3153 = vunpack.c.l.b16 %v2461
    %v3154 = vunpack.c.h.b16 %v2461
    %v3155 = vunpack.c.l.b16 %v2462
    %v3156 = vunpack.c.l.b16 %v2463
    %v3157 = vunpack.c.h.b16 %v2463
    %v3158 = vunpack.c.l.b16 %v2464
    %v3159 = vunpack.c.h.b16 %v2464
    %v3160 = vunpack.c.l.b16 %v2465
    %v3161 = vunpack.c.h.b16 %v2465
    %v3162 = vunpack.c.l.b16 %v2466
    %v3163 = vunpack.c.l.b16 %v2467
    %v3164 = vunpack.c.h.b16 %v2467
    %v3165 = vunpack.c.l.b16 %v2468
    %v3166 = vunpack.c.h.b16 %v2468
    %v3167 = vunpack.c.l.b16 %v2469
    %v3168 = vunpack.c.h.b16 %v2469
    %v3169 = vunpack.c.l.b16 %v2470
    %v3170 = vunpack.c.l.b16 %v2471
    %v3171 = vunpack.c.h.b16 %v2471
    %v3172 = vunpack.c.l.b16 %v2472
    %v3173 = vunpack.c.h.b16 %v2472
    %v3174 = vunpack.c.l.b16 %v2473
    %v3175 = vunpack.c.h.b16 %v2473
    %v3176 = vunpack.c.l.b16 %v2474
    %v3177 = vunpack.c.l.b16 %v2475
    %v3178 = vunpack.c.h.b16 %v2475
    %v3179 = vunpack.c.l.b16 %v2476
    %v3180 = vunpack.c.h.b16 %v2476
    %v3181 = vunpack.c.l.b16 %v2477
    %v3182 = vunpack.c.h.b16 %v2477
    %v3183 = vunpack.c.l.b16 %v2478
    %v3184 = vunpack.c.l.b16 %v2479
    %v3185 = vunpack.c.h.b16 %v2479
    %v3186 = vunpack.c.l.b16 %v2480
    %v3187 = vunpack.c.h.b16 %v2480
    %v3188 = vunpack.c.l.b16 %v2481
    %v3189 = vunpack.c.h.b16 %v2481
    %v3190 = vunpack.c.l.b16 %v2482
    %v3191 = vunpack.c.l.b16 %v2483
    %v3192 = vunpack.c.h.b16 %v2483
    %v3193 = vunpack.c.l.b16 %v2484
    %v3194 = vunpack.c.h.b16 %v2484
    %v3195 = vunpack.c.l.b16 %v2485
    %v3196 = vunpack.c.h.b16 %v2485
    %v3197 = vunpack.c.l.b16 %v2486
    %v3198 = vunpack.c.l.b16 %v2487
    %v3199 = vunpack.c.h.b16 %v2487
    %v3200 = vunpack.c.l.b16 %v2488
    %v3201 = vunpack.c.h.b16 %v2488
    %v3202 = vunpack.c.l.b16 %v2489
    %v3203 = vunpack.c.h.b16 %v2489
    %v3204 = vunpack.c.l.b16 %v2490
    %v3205 = vunpack.c.l.b16 %v2491
    %v3206 = vunpack.c.h.b16 %v2491
    %v3207 = vunpack.c.l.b16 %v2492
    %v3208 = vunpack.c.h.b16 %v2492
    %v3209 = vunpack.c.l.b16 %v2493
    %v3210 = vunpack.c.h.b16 %v2493
    %v3211 = vunpack.c.l.b16 %v2494
    %v3212 = vunpack.c.l.b16 %v2495
    %v3213 = vunpack.c.h.b16 %v2495
    %v3214 = vunpack.c.l.b16 %v2496
    %v3215 = vunpack.c.h.b16 %v2496
    %v3216 = vunpack.c.l.b16 %v2497
    %v3217 = vunpack.c.h.b16 %v2497
    %v3218 = vunpack.c.l.b16 %v2498
    %v3219 = vunpack.c.l.b16 %v2499
    %v3220 = vunpack.c.h.b16 %v2499
    %v3221 = vunpack.c.l.b16 %v2500
    %v3222 = vunpack.c.h.b16 %v2500
    %v3223 = vunpack.c.l.b16 %v2501
    %v3224 = vunpack.c.h.b16 %v2501
    %v3225 = vunpack.c.l.b16 %v2502
    %v3226 = vunpack.c.l.b16 %v2503
    %v3227 = vunpack.c.h.b16 %v2503
    %v3228 = vunpack.c.l.b16 %v2504
    %v3229 = vunpack.c.h.b16 %v2504
    %v3230 = vunpack.c.l.b16 %v2505
    %v3231 = vunpack.c.h.b16 %v2505
    %v3232 = vunpack.c.l.b16 %v2506
    %v3233 = vunpack.c.l.b16 %v2507
    %v3234 = vunpack.c.h.b16 %v2507
    %v3235 = vunpack.c.l.b16 %v2508
    %v3236 = vunpack.c.h.b16 %v2508
    %v3237 = vunpack.c.l.b16 %v2509
    %v3238 = vunpack.c.h.b16 %v2509
    %v3239 = vunpack.c.l.b16 %v2510
    %v3240 = vunpack.c.l.b16 %v2511
    %v3241 = vunpack.c.h.b16 %v2511
    %v3242 = vunpack.c.l.b16 %v2512
    %v3243 = vunpack.c.h.b16 %v2512
    %v3244 = vunpack.c.l.b16 %v2513
    %v3245 = vunpack.c.h.b16 %v2513
    %v3246 = vunpack.c.l.b16 %v2514
    %v3247 = vunpack.c.l.b16 %v2515
    %v3248 = vunpack.c.h.b16 %v2515
    %v3249 = vunpack.c.l.b16 %v2516
    %v3250 = vunpack.c.h.b16 %v2516
    %v3251 = vunpack.c.l.b16 %v2517
    %v3252 = vunpack.c.h.b16 %v2517
    %v3253 = vunpack.c.l.b16 %v2518
    %v3254 = vunpack.c.l.b16 %v2519
    %v3255 = vunpack.c.h.b16 %v2519
    %v3256 = vunpack.c.l.b16 %v2520
    %v3257 = vunpack.c.h.b16 %v2520
    %v3258 = vunpack.c.l.b16 %v2521
    %v3259 = vunpack.c.h.b16 %v2521
    %v3260 = vunpack.c.l.b16 %v2522
    %v3261 = vunpack.c.l.b16 %v2523
    %v3262 = vunpack.c.h.b16 %v2523
    %v3263 = vunpack.c.l.b16 %v2524
    %v3264 = vunpack.c.h.b16 %v2524
    %v3265 = vunpack.c.l.b16 %v2525
    %v3266 = vunpack.c.h.b16 %v2525
    %v3267 = vunpack.c.l.b16 %v2526
    %v3268 = vpack.c.b16 %v2827, %v2820
    %v3269 = vpack.c.b16 %v2828, %v2821
    %v3270 = vpack.c.b16 %v2829, %v2822
    %v3271 = vpack.c.b16 %v2830, %v2823
    %v3272 = vpack.c.b16 %v2831, %v2824
    %v3273 = vpack.c.b16 %v2832, %v2825
    %v3274 = vpack.c.b16 %v2833, %v2826
    %v3275 = vpack.c.b16 %v2841, %v2834
    %v3276 = vpack.c.b16 %v2842, %v2835
    %v3277 = vpack.c.b16 %v2843, %v2836
    %v3278 = vpack.c.b16 %v2844, %v2837
    %v3279 = vpack.c.b16 %v2845, %v2838
    %v3280 = vpack.c.b16 %v2846, %v2839
    %v3281 = vpack.c.b16 %v2847, %v2840
    %v3282 = vpack.c.b16 %v2855, %v2848
    %v3283 = vpack.c.b16 %v2856, %v2849
    %v3284 = vpack.c.b16 %v2857, %v2850
    %v3285 = vpack.c.b16 %v2858, %v2851
    %v3286 = vpack.c.b16 %v2859, %v2852
    %v3287 = vpack.c.b16 %v2860, %v2853
    %v3288 = vpack.c.b16 %v2861, %v2854
    %v3289 = vpack.c.b16 %v2869, %v2862
    %v3290 = vpack.c.b16 %v2870, %v2863
    %v3291 = vpack.c.b16 %v2871, %v2864
    %v3292 = vpack.c.b16 %v2872, %v2865
    %v3293 = vpack.c.b16 %v2873, %v2866
    %v3294 = vpack.c.b16 %v2874, %v2867
    %v3295 = vpack.c.b16 %v2875, %v2868
    %v3296 = vpack.c.b16 %v2883, %v2876
    %v3297 = vpack.c.b16 %v2884, %v2877
    %v3298 = vpack.c.b16 %v2885, %v2878
    %v3299 = vpack.c.b16 %v2886, %v2879
    %v3300 = vpack.c.b16 %v2887, %v2880
    %v3301 = vpack.c.b16 %v2888, %v2881
    %v3302 = vpack.c.b16 %v2889, %v2882
    %v3303 = vpack.c.b16 %v2897, %v2890
    %v3304 = vpack.c.b16 %v2898, %v2891
    %v3305 = vpack.c.b16 %v2899, %v2892
    %v3306 = vpack.c.b16 %v2900, %v2893
    %v3307 = vpack.c.b16 %v2901, %v2894
    %v3308 = vpack.c.b16 %v2902, %v2895
    %v3309 = vpack.c.b16 %v2903, %v2896
    %v3310 = vpack.c.b16 %v2911, %v2904
    %v3311 = vpack.c.b16 %v2912, %v2905
    %v3312 = vpack.c.b16 %v2913, %v2906
    %v3313 = vpack.c.b16 %v2914, %v2907
    %v3314 = vpack.c.b16 %v2915, %v2908
    %v3315 = vpack.c.b16 %v2916, %v2909
    %v3316 = vpack.c.b16 %v2917, %v2910
    %v3317 = vpack.c.b16 %v2925, %v2918
    %v3318 = vpack.c.b16 %v2926, %v2919
    %v3319 = vpack.c.b16 %v2927, %v2920
    %v3320 = vpack.c.b16 %v2928, %v2921
    %v3321 = vpack.c.b16 %v2929, %v2922
    %v3322 = vpack.c.b16 %v2930, %v2923
    %v3323 = vpack.c.b16 %v2931, %v2924
    %v3324 = vpack.c.b16 %v2939, %v2932
    %v3325 = vpack.c.b16 %v2940, %v2933
    %v3326 = vpack.c.b16 %v2941, %v2934
    %v3327 = vpack.c.b16 %v2942, %v2935
    %v3328 = vpack.c.b16 %v2943, %v2936
    %v3329 = vpack.c.b16 %v2944, %v2937
    %v3330 = vpack.c.b16 %v2945, %v2938
    %v3331 = vpack.c.b16 %v2953, %v2946
    %v3332 = vpack.c.b16 %v2954, %v2947
    %v3333 = vpack.c.b16 %v2955, %v2948
    %v3334 = vpack.c.b16 %v2956, %v2949
    %v3335 = vpack.c.b16 %v2957, %v2950
    %v3336 = vpack.c.b16 %v2958, %v2951
    %v3337 = vpack.c.b16 %v2959, %v2952
    %v3338 = vpack.c.b16 %v2967, %v2960
    %v3339 = vpack.c.b16 %v2968, %v2961
    %v3340 = vpack.c.b16 %v2969, %v2962
    %v3341 = vpack.c.b16 %v2970, %v2963
    %v3342 = vpack.c.b16 %v2971, %v2964
    %v3343 = vpack.c.b16 %v2972, %v2965
    %v3344 = vpack.c.b16 %v2973, %v2966
    %v3345 = vpack.c.b16 %v2981, %v2974
    %v3346 = vpack.c.b16 %v2982, %v2975
    %v3347 = vpack.c.b16 %v2983, %v2976
    %v3348 = vpack.c.b16 %v2984, %v2977
    %v3349 = vpack.c.b16 %v2985, %v2978
    %v3350 = vpack.c.b16 %v2986, %v2979
    %v3351 = vpack.c.b16 %v2987, %v2980
    %v3352 = vpack.c.b16 %v2995, %v2988
    %v3353 = vpack.c.b16 %v2996, %v2989
    %v3354 = vpack.c.b16 %v2997, %v2990
    %v3355 = vpack.c.b16 %v2998, %v2991
    %v3356 = vpack.c.b16 %v2999, %v2992
    %v3357 = vpack.c.b16 %v3000, %v2993
    %v3358 = vpack.c.b16 %v3001, %v2994
    %v3359 = vpack.c.b16 %v3009, %v3002
    %v3360 = vpack.c.b16 %v3010, %v3003
    %v3361 = vpack.c.b16 %v3011, %v3004
    %v3362 = vpack.c.b16 %v3012, %v3005
    %v3363 = vpack.c.b16 %v3013, %v3006
    %v3364 = vpack.c.b16 %v3014, %v3007
    %v3365 = vpack.c.b16 %v3015, %v3008
    %v3366 = vpack.c.b16 %v3023, %v3016
    %v3367 = vpack.c.b16 %v3024, %v3017
    %v3368 = vpack.c.b16 %v3025, %v3018
    %v3369 = vpack.c.b16 %v3026, %v3019
    %v3370 = vpack.c.b16 %v3027, %v3020
    %v3371 = vpack.c.b16 %v3028, %v3021
    %v3372 = vpack.c.b16 %v3029, %v3022
    %v3373 = vpack.c.b16 %v3037, %v3030
    %v3374 = vpack.c.b16 %v3038, %v3031
    %v3375 = vpack.c.b16 %v3039, %v3032
    %v3376 = vpack.c.b16 %v3040, %v3033
    %v3377 = vpack.c.b16 %v3041, %v3034
    %v3378 = vpack.c.b16 %v3042, %v3035
    %v3379 = vpack.c.b16 %v3043, %v3036
    %v3380 = vpack.c.b16 %v3051, %v3044
    %v3381 = vpack.c.b16 %v3052, %v3045
    %v3382 = vpack.c.b16 %v3053, %v3046
    %v3383 = vpack.c.b16 %v3054, %v3047
    %v3384 = vpack.c.b16 %v3055, %v3048
    %v3385 = vpack.c.b16 %v3056, %v3049
    %v3386 = vpack.c.b16 %v3057, %v3050
    %v3387 = vpack.c.b16 %v3065, %v3058
    %v3388 = vpack.c.b16 %v3066, %v3059
    %v3389 = vpack.c.b16 %v3067, %v3060
    %v3390 = vpack.c.b16 %v3068, %v3061
    %v3391 = vpack.c.b16 %v3069, %v3062
    %v3392 = vpack.c.b16 %v3070, %v3063
    %v3393 = vpack.c.b16 %v3071, %v3064
    %v3394 = vpack.c.b16 %v3079, %v3072
    %v3395 = vpack.c.b16 %v3080, %v3073
    %v3396 = vpack.c.b16 %v3081, %v3074
    %v3397 = vpack.c.b16 %v3082, %v3075
    %v3398 = vpack.c.b16 %v3083, %v3076
    %v3399 = vpack.c.b16 %v3084, %v3077
    %v3400 = vpack.c.b16 %v3085, %v3078
    %v3401 = vpack.c.b16 %v3093, %v3086
    %v3402 = vpack.c.b16 %v3094, %v3087
    %v3403 = vpack.c.b16 %v3095, %v3088
    %v3404 = vpack.c.b16 %v3096, %v3089
    %v3405 = vpack.c.b16 %v3097, %v3090
    %v3406 = vpack.c.b16 %v3098, %v3091
    %v3407 = vpack.c.b16 %v3099, %v3092
    %v3408 = vpack.c.b16 %v3107, %v3100
    %v3409 = vpack.c.b16 %v3108, %v3101
    %v3410 = vpack.c.b16 %v3109, %v3102
    %v3411 = vpack.c.b16 %v3110, %v3103
    %v3412 = vpack.c.b16 %v3111, %v3104
    %v3413 = vpack.c.b16 %v3112, %v3105
    %v3414 = vpack.c.b16 %v3113, %v3106
    %v3415 = vpack.c.b16 %v3121, %v3114
    %v3416 = vpack.c.b16 %v3122, %v3115
    %v3417 = vpack.c.b16 %v3123, %v3116
    %v3418 = vpack.c.b16 %v3124, %v3117
    %v3419 = vpack.c.b16 %v3125, %v3118
    %v3420 = vpack.c.b16 %v3126, %v3119
    %v3421 = vpack.c.b16 %v3127, %v3120
    %v3422 = vpack.c.b16 %v3135, %v3128
    %v3423 = vpack.c.b16 %v3136, %v3129
    %v3424 = vpack.c.b16 %v3137, %v3130
    %v3425 = vpack.c.b16 %v3138, %v3131
    %v3426 = vpack.c.b16 %v3139, %v3132
    %v3427 = vpack.c.b16 %v3140, %v3133
    %v3428 = vpack.c.b16 %v3141, %v3134
    %v3429 = vpack.c.b16 %v3149, %v3142
    %v3430 = vpack.c.b16 %v3150, %v3143
    %v3431 = vpack.c.b16 %v3151, %v3144
    %v3432 = vpack.c.b16 %v3152, %v3145
    %v3433 = vpack.c.b16 %v3153, %v3146
    %v3434 = vpack.c.b16 %v3154, %v3147
    %v3435 = vpack.c.b16 %v3155, %v3148
    %v3436 = vpack.c.b16 %v3163, %v3156
    %v3437 = vpack.c.b16 %v3164, %v3157
    %v3438 = vpack.c.b16 %v3165, %v3158
    %v3439 = vpack.c.b16 %v3166, %v3159
    %v3440 = vpack.c.b16 %v3167, %v3160
    %v3441 = vpack.c.b16 %v3168, %v3161
    %v3442 = vpack.c.b16 %v3169, %v3162
    %v3443 = vpack.c.b16 %v3177, %v3170
    %v3444 = vpack.c.b16 %v3178, %v3171
    %v3445 = vpack.c.b16 %v3179, %v3172
    %v3446 = vpack.c.b16 %v3180, %v3173
    %v3447 = vpack.c.b16 %v3181, %v3174
    %v3448 = vpack.c.b16 %v3182, %v3175
    %v3449 = vpack.c.b16 %v3183, %v3176
    %v3450 = vpack.c.b16 %v3191, %v3184
    %v3451 = vpack.c.b16 %v3192, %v3185
    %v3452 = vpack.c.b16 %v3193, %v3186
    %v3453 = vpack.c.b16 %v3194, %v3187
    %v3454 = vpack.c.b16 %v3195, %v3188
    %v3455 = vpack.c.b16 %v3196, %v3189
    %v3456 = vpack.c.b16 %v3197, %v3190
    %v3457 = vpack.c.b16 %v3205, %v3198
    %v3458 = vpack.c.b16 %v3206, %v3199
    %v3459 = vpack.c.b16 %v3207, %v3200
    %v3460 = vpack.c.b16 %v3208, %v3201
    %v3461 = vpack.c.b16 %v3209, %v3202
    %v3462 = vpack.c.b16 %v3210, %v3203
    %v3463 = vpack.c.b16 %v3211, %v3204
    %v3464 = vpack.c.b16 %v3219, %v3212
    %v3465 = vpack.c.b16 %v3220, %v3213
    %v3466 = vpack.c.b16 %v3221, %v3214
    %v3467 = vpack.c.b16 %v3222, %v3215
    %v3468 = vpack.c.b16 %v3223, %v3216
    %v3469 = vpack.c.b16 %v3224, %v3217
    %v3470 = vpack.c.b16 %v3225, %v3218
    %v3471 = vpack.c.b16 %v3233, %v3226
    %v3472 = vpack.c.b16 %v3234, %v3227
    %v3473 = vpack.c.b16 %v3235, %v3228
    %v3474 = vpack.c.b16 %v3236, %v3229
    %v3475 = vpack.c.b16 %v3237, %v3230
    %v3476 = vpack.c.b16 %v3238, %v3231
    %v3477 = vpack.c.b16 %v3239, %v3232
    %v3478 = vpack.c.b16 %v3247, %v3240
    %v3479 = vpack.c.b16 %v3248, %v3241
    %v3480 = vpack.c.b16 %v3249, %v3242
    %v3481 = vpack.c.b16 %v3250, %v3243
    %v3482 = vpack.c.b16 %v3251, %v3244
    %v3483 = vpack.c.b16 %v3252, %v3245
    %v3484 = vpack.c.b16 %v3253, %v3246
    %v3485 = vpack.c.b16 %v3261, %v3254
    %v3486 = vpack.c.b16 %v3262, %v3255
    %v3487 = vpack.c.b16 %v3263, %v3256
    %v3488 = vpack.c.b16 %v3264, %v3257
    %v3489 = vpack.c.b16 %v3265, %v3258
    %v3490 = vpack.c.b16 %v3266, %v3259
    %v3491 = vpack.c.b16 %v3267, %v3260
    %3716 = vmatprep.subr.bf16.mxu0 %v3318
    %3717 = vmatpush1.bf16.msra.mxu0 %v3317
    %3718 = vmatprep.subr.bf16.mxu0 %v3311
    %3719 = vmatpush1.bf16.msra.mxu0 %v3310
    %3720 = vmatprep.subr.bf16.mxu0 %v3304
    %3721 = vmatpush1.bf16.msra.mxu0 %v3303
    %3722 = vmatprep.subr.bf16.mxu0 %v3297
    %3723 = vmatpush1.bf16.msra.mxu0 %v3296
    %3724 = vmatprep.subr.bf16.mxu0 %v3290
    %3725 = vmatpush1.bf16.msra.mxu0 %v3289
    %3726 = vmatprep.subr.bf16.mxu0 %v3283
    %3727 = vmatpush1.bf16.msra.mxu0 %v3282
    %3728 = vmatprep.subr.bf16.mxu0 %v3276
    %3729 = vmatpush1.bf16.msra.mxu0 %v3275
    %3730 = vmatprep.subr.bf16.mxu0 %v3269
    %3731 = vmatpush1.bf16.msra.mxu0 %v3268
    %3732 = vmatprep.subr.bf16.mxu0 %v3374
    %3733 = vmatpush2.bf16.msra.mxu0 %v3373
    %3734 = vmatprep.subr.bf16.mxu0 %v3367
    %3735 = vmatpush2.bf16.msra.mxu0 %v3366
    %3736 = vmatprep.subr.bf16.mxu0 %v3360
    %3737 = vmatpush2.bf16.msra.mxu0 %v3359
    %3738 = vmatprep.subr.bf16.mxu0 %v3353
    %3739 = vmatpush2.bf16.msra.mxu0 %v3352
    %3740 = vmatprep.subr.bf16.mxu0 %v3346
    %3741 = vmatpush2.bf16.msra.mxu0 %v3345
    %3742 = vmatprep.subr.bf16.mxu0 %v3339
    %3743 = vmatpush2.bf16.msra.mxu0 %v3338
    %3744 = vmatprep.subr.bf16.mxu0 %v3332
    %3745 = vmatpush2.bf16.msra.mxu0 %v3331
    %3746 = vmatprep.subr.bf16.mxu0 %v3325
    %3747 = vmatpush2.bf16.msra.mxu0 %v3324
    %3748 = vmatprep.mubr.bf16.mxu0 %v2268
    %3749 = vmatmul.mubr.bf16.gmra.mxu0 %v2267
    %v3750 = vpop.f32.mrf.mxu0
    %v3751 = vadd.f32 %v2532, %v3750
    %v3752 = vpop.f32.mrf.mxu0
    %v3753 = vadd.f32 %v2536, %v3752
    %v3754 = vpop.f32.mrf.mxu0
    %v3755 = vpop.f32.mrf.mxu0
    %3756 = vdwg.mxu0
    %3757 = vmatprep.subr.bf16.mxu0 %v3430
    %3758 = vmatpush1.bf16.msra.mxu0 %v3429
    %3759 = vmatprep.subr.bf16.mxu0 %v3423
    %3760 = vmatpush1.bf16.msra.mxu0 %v3422
    %3761 = vmatprep.subr.bf16.mxu0 %v3416
    %3762 = vmatpush1.bf16.msra.mxu0 %v3415
    %3763 = vmatprep.subr.bf16.mxu0 %v3409
    %3764 = vmatpush1.bf16.msra.mxu0 %v3408
    %3765 = vmatprep.subr.bf16.mxu0 %v3402
    %3766 = vmatpush1.bf16.msra.mxu0 %v3401
    %3767 = vmatprep.subr.bf16.mxu0 %v3395
    %3768 = vmatpush1.bf16.msra.mxu0 %v3394
    %3769 = vmatprep.subr.bf16.mxu0 %v3388
    %3770 = vmatpush1.bf16.msra.mxu0 %v3387
    %3771 = vmatprep.subr.bf16.mxu0 %v3381
    %3772 = vmatpush1.bf16.msra.mxu0 %v3380
    %3773 = vmatprep.subr.bf16.mxu0 %v3486
    %3774 = vmatpush2.bf16.msra.mxu0 %v3485
    %3775 = vmatprep.subr.bf16.mxu0 %v3479
    %3776 = vmatpush2.bf16.msra.mxu0 %v3478
    %3777 = vmatprep.subr.bf16.mxu0 %v3472
    %3778 = vmatpush2.bf16.msra.mxu0 %v3471
    %3779 = vmatprep.subr.bf16.mxu0 %v3465
    %3780 = vmatpush2.bf16.msra.mxu0 %v3464
    %3781 = vmatprep.subr.bf16.mxu0 %v3458
    %3782 = vmatpush2.bf16.msra.mxu0 %v3457
    %3783 = vmatprep.subr.bf16.mxu0 %v3451
    %3784 = vmatpush2.bf16.msra.mxu0 %v3450
    %3785 = vmatprep.subr.bf16.mxu0 %v3444
    %3786 = vmatpush2.bf16.msra.mxu0 %v3443
    %3787 = vmatprep.subr.bf16.mxu0 %v3437
    %3788 = vmatpush2.bf16.msra.mxu0 %v3436
    %3789 = vmatprep.mubr.bf16.mxu0 %v2270
    %3790 = vmatmul.mubr.bf16.gmra.mxu0 %v2269
    %v3791 = vpop.f32.mrf.mxu0
    %v3792 = vadd.f32 %v3751, %v3791
    %v3793 = vpop.f32.mrf.mxu0
    %v3794 = vadd.f32 %v3753, %v3793
    %v3795 = vpop.f32.mrf.mxu0
    %v3796 = vpop.f32.mrf.mxu0
    %3797 = vdwg.mxu0
    %3798 = vmatprep.subr.bf16.mxu0 %v3320
    %3799 = vmatpush1.bf16.msra.mxu0 %v3319
    %3800 = vmatprep.subr.bf16.mxu0 %v3313
    %3801 = vmatpush1.bf16.msra.mxu0 %v3312
    %3802 = vmatprep.subr.bf16.mxu0 %v3306
    %3803 = vmatpush1.bf16.msra.mxu0 %v3305
    %3804 = vmatprep.subr.bf16.mxu0 %v3299
    %3805 = vmatpush1.bf16.msra.mxu0 %v3298
    %3806 = vmatprep.subr.bf16.mxu0 %v3292
    %3807 = vmatpush1.bf16.msra.mxu0 %v3291
    %3808 = vmatprep.subr.bf16.mxu0 %v3285
    %3809 = vmatpush1.bf16.msra.mxu0 %v3284
    %3810 = vmatprep.subr.bf16.mxu0 %v3278
    %3811 = vmatpush1.bf16.msra.mxu0 %v3277
    %3812 = vmatprep.subr.bf16.mxu0 %v3271
    %3813 = vmatpush1.bf16.msra.mxu0 %v3270
    %3814 = vmatprep.subr.bf16.mxu0 %v3376
    %3815 = vmatpush2.bf16.msra.mxu0 %v3375
    %3816 = vmatprep.subr.bf16.mxu0 %v3369
    %3817 = vmatpush2.bf16.msra.mxu0 %v3368
    %3818 = vmatprep.subr.bf16.mxu0 %v3362
    %3819 = vmatpush2.bf16.msra.mxu0 %v3361
    %3820 = vmatprep.subr.bf16.mxu0 %v3355
    %3821 = vmatpush2.bf16.msra.mxu0 %v3354
    %3822 = vmatprep.subr.bf16.mxu0 %v3348
    %3823 = vmatpush2.bf16.msra.mxu0 %v3347
    %3824 = vmatprep.subr.bf16.mxu0 %v3341
    %3825 = vmatpush2.bf16.msra.mxu0 %v3340
    %3826 = vmatprep.subr.bf16.mxu0 %v3334
    %3827 = vmatpush2.bf16.msra.mxu0 %v3333
    %3828 = vmatprep.subr.bf16.mxu0 %v3327
    %3829 = vmatpush2.bf16.msra.mxu0 %v3326
    %3830 = vmatprep.mubr.bf16.mxu0 %v2268
    %3831 = vmatmul.mubr.bf16.gmra.mxu0 %v2267
    %v3832 = vpop.f32.mrf.mxu0
    %v3833 = vadd.f32 %v2540, %v3832
    %v3834 = vpop.f32.mrf.mxu0
    %v3835 = vadd.f32 %v2544, %v3834
    %v3836 = vpop.f32.mrf.mxu0
    %v3837 = vpop.f32.mrf.mxu0
    %3838 = vdwg.mxu0
    %3839 = vmatprep.subr.bf16.mxu0 %v3432
    %3840 = vmatpush1.bf16.msra.mxu0 %v3431
    %3841 = vmatprep.subr.bf16.mxu0 %v3425
    %3842 = vmatpush1.bf16.msra.mxu0 %v3424
    %3843 = vmatprep.subr.bf16.mxu0 %v3418
    %3844 = vmatpush1.bf16.msra.mxu0 %v3417
    %3845 = vmatprep.subr.bf16.mxu0 %v3411
    %3846 = vmatpush1.bf16.msra.mxu0 %v3410
    %3847 = vmatprep.subr.bf16.mxu0 %v3404
    %3848 = vmatpush1.bf16.msra.mxu0 %v3403
    %3849 = vmatprep.subr.bf16.mxu0 %v3397
    %3850 = vmatpush1.bf16.msra.mxu0 %v3396
    %3851 = vmatprep.subr.bf16.mxu0 %v3390
    %3852 = vmatpush1.bf16.msra.mxu0 %v3389
    %3853 = vmatprep.subr.bf16.mxu0 %v3383
    %3854 = vmatpush1.bf16.msra.mxu0 %v3382
    %3855 = vmatprep.subr.bf16.mxu0 %v3488
    %3856 = vmatpush2.bf16.msra.mxu0 %v3487
    %3857 = vmatprep.subr.bf16.mxu0 %v3481
    %3858 = vmatpush2.bf16.msra.mxu0 %v3480
    %3859 = vmatprep.subr.bf16.mxu0 %v3474
    %3860 = vmatpush2.bf16.msra.mxu0 %v3473
    %3861 = vmatprep.subr.bf16.mxu0 %v3467
    %3862 = vmatpush2.bf16.msra.mxu0 %v3466
    %3863 = vmatprep.subr.bf16.mxu0 %v3460
    %3864 = vmatpush2.bf16.msra.mxu0 %v3459
    %3865 = vmatprep.subr.bf16.mxu0 %v3453
    %3866 = vmatpush2.bf16.msra.mxu0 %v3452
    %3867 = vmatprep.subr.bf16.mxu0 %v3446
    %3868 = vmatpush2.bf16.msra.mxu0 %v3445
    %3869 = vmatprep.subr.bf16.mxu0 %v3439
    %3870 = vmatpush2.bf16.msra.mxu0 %v3438
    %3871 = vmatprep.mubr.bf16.mxu0 %v2270
    %3872 = vmatmul.mubr.bf16.gmra.mxu0 %v2269
    %v3873 = vpop.f32.mrf.mxu0
    %v3874 = vadd.f32 %v3833, %v3873
    %v3875 = vpop.f32.mrf.mxu0
    %v3876 = vadd.f32 %v3835, %v3875
    %v3877 = vpop.f32.mrf.mxu0
    %v3878 = vpop.f32.mrf.mxu0
    %3879 = vdwg.mxu0
    %3880 = vmatprep.subr.bf16.mxu0 %v3322
    %3881 = vmatpush1.bf16.msra.mxu0 %v3321
    %3882 = vmatprep.subr.bf16.mxu0 %v3315
    %3883 = vmatpush1.bf16.msra.mxu0 %v3314
    %3884 = vmatprep.subr.bf16.mxu0 %v3308
    %3885 = vmatpush1.bf16.msra.mxu0 %v3307
    %3886 = vmatprep.subr.bf16.mxu0 %v3301
    %3887 = vmatpush1.bf16.msra.mxu0 %v3300
    %3888 = vmatprep.subr.bf16.mxu0 %v3294
    %3889 = vmatpush1.bf16.msra.mxu0 %v3293
    %3890 = vmatprep.subr.bf16.mxu0 %v3287
    %3891 = vmatpush1.bf16.msra.mxu0 %v3286
    %3892 = vmatprep.subr.bf16.mxu0 %v3280
    %3893 = vmatpush1.bf16.msra.mxu0 %v3279
    %3894 = vmatprep.subr.bf16.mxu0 %v3273
    %3895 = vmatpush1.bf16.msra.mxu0 %v3272
    %3896 = vmatprep.subr.bf16.mxu0 %v3378
    %3897 = vmatpush2.bf16.msra.mxu0 %v3377
    %3898 = vmatprep.subr.bf16.mxu0 %v3371
    %3899 = vmatpush2.bf16.msra.mxu0 %v3370
    %3900 = vmatprep.subr.bf16.mxu0 %v3364
    %3901 = vmatpush2.bf16.msra.mxu0 %v3363
    %3902 = vmatprep.subr.bf16.mxu0 %v3357
    %3903 = vmatpush2.bf16.msra.mxu0 %v3356
    %3904 = vmatprep.subr.bf16.mxu0 %v3350
    %3905 = vmatpush2.bf16.msra.mxu0 %v3349
    %3906 = vmatprep.subr.bf16.mxu0 %v3343
    %3907 = vmatpush2.bf16.msra.mxu0 %v3342
    %3908 = vmatprep.subr.bf16.mxu0 %v3336
    %3909 = vmatpush2.bf16.msra.mxu0 %v3335
    %3910 = vmatprep.subr.bf16.mxu0 %v3329
    %3911 = vmatpush2.bf16.msra.mxu0 %v3328
    %3912 = vmatprep.mubr.bf16.mxu0 %v2268
    %3913 = vmatmul.mubr.bf16.gmra.mxu0 %v2267
    %v3914 = vpop.f32.mrf.mxu0
    %v3915 = vadd.f32 %v2548, %v3914
    %v3916 = vpop.f32.mrf.mxu0
    %v3917 = vadd.f32 %v2552, %v3916
    %v3918 = vpop.f32.mrf.mxu0
    %v3919 = vpop.f32.mrf.mxu0
    %3920 = vdwg.mxu0
    %3921 = vmatprep.subr.bf16.mxu0 %v3434
    %3922 = vmatpush1.bf16.msra.mxu0 %v3433
    %3923 = vmatprep.subr.bf16.mxu0 %v3427
    %3924 = vmatpush1.bf16.msra.mxu0 %v3426
    %3925 = vmatprep.subr.bf16.mxu0 %v3420
    %3926 = vmatpush1.bf16.msra.mxu0 %v3419
    %3927 = vmatprep.subr.bf16.mxu0 %v3413
    %3928 = vmatpush1.bf16.msra.mxu0 %v3412
    %3929 = vmatprep.subr.bf16.mxu0 %v3406
    %3930 = vmatpush1.bf16.msra.mxu0 %v3405
    %3931 = vmatprep.subr.bf16.mxu0 %v3399
    %3932 = vmatpush1.bf16.msra.mxu0 %v3398
    %3933 = vmatprep.subr.bf16.mxu0 %v3392
    %3934 = vmatpush1.bf16.msra.mxu0 %v3391
    %3935 = vmatprep.subr.bf16.mxu0 %v3385
    %3936 = vmatpush1.bf16.msra.mxu0 %v3384
    %3937 = vmatprep.subr.bf16.mxu0 %v3490
    %3938 = vmatpush2.bf16.msra.mxu0 %v3489
    %3939 = vmatprep.subr.bf16.mxu0 %v3483
    %3940 = vmatpush2.bf16.msra.mxu0 %v3482
    %3941 = vmatprep.subr.bf16.mxu0 %v3476
    %3942 = vmatpush2.bf16.msra.mxu0 %v3475
    %3943 = vmatprep.subr.bf16.mxu0 %v3469
    %3944 = vmatpush2.bf16.msra.mxu0 %v3468
    %3945 = vmatprep.subr.bf16.mxu0 %v3462
    %3946 = vmatpush2.bf16.msra.mxu0 %v3461
    %3947 = vmatprep.subr.bf16.mxu0 %v3455
    %3948 = vmatpush2.bf16.msra.mxu0 %v3454
    %3949 = vmatprep.subr.bf16.mxu0 %v3448
    %3950 = vmatpush2.bf16.msra.mxu0 %v3447
    %3951 = vmatprep.subr.bf16.mxu0 %v3441
    %3952 = vmatpush2.bf16.msra.mxu0 %v3440
    %3953 = vmatprep.mubr.bf16.mxu0 %v2270
    %3954 = vmatmul.mubr.bf16.gmra.mxu0 %v2269
    %v3955 = vpop.f32.mrf.mxu0
    %v3956 = vadd.f32 %v3915, %v3955
    %v3957 = vpop.f32.mrf.mxu0
    %v3958 = vadd.f32 %v3917, %v3957
    %v3959 = vpop.f32.mrf.mxu0
    %v3960 = vpop.f32.mrf.mxu0
    %3961 = vdwg.mxu0
    %3962 = vmatprep.subr.bf16.mxu0 0
    %3963 = vmatpush1.bf16.msra.mxu0 %v3323
    %3964 = vmatprep.subr.bf16.mxu0 0
    %3965 = vmatpush1.bf16.msra.mxu0 %v3316
    %3966 = vmatprep.subr.bf16.mxu0 0
    %3967 = vmatpush1.bf16.msra.mxu0 %v3309
    %3968 = vmatprep.subr.bf16.mxu0 0
    %3969 = vmatpush1.bf16.msra.mxu0 %v3302
    %3970 = vmatprep.subr.bf16.mxu0 0
    %3971 = vmatpush1.bf16.msra.mxu0 %v3295
    %3972 = vmatprep.subr.bf16.mxu0 0
    %3973 = vmatpush1.bf16.msra.mxu0 %v3288
    %3974 = vmatprep.subr.bf16.mxu0 0
    %3975 = vmatpush1.bf16.msra.mxu0 %v3281
    %3976 = vmatprep.subr.bf16.mxu0 0
    %3977 = vmatpush1.bf16.msra.mxu0 %v3274
    %3978 = vmatprep.subr.bf16.mxu0 0
    %3979 = vmatpush2.bf16.msra.mxu0 %v3379
    %3980 = vmatprep.subr.bf16.mxu0 0
    %3981 = vmatpush2.bf16.msra.mxu0 %v3372
    %3982 = vmatprep.subr.bf16.mxu0 0
    %3983 = vmatpush2.bf16.msra.mxu0 %v3365
    %3984 = vmatprep.subr.bf16.mxu0 0
    %3985 = vmatpush2.bf16.msra.mxu0 %v3358
    %3986 = vmatprep.subr.bf16.mxu0 0
    %3987 = vmatpush2.bf16.msra.mxu0 %v3351
    %3988 = vmatprep.subr.bf16.mxu0 0
    %3989 = vmatpush2.bf16.msra.mxu0 %v3344
    %3990 = vmatprep.subr.bf16.mxu0 0
    %3991 = vmatpush2.bf16.msra.mxu0 %v3337
    %3992 = vmatprep.subr.bf16.mxu0 0
    %3993 = vmatpush2.bf16.msra.mxu0 %v3330
    %3994 = vmatprep.mubr.bf16.mxu0 %v2268
    %3995 = vmatmul.mubr.bf16.gmra.mxu0 %v2267
    %v3996 = vpop.f32.mrf.mxu0
    %v3997 = vadd.f32 %v2556, %v3996
    %v3998 = vpop.f32.mrf.mxu0
    %v3999 = vpop.f32.mrf.mxu0
    %v4000 = vpop.f32.mrf.mxu0
    %4001 = vdwg.mxu0
    %4002 = vmatprep.subr.bf16.mxu0 0
    %4003 = vmatpush1.bf16.msra.mxu0 %v3435
    %4004 = vmatprep.subr.bf16.mxu0 0
    %4005 = vmatpush1.bf16.msra.mxu0 %v3428
    %4006 = vmatprep.subr.bf16.mxu0 0
    %4007 = vmatpush1.bf16.msra.mxu0 %v3421
    %4008 = vmatprep.subr.bf16.mxu0 0
    %4009 = vmatpush1.bf16.msra.mxu0 %v3414
    %4010 = vmatprep.subr.bf16.mxu0 0
    %4011 = vmatpush1.bf16.msra.mxu0 %v3407
    %4012 = vmatprep.subr.bf16.mxu0 0
    %4013 = vmatpush1.bf16.msra.mxu0 %v3400
    %4014 = vmatprep.subr.bf16.mxu0 0
    %4015 = vmatpush1.bf16.msra.mxu0 %v3393
    %4016 = vmatprep.subr.bf16.mxu0 0
    %4017 = vmatpush1.bf16.msra.mxu0 %v3386
    %4018 = vmatprep.subr.bf16.mxu0 0
    %4019 = vmatpush2.bf16.msra.mxu0 %v3491
    %4020 = vmatprep.subr.bf16.mxu0 0
    %4021 = vmatpush2.bf16.msra.mxu0 %v3484
    %4022 = vmatprep.subr.bf16.mxu0 0
    %4023 = vmatpush2.bf16.msra.mxu0 %v3477
    %4024 = vmatprep.subr.bf16.mxu0 0
    %4025 = vmatpush2.bf16.msra.mxu0 %v3470
    %4026 = vmatprep.subr.bf16.mxu0 0
    %4027 = vmatpush2.bf16.msra.mxu0 %v3463
    %4028 = vmatprep.subr.bf16.mxu0 0
    %4029 = vmatpush2.bf16.msra.mxu0 %v3456
    %4030 = vmatprep.subr.bf16.mxu0 0
    %4031 = vmatpush2.bf16.msra.mxu0 %v3449
    %4032 = vmatprep.subr.bf16.mxu0 0
    %4033 = vmatpush2.bf16.msra.mxu0 %v3442
    %4034 = vmatprep.mubr.bf16.mxu0 %v2270
    %4035 = vmatmul.mubr.bf16.gmra.mxu0 %v2269
    %v4036 = vpop.f32.mrf.mxu0
    %v4037 = vadd.f32 %v3997, %v4036
    %v4038 = vpop.f32.mrf.mxu0
    %v4039 = vpop.f32.mrf.mxu0
    %v4040 = vpop.f32.mrf.mxu0
    %4041 = vdwg.mxu0
    %v4042 = vmul.f32 %v3792, 0.5
    %v4043 = vmul.f32 %v3794, 0.5
    %v4044 = vmul.f32 %v3874, 0.5
    %v4045 = vmul.f32 %v3876, 0.5
    %v4046 = vmul.f32 %v3956, 0.5
    %v4047 = vmul.f32 %v3958, 0.5
    %v4048 = vmul.f32 %v4037, 0.5
    %v4049 = vtanh.pop %v4042
    %v4050 = vtanh.pop %v4043
    %v4051 = vtanh.pop %v4044
    %v4052 = vtanh.pop %v4045
    %v4053 = vtanh.pop %v4046
    %v4054 = vtanh.pop %v4047
    %v4055 = vtanh.pop %v4048
    %v4056 = vmul.f32 %v4049, 0.5
    %v4057 = vmul.f32 %v4050, 0.5
    %v4058 = vmul.f32 %v4051, 0.5
    %v4059 = vmul.f32 %v4052, 0.5
    %v4060 = vmul.f32 %v4053, 0.5
    %v4061 = vmul.f32 %v4054, 0.5
    %v4062 = vmul.f32 %v4055, 0.5
    %v4063 = vadd.f32 %v4056, 0.5
    %v4064 = vadd.f32 %v4057, 0.5
    %v4065 = vadd.f32 %v4058, 0.5
    %v4066 = vadd.f32 %v4059, 0.5
    %v4067 = vadd.f32 %v4060, 0.5
    %v4068 = vadd.f32 %v4061, 0.5
    %v4069 = vadd.f32 %v4062, 0.5
    %v4077 = vcombine.low %v4063, %v4064
    %v4078 = vcombine.low %v4065, %v4066
    %v4080 = vunpack.c.l.s4 1983009808
    %v4081 = vunpack.c.0.s8 %v4080
    %v4082 = vlaneseq
    %v4083 = vshrl.u32 %v4082, 7
    %v4084 = vsub.s32 %v4081, %v4083
    %v4085 = vrot.slane %v4077, %v4084
    %v4087 = vunpack.c.l.s4 1983009808
    %v4088 = vunpack.c.0.s8 %v4087
    %v4089 = vlaneseq
    %v4090 = vshrl.u32 %v4089, 7
    %v4091 = vsub.s32 %v4088, %v4090
    %v4092 = vrot.slane %v4078, %v4091
    %v4093 = vcombine.low %v4085, %v4092
    %v4094 = vcombine.low %v4067, %v4068
    %v4096 = vunpack.c.l.s4 1983009808
    %v4097 = vunpack.c.0.s8 %v4096
    %v4098 = vlaneseq
    %v4099 = vshrl.u32 %v4098, 7
    %v4100 = vsub.s32 %v4097, %v4099
    %v4101 = vrot.slane %v4094, %v4100
    %v4103 = vunpack.c.l.s4 1983009808
    %v4104 = vunpack.c.0.s8 %v4103
    %v4105 = vlaneseq
    %v4106 = vshrl.u32 %v4105, 7
    %v4107 = vsub.s32 %v4104, %v4106
    %v4108 = vrot.slane %v4069, %v4107
    %v4109 = vcombine.low %v4101, %v4108
    %4112 = vst [vmem:[#allocation2] sm:$0xff] %v4093
    %vm4113 = vcmask 1041408
    %vm4114 = vcmask 1043458
    %vm4115 = vmor %vm4114, %vm4113
    %vm4116 = vcmask 128004
    %vm4117 = vmor %vm4116, %vm4115
    %4118 = vst.msk [vmem:[#allocation2 + $0x8] sm:$0x3f] %vm4117, %v4109
    // Predicated region
    $region38: #{tpu_custom_call.1} parent=1 // pred_check
      _
    $region39: #{tpu_custom_call.1} parent=1 // pred_check_branch
      %4120 = sbr.rel (0) target = $region41
    $region40: #{tpu_custom_call.1} parent=1 // pred_region
      %s4122 = ssub.s32 224, 224
      %4123 = vsyncadd [#allocation3], %s4122
      %s4125 = sshll.u32 [#allocation2], 4
      %s4126 = int_to_ptr.vmem [resolvable:$true] %s4125
      %4128 = dma.vmem_to_hbm [thread:$0]  %s4126, 224, %s9, [#allocation3]
    $region41: #{tpu_custom_call.1} parent=1 // pred_fallthru
      _
    // Predicated region
    $region42: #{tpu_custom_call.1} parent=1 // pred_check
      _
    $region43: #{tpu_custom_call.1} parent=1 // pred_check_branch
      %4130 = sbr.rel (0) target = $region45
    $region44: #{tpu_custom_call.1} parent=1 // pred_region
      %4131 = dma.done [#allocation3], 224
    $region45: #{tpu_custom_call.1} parent=1 // pred_fallthru
      _
    %4132 = vsyncpa [#allocation3], 1

</llo_original>
